<compile_context>
chip_gen: v5e
topology: v5e:2x2
jax: 0.10.0
libtpu: 0.0.40
codegen_flags: <defaults>
</compile_context>

<pallas_src>
import functools

import jax
import jax.numpy as jnp
import numpy as np
from jax.experimental import pallas as pl
from jax.experimental.pallas import tpu as pltpu


# ----------------------------------------------------------------------------
# Pallas kernels
# ----------------------------------------------------------------------------
def _mm_bias_leaky_kernel(x_ref, w_ref, b_ref, o_ref):
    """o = LeakyReLU(x @ w + b), one M-tile per grid step (bf16 in, f32 out)."""
    acc = jnp.dot(x_ref[...], w_ref[...], preferred_element_type=jnp.float32)
    acc = acc + b_ref[...]                       # (1, N) broadcasts over rows
    o_ref[...] = jnp.where(acc > 0, acc, 0.01 * acc)


def matmul_bias_leaky(x, w, b, tm):
    """x: (M, K) bf16, w: (K, N) bf16, b: (N,) f32 -> (M, N) f32. M % tm == 0."""
    M, K = x.shape
    _, N = w.shape
    assert M % tm == 0
    return pl.pallas_call(
        _mm_bias_leaky_kernel,
        out_shape=jax.ShapeDtypeStruct((M, N), jnp.float32),
        grid=(M // tm,),
        in_specs=[
            pl.BlockSpec((tm, K), lambda i: (i, 0)),
            pl.BlockSpec((K, N), lambda i: (0, 0)),
            pl.BlockSpec((1, N), lambda i: (0, 0)),
        ],
        out_specs=pl.BlockSpec((tm, N), lambda i: (i, 0)),
        compiler_params=pltpu.CompilerParams(dimension_semantics=("parallel",)),
    )(x, w, b.reshape(1, N).astype(jnp.float32))


def _maxpool_kernel(x_ref, o_ref, *, C):
    # x block: (N*H2, 2, W2, 2C) -- a pure row-major view of the NHWC activation.
    x = x_ref[...]
    m = jnp.maximum(x[:, 0], x[:, 1])            # max over the h-pair   -> (R, W2, 2C)
    o_ref[...] = jnp.maximum(m[..., :C], m[..., C:])   # max over the w-pair -> (R, W2, C)


def maxpool2x2_nhwc(x):
    """MaxPool2d(2) on NHWC input (floor semantics). No transposes in glue."""
    N, H, W, C = x.shape
    H2, W2 = H // 2, W // 2
    xc = x[:, : 2 * H2, : 2 * W2, :]
    xr = xc.reshape(N * H2, 2, W2, 2 * C)        # free row-major reshape
    out = pl.pallas_call(
        functools.partial(_maxpool_kernel, C=C),
        out_shape=jax.ShapeDtypeStruct((N * H2, W2, C), x.dtype),
        grid=(1,),
        in_specs=[pl.BlockSpec((N * H2, 2, W2, 2 * C), lambda i: (0, 0, 0, 0))],
        out_specs=pl.BlockSpec((N * H2, W2, C), lambda i: (0, 0, 0)),
    )(xr)
    return out.reshape(N, H2, W2, C)


def _tail_kernel(x_ref, w3_ref, b3_ref, w1_ref, b1_ref, w2_ref, b2_ref,
                 wo_ref, bo_ref, o_ref, p_scr, flat_scr, *, n_batch, hw, c3):
    """Fused: conv3(1x1)+LeakyReLU -> maxpool3 -> flatten -> Lin+ReLU -> Lin+ReLU -> Lin.

    x rows are pre-ordered in glue as (window_pos q3, n, i3, j3) so pool3 is a max
    of 4 contiguous row-blocks.
    """
    y = jnp.dot(x_ref[...], w3_ref[...], preferred_element_type=jnp.float32)
    y = y + b3_ref[...]
    y = jnp.where(y > 0, y, 0.01 * y)                          # (4*T, C3)
    t = n_batch * hw
    p = jnp.maximum(jnp.maximum(y[0:t], y[t:2 * t]),
                    jnp.maximum(y[2 * t:3 * t], y[3 * t:4 * t]))   # (T, C3), rows=(n,i,j)
    p_scr[...] = p
    # flatten per sample in (i, j, c) order (Linear-1 weight was permuted to match)
    for n in range(n_batch):
        for s in range(hw):
            r = n * hw + s
            flat_scr[n:n + 1, s * c3:(s + 1) * c3] = p_scr[r:r + 1, :]
    flat = flat_scr[...].astype(jnp.bfloat16)                  # (N, hw*C3)
    h = jnp.dot(flat, w1_ref[...], preferred_element_type=jnp.float32) + b1_ref[...]
    h = jnp.maximum(h, 0.0).astype(jnp.bfloat16)
    h = jnp.dot(h, w2_ref[...], preferred_element_type=jnp.float32) + b2_ref[...]
    h = jnp.maximum(h, 0.0).astype(jnp.bfloat16)
    # TODO(synk): Dropout(0.5) treated as identity (eval-mode semantics).
    out = jnp.dot(h, wo_ref[...], preferred_element_type=jnp.float32) + bo_ref[...]
    o_ref[...] = out.astype(o_ref.dtype)


def tail_fused(x64, w3m, b3, w1p, b1, w2p, b2, wop, bo, *, n_batch, hw, c3, classes):
    kernel = functools.partial(_tail_kernel, n_batch=n_batch, hw=hw, c3=c3)

    def full2d(shape):
        return pl.BlockSpec(tuple(shape), lambda i: (0, 0))

    return pl.pallas_call(
        kernel,
        out_shape=jax.ShapeDtypeStruct((n_batch, classes), jnp.float32),
        grid=(1,),
        in_specs=[
            full2d(x64.shape), full2d(w3m.shape), full2d((1, c3)),
            full2d(w1p.shape), full2d((1, 128)),
            full2d(w2p.shape), full2d((1, 64)),
            full2d(wop.shape), full2d((1, classes)),
        ],
        out_specs=pl.BlockSpec((n_batch, classes), lambda i: (0, 0)),
        scratch_shapes=[pltpu.VMEM((n_batch * hw, c3), jnp.float32),
                        pltpu.VMEM((n_batch, hw * c3), jnp.float32)],
    )(x64, w3m, b3.reshape(1, -1), w1p, b1.reshape(1, -1),
      w2p, b2.reshape(1, -1), wop, bo.reshape(1, -1))


# ----------------------------------------------------------------------------
# Full forward pass
# ----------------------------------------------------------------------------
def distill_cnn_forward(x_nchw, p):
    N = x_nchw.shape[0]
    classes = p["lw3"].shape[0]

    # ---- conv1: Conv2d(1, 64, k=9, s=2, p=1) + LeakyReLU ----
    x = jnp.transpose(x_nchw, (0, 2, 3, 1))                        # NHWC (N,40,72,1)
    patches = jax.lax.conv_general_dilated_patches(
        x, filter_shape=(9, 9), window_strides=(2, 2),
        padding=((1, 1), (1, 1)),
        dimension_numbers=("NHWC", "HWIO", "NHWC"))                # (N,17,33,81)
    OH1, OW1 = patches.shape[1], patches.shape[2]
    M1 = N * OH1 * OW1
    tm1 = 384
    M1p = ((M1 + tm1 - 1) // tm1) * tm1
    pat1 = patches.reshape(M1, 81).astype(jnp.bfloat16)
    pat1 = jnp.pad(pat1, ((0, M1p - M1), (0, 128 - 81)))           # pad M + K(81->128)
    w1m = jnp.transpose(p["w1"], (1, 2, 3, 0)).reshape(81, 64)     # (kh*kw*Cin, Cout)
    w1m = jnp.pad(w1m, ((0, 128 - 81), (0, 0))).astype(jnp.bfloat16)
    a1 = matmul_bias_leaky(pat1, w1m, p["b1"], tm=tm1)[:M1]
    a1 = a1.reshape(N, OH1, OW1, 64)

    # ---- MaxPool2d(2) ----
    a1 = maxpool2x2_nhwc(a1)                                       # (N,8,16,64)

    # ---- conv2: Conv2d(64, 128, k=3, p=1) + LeakyReLU ----
    H2i, W2i, C2i = a1.shape[1], a1.shape[2], a1.shape[3]
    xb = a1.astype(jnp.bfloat16)
    xp = jnp.pad(xb, ((0, 0), (1, 1), (1, 1), (0, 0)))
    cols = [xp[:, di:di + H2i, dj:dj + W2i, :]
            for di in range(3) for dj in range(3)]
    pat2 = jnp.stack(cols, axis=3).reshape(N * H2i * W2i, 9 * C2i)  # (256, 576)
    w2m = jnp.transpose(p["w2"], (2, 3, 1, 0)).reshape(9 * C2i, 128).astype(jnp.bfloat16)
    a2 = matmul_bias_leaky(pat2, w2m, p["b2"], tm=128)
    a2 = a2.reshape(N, H2i, W2i, 128)                               # (N,8,16,128)

    # ---- MaxPool2d(2) ----
    a2 = maxpool2x2_nhwc(a2)                                        # (N,4,8,128)

    # ---- fused tail: Conv2d(128,128,1)+LeakyReLU + MaxPool2d(2) + flatten + MLP ----
    H3, W3 = a2.shape[1] // 2, a2.shape[2] // 2                     # pool3 output (2,4)
    hw = H3 * W3
    # Reorder rows so the 4 pool3 window positions become 4 contiguous row blocks,
    # inner order (n, i3, j3).  32 KB one-off XLA transpose.
    xt = a2.reshape(N, H3, 2, W3, 2, 128).transpose(2, 4, 0, 1, 3, 5)
    xt = xt.reshape(4 * N * hw, 128).astype(jnp.bfloat16)           # (64,128)
    w3m = p["w3"].reshape(128, 128).T.astype(jnp.bfloat16)          # (Cin, Cout)
    # Permute Linear-1 weight rows from NCHW-flatten order (c,i,j) to our (i,j,c).
    w1p = p["lw1"].reshape(128, 128, H3, W3).transpose(2, 3, 1, 0).reshape(hw * 128, 128)
    w1p = w1p.astype(jnp.bfloat16)
    w2p = p["lw2"].T.astype(jnp.bfloat16)                           # (128,64)
    wop = p["lw3"].T.astype(jnp.bfloat16)                           # (64,classes)
    return tail_fused(xt, w3m, p["b3"], w1p, p["lb1"], w2p, p["lb2"], wop, p["lb3"],
                      n_batch=N, hw=hw, c3=128, classes=classes)


# ----------------------------------------------------------------------------
# Pure-JAX reference (for correctness check)
# ----------------------------------------------------------------------------
def ref_forward(x, p):
    def leaky(v):
        return jnp.where(v > 0, v, 0.01 * v)

    def pool(v):  # NCHW
        n, c, h, w = v.shape
        v = v[:, :, : 2 * (h // 2), : 2 * (w // 2)]
        v = v.reshape(n, c, h // 2, 2, w // 2, 2)
        return v.max(axis=(3, 5))

    def conv(v, w, b, s, pd):
        o = jax.lax.conv_general_dilated(
            v, w, (s, s), ((pd, pd), (pd, pd)),
            dimension_numbers=("NCHW", "OIHW", "NCHW"))
        return o + b[None, :, None, None]

    v = pool(leaky(conv(x, p["w1"], p["b1"], 2, 1)))
    v = pool(leaky(conv(v, p["w2"], p["b2"], 1, 1)))
    v = pool(leaky(conv(v, p["w3"], p["b3"], 1, 0)))
    v = v.reshape(v.shape[0], -1)
    v = jnp.maximum(v @ p["lw1"].T + p["lb1"], 0.0)
    v = jnp.maximum(v @ p["lw2"].T + p["lb2"], 0.0)
    v = v @ p["lw3"].T + p["lb3"]
    return v


# ----------------------------------------------------------------------------
# Main
# ----------------------------------------------------------------------------
if __name__ == "__main__":
    classes = 4
    key = jax.random.PRNGKey(0)
    ks = jax.random.split(key, 13)

    def rnd(k, shape, scale=0.05):
        return (scale * jax.random.normal(k, shape)).astype(jnp.float32)

    params = {
        "w1": rnd(ks[0], (64, 1, 9, 9)),    "b1": rnd(ks[1], (64,)),
        "w2": rnd(ks[2], (128, 64, 3, 3)),  "b2": rnd(ks[3], (128,)),
        "w3": rnd(ks[4], (128, 128, 1, 1)), "b3": rnd(ks[5], (128,)),
        "lw1": rnd(ks[6], (128, 1024)),     "lb1": rnd(ks[7], (128,)),
        "lw2": rnd(ks[8], (64, 128)),       "lb2": rnd(ks[9], (64,)),
        "lw3": rnd(ks[10], (classes, 64)),  "lb3": rnd(ks[11], (classes,)),
    }

    # Input (N, 1, 40, 72): after the CNN stack the flattened dim is exactly
    # 128*2*4 = 1024, matching hidden_dim for task='heartchallenge'.
    x = jax.random.normal(ks[12], (2, 1, 40, 72), dtype=jnp.float32)

    fwd = jax.jit(distill_cnn_forward)
    out = jax.block_until_ready(fwd(x, params))
    assert out.shape == (2, classes), out.shape

    ref = jax.block_until_ready(ref_forward(x, params))
    np.testing.assert_allclose(np.asarray(out), np.asarray(ref), rtol=2e-2, atol=2e-2)

    print("KERNEL_OK")
</pallas_src>

<mosaic_0001>
module attributes {stable_mosaic.version = 11 : i64} {
  func.func @_mm_bias_leaky_kernel(%arg0: i32, %arg1: memref<384x128xbf16, #tpu.memory_space<vmem>>, %arg2: memref<128x64xbf16, #tpu.memory_space<vmem>>, %arg3: memref<1x64xf32, #tpu.memory_space<vmem>>, %arg4: memref<384x64xf32, #tpu.memory_space<vmem>>) attributes {dimension_semantics = [#tpu.dimension_semantics<parallel>], iteration_bounds = array<i64: 3>, scalar_prefetch = 0 : i64, scratch_operands = 0 : i64, tpu.core_type = #tpu.core_type<tc>, window_params = [{transform_indices = @transform_0, window_bounds = array<i64: 384, 128>}, {pipeline_mode = #tpu.pipeline_mode<synchronous>, transform_indices = @transform_1, window_bounds = array<i64: 128, 64>}, {pipeline_mode = #tpu.pipeline_mode<synchronous>, transform_indices = @transform_2, window_bounds = array<i64: 1, 64>}, {transform_indices = @transform_3, window_bounds = array<i64: 384, 64>}]} {
    %c0 = arith.constant 0 : index
    %c0_0 = arith.constant 0 : index
    %0 = vector.load %arg1[%c0, %c0_0] : memref<384x128xbf16, #tpu.memory_space<vmem>>, vector<384x128xbf16>
    %c0_1 = arith.constant 0 : index
    %c0_2 = arith.constant 0 : index
    %1 = vector.load %arg2[%c0_1, %c0_2] : memref<128x64xbf16, #tpu.memory_space<vmem>>, vector<128x64xbf16>
    %cst = arith.constant dense<0.000000e+00> : vector<384x64xf32>
    %2 = tpu.matmul %0, %1, %cst {dimension_numbers = #tpu.dot_dimension_numbers<[1], [0], [0], [1], [0, 0, 1, 1], [], []>} : vector<384x128xbf16>, vector<128x64xbf16>, vector<384x64xf32> -> vector<384x64xf32>
    %c0_3 = arith.constant 0 : index
    %c0_4 = arith.constant 0 : index
    %3 = vector.load %arg3[%c0_3, %c0_4] : memref<1x64xf32, #tpu.memory_space<vmem>>, vector<1x64xf32>
    %4 = vector.broadcast %3 : vector<1x64xf32> to vector<384x64xf32>
    %5 = arith.addf %2, %4 : vector<384x64xf32>
    %cst_5 = arith.constant 0.000000e+00 : f32
    %6 = vector.broadcast %cst_5 : f32 to vector<384x64xf32>
    %7 = arith.cmpf ogt, %5, %6 : vector<384x64xf32>
    %cst_6 = arith.constant 0.00999999977 : f32
    %8 = vector.broadcast %cst_6 : f32 to vector<384x64xf32>
    %9 = arith.mulf %8, %5 : vector<384x64xf32>
    %10 = arith.select %7, %5, %9 : vector<384x64xi1>, vector<384x64xf32>
    %c0_7 = arith.constant 0 : index
    %c0_8 = arith.constant 0 : index
    %11 = vector.load %arg4[%c0_7, %c0_8] : memref<384x64xf32, #tpu.memory_space<vmem>>, vector<384x64xf32>
    tpu.vector_store %arg4[%c0_7, %c0_8], %10 {strides = array<i32>} : memref<384x64xf32, #tpu.memory_space<vmem>>, vector<384x64xf32>,
    return
  }
  func.func @transform_0(%arg0: i32) -> (i32, i32) {
    %c0_i32 = arith.constant 0 : i32
    %c0_i32_0 = arith.constant 0 : i32
    return %arg0, %c0_i32 : i32, i32
  }
  func.func @transform_1(%arg0: i32) -> (i32, i32) {
    %c0_i32 = arith.constant 0 : i32
    %c0_i32_0 = arith.constant 0 : i32
    %c0_i32_1 = arith.constant 0 : i32
    return %c0_i32, %c0_i32_0 : i32, i32
  }
  func.func @transform_2(%arg0: i32) -> (i32, i32) {
    %c0_i32 = arith.constant 0 : i32
    %c0_i32_0 = arith.constant 0 : i32
    %c0_i32_1 = arith.constant 0 : i32
    return %c0_i32, %c0_i32_0 : i32, i32
  }
  func.func @transform_3(%arg0: i32) -> (i32, i32) {
    %c0_i32 = arith.constant 0 : i32
    %c0_i32_0 = arith.constant 0 : i32
    return %arg0, %c0_i32 : i32, i32
  }
}

module attributes {stable_mosaic.version = 11 : i64} {
  func.func @_maxpool_kernel(%arg0: i32, %arg1: memref<16x2x16x128xf32, #tpu.memory_space<vmem>>, %arg2: memref<16x16x64xf32, #tpu.memory_space<vmem>>) attributes {dimension_semantics = [#tpu.dimension_semantics<arbitrary>], iteration_bounds = array<i64: 1>, scalar_prefetch = 0 : i64, scratch_operands = 0 : i64, tpu.core_type = #tpu.core_type<tc>, window_params = [{pipeline_mode = #tpu.pipeline_mode<synchronous>, transform_indices = @transform_0, window_bounds = array<i64: 16, 2, 16, 128>}, {pipeline_mode = #tpu.pipeline_mode<synchronous>, transform_indices = @transform_1, window_bounds = array<i64: 16, 16, 64>}]} {
    %c0 = arith.constant 0 : index
    %c0_0 = arith.constant 0 : index
    %c0_1 = arith.constant 0 : index
    %c0_2 = arith.constant 0 : index
    %0 = vector.load %arg1[%c0, %c0_0, %c0_1, %c0_2] : memref<16x2x16x128xf32, #tpu.memory_space<vmem>>, vector<16x2x16x128xf32>
    %1 = vector.extract_strided_slice %0 {offsets = [0, 0, 0, 0], sizes = [16, 1, 16, 128], strides = [1, 1, 1, 1]} : vector<16x2x16x128xf32> to vector<16x1x16x128xf32>
    %2 = vector.shape_cast %1 : vector<16x1x16x128xf32> to vector<16x16x128xf32>
    %3 = vector.extract_strided_slice %0 {offsets = [0, 1, 0, 0], sizes = [16, 1, 16, 128], strides = [1, 1, 1, 1]} : vector<16x2x16x128xf32> to vector<16x1x16x128xf32>
    %4 = vector.shape_cast %3 : vector<16x1x16x128xf32> to vector<16x16x128xf32>
    %5 = arith.maximumf %2, %4 : vector<16x16x128xf32>
    %6 = vector.extract_strided_slice %5 {offsets = [0, 0, 0], sizes = [16, 16, 64], strides = [1, 1, 1]} : vector<16x16x128xf32> to vector<16x16x64xf32>
    %7 = vector.extract_strided_slice %5 {offsets = [0, 0, 64], sizes = [16, 16, 64], strides = [1, 1, 1]} : vector<16x16x128xf32> to vector<16x16x64xf32>
    %8 = arith.maximumf %6, %7 : vector<16x16x64xf32>
    %c0_3 = arith.constant 0 : index
    %c0_4 = arith.constant 0 : index
    %c0_5 = arith.constant 0 : index
    %9 = vector.load %arg2[%c0_3, %c0_4, %c0_5] : memref<16x16x64xf32, #tpu.memory_space<vmem>>, vector<16x16x64xf32>
    tpu.vector_store %arg2[%c0_3, %c0_4, %c0_5], %8 {strides = array<i32>} : memref<16x16x64xf32, #tpu.memory_space<vmem>>, vector<16x16x64xf32>,
    return
  }
  func.func @transform_0(%arg0: i32) -> (i32, i32, i32, i32) {
    %c0_i32 = arith.constant 0 : i32
    %c0_i32_0 = arith.constant 0 : i32
    %c0_i32_1 = arith.constant 0 : i32
    %c0_i32_2 = arith.constant 0 : i32
    %c0_i32_3 = arith.constant 0 : i32
    return %c0_i32, %c0_i32_0, %c0_i32_1, %c0_i32_2 : i32, i32, i32, i32
  }
  func.func @transform_1(%arg0: i32) -> (i32, i32, i32) {
    %c0_i32 = arith.constant 0 : i32
    %c0_i32_0 = arith.constant 0 : i32
    %c0_i32_1 = arith.constant 0 : i32
    %c0_i32_2 = arith.constant 0 : i32
    return %c0_i32, %c0_i32_0, %c0_i32_1 : i32, i32, i32
  }
}

module attributes {stable_mosaic.version = 11 : i64} {
  func.func @_mm_bias_leaky_kernel(%arg0: i32, %arg1: memref<128x576xbf16, #tpu.memory_space<vmem>>, %arg2: memref<576x128xbf16, #tpu.memory_space<vmem>>, %arg3: memref<1x128xf32, #tpu.memory_space<vmem>>, %arg4: memref<128x128xf32, #tpu.memory_space<vmem>>) attributes {dimension_semantics = [#tpu.dimension_semantics<parallel>], iteration_bounds = array<i64: 2>, scalar_prefetch = 0 : i64, scratch_operands = 0 : i64, tpu.core_type = #tpu.core_type<tc>, window_params = [{transform_indices = @transform_0, window_bounds = array<i64: 128, 576>}, {pipeline_mode = #tpu.pipeline_mode<synchronous>, transform_indices = @transform_1, window_bounds = array<i64: 576, 128>}, {pipeline_mode = #tpu.pipeline_mode<synchronous>, transform_indices = @transform_2, window_bounds = array<i64: 1, 128>}, {transform_indices = @transform_3, window_bounds = array<i64: 128, 128>}]} {
    %c0 = arith.constant 0 : index
    %c0_0 = arith.constant 0 : index
    %0 = vector.load %arg1[%c0, %c0_0] : memref<128x576xbf16, #tpu.memory_space<vmem>>, vector<128x576xbf16>
    %c0_1 = arith.constant 0 : index
    %c0_2 = arith.constant 0 : index
    %1 = vector.load %arg2[%c0_1, %c0_2] : memref<576x128xbf16, #tpu.memory_space<vmem>>, vector<576x128xbf16>
    %cst = arith.constant dense<0.000000e+00> : vector<128x128xf32>
    %2 = tpu.matmul %0, %1, %cst {dimension_numbers = #tpu.dot_dimension_numbers<[1], [0], [0], [1], [0, 0, 1, 1], [], []>} : vector<128x576xbf16>, vector<576x128xbf16>, vector<128x128xf32> -> vector<128x128xf32>
    %c0_3 = arith.constant 0 : index
    %c0_4 = arith.constant 0 : index
    %3 = vector.load %arg3[%c0_3, %c0_4] : memref<1x128xf32, #tpu.memory_space<vmem>>, vector<1x128xf32>
    %4 = vector.broadcast %3 : vector<1x128xf32> to vector<128x128xf32>
    %5 = arith.addf %2, %4 : vector<128x128xf32>
    %cst_5 = arith.constant 0.000000e+00 : f32
    %6 = vector.broadcast %cst_5 : f32 to vector<128x128xf32>
    %7 = arith.cmpf ogt, %5, %6 : vector<128x128xf32>
    %cst_6 = arith.constant 0.00999999977 : f32
    %8 = vector.broadcast %cst_6 : f32 to vector<128x128xf32>
    %9 = arith.mulf %8, %5 : vector<128x128xf32>
    %10 = arith.select %7, %5, %9 : vector<128x128xi1>, vector<128x128xf32>
    %c0_7 = arith.constant 0 : index
    %c0_8 = arith.constant 0 : index
    %11 = vector.load %arg4[%c0_7, %c0_8] : memref<128x128xf32, #tpu.memory_space<vmem>>, vector<128x128xf32>
    tpu.vector_store %arg4[%c0_7, %c0_8], %10 {strides = array<i32>} : memref<128x128xf32, #tpu.memory_space<vmem>>, vector<128x128xf32>,
    return
  }
  func.func @transform_0(%arg0: i32) -> (i32, i32) {
    %c0_i32 = arith.constant 0 : i32
    %c0_i32_0 = arith.constant 0 : i32
    return %arg0, %c0_i32 : i32, i32
  }
  func.func @transform_1(%arg0: i32) -> (i32, i32) {
    %c0_i32 = arith.constant 0 : i32
    %c0_i32_0 = arith.constant 0 : i32
    %c0_i32_1 = arith.constant 0 : i32
    return %c0_i32, %c0_i32_0 : i32, i32
  }
  func.func @transform_2(%arg0: i32) -> (i32, i32) {
    %c0_i32 = arith.constant 0 : i32
    %c0_i32_0 = arith.constant 0 : i32
    %c0_i32_1 = arith.constant 0 : i32
    return %c0_i32, %c0_i32_0 : i32, i32
  }
  func.func @transform_3(%arg0: i32) -> (i32, i32) {
    %c0_i32 = arith.constant 0 : i32
    %c0_i32_0 = arith.constant 0 : i32
    return %arg0, %c0_i32 : i32, i32
  }
}

module attributes {stable_mosaic.version = 11 : i64} {
  func.func @_maxpool_kernel(%arg0: i32, %arg1: memref<8x2x8x256xf32, #tpu.memory_space<vmem>>, %arg2: memref<8x8x128xf32, #tpu.memory_space<vmem>>) attributes {dimension_semantics = [#tpu.dimension_semantics<arbitrary>], iteration_bounds = array<i64: 1>, scalar_prefetch = 0 : i64, scratch_operands = 0 : i64, tpu.core_type = #tpu.core_type<tc>, window_params = [{pipeline_mode = #tpu.pipeline_mode<synchronous>, transform_indices = @transform_0, window_bounds = array<i64: 8, 2, 8, 256>}, {pipeline_mode = #tpu.pipeline_mode<synchronous>, transform_indices = @transform_1, window_bounds = array<i64: 8, 8, 128>}]} {
    %c0 = arith.constant 0 : index
    %c0_0 = arith.constant 0 : index
    %c0_1 = arith.constant 0 : index
    %c0_2 = arith.constant 0 : index
    %0 = vector.load %arg1[%c0, %c0_0, %c0_1, %c0_2] : memref<8x2x8x256xf32, #tpu.memory_space<vmem>>, vector<8x2x8x256xf32>
    %1 = vector.extract_strided_slice %0 {offsets = [0, 0, 0, 0], sizes = [8, 1, 8, 256], strides = [1, 1, 1, 1]} : vector<8x2x8x256xf32> to vector<8x1x8x256xf32>
    %2 = vector.shape_cast %1 : vector<8x1x8x256xf32> to vector<8x8x256xf32>
    %3 = vector.extract_strided_slice %0 {offsets = [0, 1, 0, 0], sizes = [8, 1, 8, 256], strides = [1, 1, 1, 1]} : vector<8x2x8x256xf32> to vector<8x1x8x256xf32>
    %4 = vector.shape_cast %3 : vector<8x1x8x256xf32> to vector<8x8x256xf32>
    %5 = arith.maximumf %2, %4 : vector<8x8x256xf32>
    %6 = vector.extract_strided_slice %5 {offsets = [0, 0, 0], sizes = [8, 8, 128], strides = [1, 1, 1]} : vector<8x8x256xf32> to vector<8x8x128xf32>
    %7 = vector.extract_strided_slice %5 {offsets = [0, 0, 128], sizes = [8, 8, 128], strides = [1, 1, 1]} : vector<8x8x256xf32> to vector<8x8x128xf32>
    %8 = arith.maximumf %6, %7 : vector<8x8x128xf32>
    %c0_3 = arith.constant 0 : index
    %c0_4 = arith.constant 0 : index
    %c0_5 = arith.constant 0 : index
    %9 = vector.load %arg2[%c0_3, %c0_4, %c0_5] : memref<8x8x128xf32, #tpu.memory_space<vmem>>, vector<8x8x128xf32>
    tpu.vector_store %arg2[%c0_3, %c0_4, %c0_5], %8 {strides = array<i32>} : memref<8x8x128xf32, #tpu.memory_space<vmem>>, vector<8x8x128xf32>,
    return
  }
  func.func @transform_0(%arg0: i32) -> (i32, i32, i32, i32) {
    %c0_i32 = arith.constant 0 : i32
    %c0_i32_0 = arith.constant 0 : i32
    %c0_i32_1 = arith.constant 0 : i32
    %c0_i32_2 = arith.constant 0 : i32
    %c0_i32_3 = arith.constant 0 : i32
    return %c0_i32, %c0_i32_0, %c0_i32_1, %c0_i32_2 : i32, i32, i32, i32
  }
  func.func @transform_1(%arg0: i32) -> (i32, i32, i32) {
    %c0_i32 = arith.constant 0 : i32
    %c0_i32_0 = arith.constant 0 : i32
    %c0_i32_1 = arith.constant 0 : i32
    %c0_i32_2 = arith.constant 0 : i32
    return %c0_i32, %c0_i32_0, %c0_i32_1 : i32, i32, i32
  }
}

module attributes {stable_mosaic.version = 11 : i64} {
  func.func @_tail_kernel(%arg0: i32, %arg1: memref<64x128xbf16, #tpu.memory_space<vmem>>, %arg2: memref<128x128xbf16, #tpu.memory_space<vmem>>, %arg3: memref<1x128xf32, #tpu.memory_space<vmem>>, %arg4: memref<1024x128xbf16, #tpu.memory_space<vmem>>, %arg5: memref<1x128xf32, #tpu.memory_space<vmem>>, %arg6: memref<128x64xbf16, #tpu.memory_space<vmem>>, %arg7: memref<1x64xf32, #tpu.memory_space<vmem>>, %arg8: memref<64x4xbf16, #tpu.memory_space<vmem>>, %arg9: memref<1x4xf32, #tpu.memory_space<vmem>>, %arg10: memref<2x4xf32, #tpu.memory_space<vmem>>, %arg11: memref<16x128xf32, #tpu.memory_space<vmem>>, %arg12: memref<2x1024xf32, #tpu.memory_space<vmem>>) attributes {dimension_semantics = [#tpu.dimension_semantics<arbitrary>], iteration_bounds = array<i64: 1>, scalar_prefetch = 0 : i64, scratch_operands = 2 : i64, tpu.core_type = #tpu.core_type<tc>, window_params = [{pipeline_mode = #tpu.pipeline_mode<synchronous>, transform_indices = @transform_0, window_bounds = array<i64: 64, 128>}, {pipeline_mode = #tpu.pipeline_mode<synchronous>, transform_indices = @transform_1, window_bounds = array<i64: 128, 128>}, {pipeline_mode = #tpu.pipeline_mode<synchronous>, transform_indices = @transform_2, window_bounds = array<i64: 1, 128>}, {pipeline_mode = #tpu.pipeline_mode<synchronous>, transform_indices = @transform_3, window_bounds = array<i64: 1024, 128>}, {pipeline_mode = #tpu.pipeline_mode<synchronous>, transform_indices = @transform_4, window_bounds = array<i64: 1, 128>}, {pipeline_mode = #tpu.pipeline_mode<synchronous>, transform_indices = @transform_5, window_bounds = array<i64: 128, 64>}, {pipeline_mode = #tpu.pipeline_mode<synchronous>, transform_indices = @transform_6, window_bounds = array<i64: 1, 64>}, {pipeline_mode = #tpu.pipeline_mode<synchronous>, transform_indices = @transform_7, window_bounds = array<i64: 64, 4>}, {pipeline_mode = #tpu.pipeline_mode<synchronous>, transform_indices = @transform_8, window_bounds = array<i64: 1, 4>}, {pipeline_mode = #tpu.pipeline_mode<synchronous>, transform_indices = @transform_9, window_bounds = array<i64: 2, 4>}]} {
    %c0 = arith.constant 0 : index
    %c0_0 = arith.constant 0 : index
    %0 = vector.load %arg1[%c0, %c0_0] : memref<64x128xbf16, #tpu.memory_space<vmem>>, vector<64x128xbf16>
    %c0_1 = arith.constant 0 : index
    %c0_2 = arith.constant 0 : index
    %1 = vector.load %arg2[%c0_1, %c0_2] : memref<128x128xbf16, #tpu.memory_space<vmem>>, vector<128x128xbf16>
    %cst = arith.constant dense<0.000000e+00> : vector<64x128xf32>
    %2 = tpu.matmul %0, %1, %cst {dimension_numbers = #tpu.dot_dimension_numbers<[1], [0], [0], [1], [0, 0, 1, 1], [], []>} : vector<64x128xbf16>, vector<128x128xbf16>, vector<64x128xf32> -> vector<64x128xf32>
    %c0_3 = arith.constant 0 : index
    %c0_4 = arith.constant 0 : index
    %3 = vector.load %arg3[%c0_3, %c0_4] : memref<1x128xf32, #tpu.memory_space<vmem>>, vector<1x128xf32>
    %4 = vector.broadcast %3 : vector<1x128xf32> to vector<64x128xf32>
    %5 = arith.addf %2, %4 : vector<64x128xf32>
    %cst_5 = arith.constant 0.000000e+00 : f32
    %6 = vector.broadcast %cst_5 : f32 to vector<64x128xf32>
    %7 = arith.cmpf ogt, %5, %6 : vector<64x128xf32>
    %cst_6 = arith.constant 0.00999999977 : f32
    %8 = vector.broadcast %cst_6 : f32 to vector<64x128xf32>
    %9 = arith.mulf %8, %5 : vector<64x128xf32>
    %10 = arith.select %7, %5, %9 : vector<64x128xi1>, vector<64x128xf32>
    %11 = vector.extract_strided_slice %10 {offsets = [0, 0], sizes = [16, 128], strides = [1, 1]} : vector<64x128xf32> to vector<16x128xf32>
    %12 = vector.extract_strided_slice %10 {offsets = [16, 0], sizes = [16, 128], strides = [1, 1]} : vector<64x128xf32> to vector<16x128xf32>
    %13 = arith.maximumf %11, %12 : vector<16x128xf32>
    %14 = vector.extract_strided_slice %10 {offsets = [32, 0], sizes = [16, 128], strides = [1, 1]} : vector<64x128xf32> to vector<16x128xf32>
    %15 = vector.extract_strided_slice %10 {offsets = [48, 0], sizes = [16, 128], strides = [1, 1]} : vector<64x128xf32> to vector<16x128xf32>
    %16 = arith.maximumf %14, %15 : vector<16x128xf32>
    %17 = arith.maximumf %13, %16 : vector<16x128xf32>
    %c0_7 = arith.constant 0 : index
    %c0_8 = arith.constant 0 : index
    %18 = vector.load %arg11[%c0_7, %c0_8] : memref<16x128xf32, #tpu.memory_space<vmem>>, vector<16x128xf32>
    tpu.vector_store %arg11[%c0_7, %c0_8], %17 {strides = array<i32>} : memref<16x128xf32, #tpu.memory_space<vmem>>, vector<16x128xf32>,
    %c0_9 = arith.constant 0 : index
    %c0_10 = arith.constant 0 : index
    %19 = vector.load %arg11[%c0_9, %c0_10] : memref<16x128xf32, #tpu.memory_space<vmem>>, vector<1x128xf32>
    %c0_11 = arith.constant 0 : index
    %c0_12 = arith.constant 0 : index
    %20 = vector.load %arg12[%c0_11, %c0_12] : memref<2x1024xf32, #tpu.memory_space<vmem>>, vector<1x128xf32>
    tpu.vector_store %arg12[%c0_11, %c0_12], %19 {strides = array<i32>} : memref<2x1024xf32, #tpu.memory_space<vmem>>, vector<1x128xf32>,
    %c1 = arith.constant 1 : index
    %c0_13 = arith.constant 0 : index
    %21 = vector.load %arg11[%c1, %c0_13] : memref<16x128xf32, #tpu.memory_space<vmem>>, vector<1x128xf32>
    %c0_14 = arith.constant 0 : index
    %c128 = arith.constant 128 : index
    %22 = vector.load %arg12[%c0_14, %c128] : memref<2x1024xf32, #tpu.memory_space<vmem>>, vector<1x128xf32>
    tpu.vector_store %arg12[%c0_14, %c128], %21 {strides = array<i32>} : memref<2x1024xf32, #tpu.memory_space<vmem>>, vector<1x128xf32>,
    %c2 = arith.constant 2 : index
    %c0_15 = arith.constant 0 : index
    %23 = vector.load %arg11[%c2, %c0_15] : memref<16x128xf32, #tpu.memory_space<vmem>>, vector<1x128xf32>
    %c0_16 = arith.constant 0 : index
    %c256 = arith.constant 256 : index
    %24 = vector.load %arg12[%c0_16, %c256] : memref<2x1024xf32, #tpu.memory_space<vmem>>, vector<1x128xf32>
    tpu.vector_store %arg12[%c0_16, %c256], %23 {strides = array<i32>} : memref<2x1024xf32, #tpu.memory_space<vmem>>, vector<1x128xf32>,
    %c3 = arith.constant 3 : index
    %c0_17 = arith.constant 0 : index
    %25 = vector.load %arg11[%c3, %c0_17] : memref<16x128xf32, #tpu.memory_space<vmem>>, vector<1x128xf32>
    %c0_18 = arith.constant 0 : index
    %c384 = arith.constant 384 : index
    %26 = vector.load %arg12[%c0_18, %c384] : memref<2x1024xf32, #tpu.memory_space<vmem>>, vector<1x128xf32>
    tpu.vector_store %arg12[%c0_18, %c384], %25 {strides = array<i32>} : memref<2x1024xf32, #tpu.memory_space<vmem>>, vector<1x128xf32>,
    %c4 = arith.constant 4 : index
    %c0_19 = arith.constant 0 : index
    %27 = vector.load %arg11[%c4, %c0_19] : memref<16x128xf32, #tpu.memory_space<vmem>>, vector<1x128xf32>
    %c0_20 = arith.constant 0 : index
    %c512 = arith.constant 512 : index
    %28 = vector.load %arg12[%c0_20, %c512] : memref<2x1024xf32, #tpu.memory_space<vmem>>, vector<1x128xf32>
    tpu.vector_store %arg12[%c0_20, %c512], %27 {strides = array<i32>} : memref<2x1024xf32, #tpu.memory_space<vmem>>, vector<1x128xf32>,
    %c5 = arith.constant 5 : index
    %c0_21 = arith.constant 0 : index
    %29 = vector.load %arg11[%c5, %c0_21] : memref<16x128xf32, #tpu.memory_space<vmem>>, vector<1x128xf32>
    %c0_22 = arith.constant 0 : index
    %c640 = arith.constant 640 : index
    %30 = vector.load %arg12[%c0_22, %c640] : memref<2x1024xf32, #tpu.memory_space<vmem>>, vector<1x128xf32>
    tpu.vector_store %arg12[%c0_22, %c640], %29 {strides = array<i32>} : memref<2x1024xf32, #tpu.memory_space<vmem>>, vector<1x128xf32>,
    %c6 = arith.constant 6 : index
    %c0_23 = arith.constant 0 : index
    %31 = vector.load %arg11[%c6, %c0_23] : memref<16x128xf32, #tpu.memory_space<vmem>>, vector<1x128xf32>
    %c0_24 = arith.constant 0 : index
    %c768 = arith.constant 768 : index
    %32 = vector.load %arg12[%c0_24, %c768] : memref<2x1024xf32, #tpu.memory_space<vmem>>, vector<1x128xf32>
    tpu.vector_store %arg12[%c0_24, %c768], %31 {strides = array<i32>} : memref<2x1024xf32, #tpu.memory_space<vmem>>, vector<1x128xf32>,
    %c7 = arith.constant 7 : index
    %c0_25 = arith.constant 0 : index
    %33 = vector.load %arg11[%c7, %c0_25] : memref<16x128xf32, #tpu.memory_space<vmem>>, vector<1x128xf32>
    %c0_26 = arith.constant 0 : index
    %c896 = arith.constant 896 : index
    %34 = vector.load %arg12[%c0_26, %c896] : memref<2x1024xf32, #tpu.memory_space<vmem>>, vector<1x128xf32>
    tpu.vector_store %arg12[%c0_26, %c896], %33 {strides = array<i32>} : memref<2x1024xf32, #tpu.memory_space<vmem>>, vector<1x128xf32>,
    %c8 = arith.constant 8 : index
    %c0_27 = arith.constant 0 : index
    %35 = vector.load %arg11[%c8, %c0_27] : memref<16x128xf32, #tpu.memory_space<vmem>>, vector<1x128xf32>
    %c1_28 = arith.constant 1 : index
    %c0_29 = arith.constant 0 : index
    %36 = vector.load %arg12[%c1_28, %c0_29] : memref<2x1024xf32, #tpu.memory_space<vmem>>, vector<1x128xf32>
    tpu.vector_store %arg12[%c1_28, %c0_29], %35 {strides = array<i32>} : memref<2x1024xf32, #tpu.memory_space<vmem>>, vector<1x128xf32>,
    %c9 = arith.constant 9 : index
    %c0_30 = arith.constant 0 : index
    %37 = vector.load %arg11[%c9, %c0_30] : memref<16x128xf32, #tpu.memory_space<vmem>>, vector<1x128xf32>
    %c1_31 = arith.constant 1 : index
    %c128_32 = arith.constant 128 : index
    %38 = vector.load %arg12[%c1_31, %c128_32] : memref<2x1024xf32, #tpu.memory_space<vmem>>, vector<1x128xf32>
    tpu.vector_store %arg12[%c1_31, %c128_32], %37 {strides = array<i32>} : memref<2x1024xf32, #tpu.memory_space<vmem>>, vector<1x128xf32>,
    %c10 = arith.constant 10 : index
    %c0_33 = arith.constant 0 : index
    %39 = vector.load %arg11[%c10, %c0_33] : memref<16x128xf32, #tpu.memory_space<vmem>>, vector<1x128xf32>
    %c1_34 = arith.constant 1 : index
    %c256_35 = arith.constant 256 : index
    %40 = vector.load %arg12[%c1_34, %c256_35] : memref<2x1024xf32, #tpu.memory_space<vmem>>, vector<1x128xf32>
    tpu.vector_store %arg12[%c1_34, %c256_35], %39 {strides = array<i32>} : memref<2x1024xf32, #tpu.memory_space<vmem>>, vector<1x128xf32>,
    %c11 = arith.constant 11 : index
    %c0_36 = arith.constant 0 : index
    %41 = vector.load %arg11[%c11, %c0_36] : memref<16x128xf32, #tpu.memory_space<vmem>>, vector<1x128xf32>
    %c1_37 = arith.constant 1 : index
    %c384_38 = arith.constant 384 : index
    %42 = vector.load %arg12[%c1_37, %c384_38] : memref<2x1024xf32, #tpu.memory_space<vmem>>, vector<1x128xf32>
    tpu.vector_store %arg12[%c1_37, %c384_38], %41 {strides = array<i32>} : memref<2x1024xf32, #tpu.memory_space<vmem>>, vector<1x128xf32>,
    %c12 = arith.constant 12 : index
    %c0_39 = arith.constant 0 : index
    %43 = vector.load %arg11[%c12, %c0_39] : memref<16x128xf32, #tpu.memory_space<vmem>>, vector<1x128xf32>
    %c1_40 = arith.constant 1 : index
    %c512_41 = arith.constant 512 : index
    %44 = vector.load %arg12[%c1_40, %c512_41] : memref<2x1024xf32, #tpu.memory_space<vmem>>, vector<1x128xf32>
    tpu.vector_store %arg12[%c1_40, %c512_41], %43 {strides = array<i32>} : memref<2x1024xf32, #tpu.memory_space<vmem>>, vector<1x128xf32>,
    %c13 = arith.constant 13 : index
    %c0_42 = arith.constant 0 : index
    %45 = vector.load %arg11[%c13, %c0_42] : memref<16x128xf32, #tpu.memory_space<vmem>>, vector<1x128xf32>
    %c1_43 = arith.constant 1 : index
    %c640_44 = arith.constant 640 : index
    %46 = vector.load %arg12[%c1_43, %c640_44] : memref<2x1024xf32, #tpu.memory_space<vmem>>, vector<1x128xf32>
    tpu.vector_store %arg12[%c1_43, %c640_44], %45 {strides = array<i32>} : memref<2x1024xf32, #tpu.memory_space<vmem>>, vector<1x128xf32>,
    %c14 = arith.constant 14 : index
    %c0_45 = arith.constant 0 : index
    %47 = vector.load %arg11[%c14, %c0_45] : memref<16x128xf32, #tpu.memory_space<vmem>>, vector<1x128xf32>
    %c1_46 = arith.constant 1 : index
    %c768_47 = arith.constant 768 : index
    %48 = vector.load %arg12[%c1_46, %c768_47] : memref<2x1024xf32, #tpu.memory_space<vmem>>, vector<1x128xf32>
    tpu.vector_store %arg12[%c1_46, %c768_47], %47 {strides = array<i32>} : memref<2x1024xf32, #tpu.memory_space<vmem>>, vector<1x128xf32>,
    %c15 = arith.constant 15 : index
    %c0_48 = arith.constant 0 : index
    %49 = vector.load %arg11[%c15, %c0_48] : memref<16x128xf32, #tpu.memory_space<vmem>>, vector<1x128xf32>
    %c1_49 = arith.constant 1 : index
    %c896_50 = arith.constant 896 : index
    %50 = vector.load %arg12[%c1_49, %c896_50] : memref<2x1024xf32, #tpu.memory_space<vmem>>, vector<1x128xf32>
    tpu.vector_store %arg12[%c1_49, %c896_50], %49 {strides = array<i32>} : memref<2x1024xf32, #tpu.memory_space<vmem>>, vector<1x128xf32>,
    %c0_51 = arith.constant 0 : index
    %c0_52 = arith.constant 0 : index
    %51 = vector.load %arg12[%c0_51, %c0_52] : memref<2x1024xf32, #tpu.memory_space<vmem>>, vector<2x1024xf32>
    %52 = arith.truncf %51 : vector<2x1024xf32> to vector<2x1024xbf16>
    %c0_53 = arith.constant 0 : index
    %c0_54 = arith.constant 0 : index
    %53 = vector.load %arg4[%c0_53, %c0_54] : memref<1024x128xbf16, #tpu.memory_space<vmem>>, vector<1024x128xbf16>
    %cst_55 = arith.constant dense<0.000000e+00> : vector<2x128xf32>
    %54 = tpu.matmul %52, %53, %cst_55 {dimension_numbers = #tpu.dot_dimension_numbers<[1], [0], [0], [1], [0, 0, 1, 1], [], []>} : vector<2x1024xbf16>, vector<1024x128xbf16>, vector<2x128xf32> -> vector<2x128xf32>
    %c0_56 = arith.constant 0 : index
    %c0_57 = arith.constant 0 : index
    %55 = vector.load %arg5[%c0_56, %c0_57] : memref<1x128xf32, #tpu.memory_space<vmem>>, vector<1x128xf32>
    %56 = vector.broadcast %55 : vector<1x128xf32> to vector<2x128xf32>
    %57 = arith.addf %54, %56 : vector<2x128xf32>
    %cst_58 = arith.constant 0.000000e+00 : f32
    %58 = vector.broadcast %cst_58 : f32 to vector<2x128xf32>
    %59 = arith.maximumf %57, %58 : vector<2x128xf32>
    %60 = arith.truncf %59 : vector<2x128xf32> to vector<2x128xbf16>
    %c0_59 = arith.constant 0 : index
    %c0_60 = arith.constant 0 : index
    %61 = vector.load %arg6[%c0_59, %c0_60] : memref<128x64xbf16, #tpu.memory_space<vmem>>, vector<128x64xbf16>
    %cst_61 = arith.constant dense<0.000000e+00> : vector<2x64xf32>
    %62 = tpu.matmul %60, %61, %cst_61 {dimension_numbers = #tpu.dot_dimension_numbers<[1], [0], [0], [1], [0, 0, 1, 1], [], []>} : vector<2x128xbf16>, vector<128x64xbf16>, vector<2x64xf32> -> vector<2x64xf32>
    %c0_62 = arith.constant 0 : index
    %c0_63 = arith.constant 0 : index
    %63 = vector.load %arg7[%c0_62, %c0_63] : memref<1x64xf32, #tpu.memory_space<vmem>>, vector<1x64xf32>
    %64 = vector.broadcast %63 : vector<1x64xf32> to vector<2x64xf32>
    %65 = arith.addf %62, %64 : vector<2x64xf32>
    %cst_64 = arith.constant 0.000000e+00 : f32
    %66 = vector.broadcast %cst_64 : f32 to vector<2x64xf32>
    %67 = arith.maximumf %65, %66 : vector<2x64xf32>
    %68 = arith.truncf %67 : vector<2x64xf32> to vector<2x64xbf16>
    %c0_65 = arith.constant 0 : index
    %c0_66 = arith.constant 0 : index
    %69 = vector.load %arg8[%c0_65, %c0_66] : memref<64x4xbf16, #tpu.memory_space<vmem>>, vector<64x4xbf16>
    %cst_67 = arith.constant dense<0.000000e+00> : vector<2x4xf32>
    %70 = tpu.matmul %68, %69, %cst_67 {dimension_numbers = #tpu.dot_dimension_numbers<[1], [0], [0], [1], [0, 0, 1, 1], [], []>} : vector<2x64xbf16>, vector<64x4xbf16>, vector<2x4xf32> -> vector<2x4xf32>
    %c0_68 = arith.constant 0 : index
    %c0_69 = arith.constant 0 : index
    %71 = vector.load %arg9[%c0_68, %c0_69] : memref<1x4xf32, #tpu.memory_space<vmem>>, vector<1x4xf32>
    %72 = vector.broadcast %71 : vector<1x4xf32> to vector<2x4xf32>
    %73 = arith.addf %70, %72 : vector<2x4xf32>
    %c0_70 = arith.constant 0 : index
    %c0_71 = arith.constant 0 : index
    %74 = vector.load %arg10[%c0_70, %c0_71] : memref<2x4xf32, #tpu.memory_space<vmem>>, vector<2x4xf32>
    tpu.vector_store %arg10[%c0_70, %c0_71], %73 {strides = array<i32>} : memref<2x4xf32, #tpu.memory_space<vmem>>, vector<2x4xf32>,
    return
  }
  func.func @transform_0(%arg0: i32) -> (i32, i32) {
    %c0_i32 = arith.constant 0 : i32
    %c0_i32_0 = arith.constant 0 : i32
    %c0_i32_1 = arith.constant 0 : i32
    return %c0_i32, %c0_i32_0 : i32, i32
  }
  func.func @transform_1(%arg0: i32) -> (i32, i32) {
    %c0_i32 = arith.constant 0 : i32
    %c0_i32_0 = arith.constant 0 : i32
    %c0_i32_1 = arith.constant 0 : i32
    return %c0_i32, %c0_i32_0 : i32, i32
  }
  func.func @transform_2(%arg0: i32) -> (i32, i32) {
    %c0_i32 = arith.constant 0 : i32
    %c0_i32_0 = arith.constant 0 : i32
    %c0_i32_1 = arith.constant 0 : i32
    return %c0_i32, %c0_i32_0 : i32, i32
  }
  func.func @transform_3(%arg0: i32) -> (i32, i32) {
    %c0_i32 = arith.constant 0 : i32
    %c0_i32_0 = arith.constant 0 : i32
    %c0_i32_1 = arith.constant 0 : i32
    return %c0_i32, %c0_i32_0 : i32, i32
  }
  func.func @transform_4(%arg0: i32) -> (i32, i32) {
    %c0_i32 = arith.constant 0 : i32
    %c0_i32_0 = arith.constant 0 : i32
    %c0_i32_1 = arith.constant 0 : i32
    return %c0_i32, %c0_i32_0 : i32, i32
  }
  func.func @transform_5(%arg0: i32) -> (i32, i32) {
    %c0_i32 = arith.constant 0 : i32
    %c0_i32_0 = arith.constant 0 : i32
    %c0_i32_1 = arith.constant 0 : i32
    return %c0_i32, %c0_i32_0 : i32, i32
  }
  func.func @transform_6(%arg0: i32) -> (i32, i32) {
    %c0_i32 = arith.constant 0 : i32
    %c0_i32_0 = arith.constant 0 : i32
    %c0_i32_1 = arith.constant 0 : i32
    return %c0_i32, %c0_i32_0 : i32, i32
  }
  func.func @transform_7(%arg0: i32) -> (i32, i32) {
    %c0_i32 = arith.constant 0 : i32
    %c0_i32_0 = arith.constant 0 : i32
    %c0_i32_1 = arith.constant 0 : i32
    return %c0_i32, %c0_i32_0 : i32, i32
  }
  func.func @transform_8(%arg0: i32) -> (i32, i32) {
    %c0_i32 = arith.constant 0 : i32
    %c0_i32_0 = arith.constant 0 : i32
    %c0_i32_1 = arith.constant 0 : i32
    return %c0_i32, %c0_i32_0 : i32, i32
  }
  func.func @transform_9(%arg0: i32) -> (i32, i32) {
    %c0_i32 = arith.constant 0 : i32
    %c0_i32_0 = arith.constant 0 : i32
    %c0_i32_1 = arith.constant 0 : i32
    return %c0_i32, %c0_i32_0 : i32, i32
  }
}

</mosaic_0001>

<llo_original>
// kernel: distill_cnn_forward.5
$region0: #{distill_cnn_forward.5}
  #allocation0 [shape = 'u32[]', space=smem, size = 0x4, offset = 0x4, fixed_abs, tag = 'smem constant byte address 0x4 - core index']
  #allocation1 [shape = 'u32[72,128]{1,0:T(1,128)}', space=vmem, size = 0x9000, scoped, tag = 'internal scratch']
  %s0 = inlined_call_operand.vmem [shape: bf16[1152,128], index: 0, kind: input, shape index: {}]
  %s1 = inlined_call_operand.vmem [shape: bf16[128,64], index: 1, kind: input, shape index: {}]
  %s2 = inlined_call_operand.vmem [shape: f32[1,64], index: 2, kind: input, shape index: {}]
  %s3 = inlined_call_operand.vmem [shape: f32[1152,64], index: 3, kind: output, shape index: {}]
  %s4 = sld [smem:[#allocation0]]
  $region45: #{distill_cnn_forward.5} parent=0
    _
  %s6 = ssub.s32 1, %s4
  %s7 = scalar_select 0, %s6, %s4
  loop: start=0, step=1, limit=5
  $region2: #{distill_cnn_forward.5} parent=0 // loop_pre_header
    _
  $region3: #{distill_cnn_forward.5} parent=0 // loop_header
    %s9 = sphi 0, %s13
    %p10 = scmp.ge.s32.totalorder %s9, 5
    %s19 = sphi 0, %s21
    %s22 = sphi 0, %s19
    %s23 = sphi 0, %s22
    %s39 = sphi 0, %s23
    %s43 = sphi 0, %s43
    %s45 = sphi 0, %s43
    %s46 = sphi 0, %s45
    %s60 = sphi 0, %s46
    %s64 = sphi 0, %s64
    %s66 = sphi 0, %s64
    %s67 = sphi 0, %s66
    %s81 = sphi 0, %s67
    %s87 = sphi 0, %s89
    %s90 = sphi 0, %s87
    %s91 = sphi 0, %s90
    %s107 = sphi 0, %s91
  $region4: #{distill_cnn_forward.5} parent=0 // loop_header_branch
    %12 = sbr.rel (%p10) target = $region8
  $region5: #{distill_cnn_forward.5} parent=0 // loop_body
    %s14 = ssub.s32 %s9, 1
    %s15 = ssub.s32 %s9, 2
    %s16 = sadd.s32 %s9, 1
    %s17 = ssub.s32 %s9, %s16
    %p18 = scmp.eq.s32.totalorder %s17, 0
    %s20 = sadd.s32 %s19, 1
    %s21 = scalar_select %p18, %s19, %s20
    %p24 = pneg %p18
    %p25 = scmp.eq.s32.totalorder %s9, 2
    %p26 = por %p24, %p25
    %p27 = scmp.ne.s32.totalorder %s19, %s22
    %p28 = scmp.eq.s32.totalorder %s9, 0
    %p29 = por %p27, %p28
    %p30 = scmp.ne.s32.totalorder %s19, %s22
    %p31 = scmp.eq.s32.totalorder %s14, 2
    %p32 = por %p30, %p31
    %p33 = scmp.ne.s32.totalorder %s22, %s23
    %p34 = scmp.eq.s32.totalorder %s14, 0
    %p35 = por %p33, %p34
    %p36 = scmp.ne.s32.totalorder %s22, %s23
    %p37 = scmp.eq.s32.totalorder %s15, 2
    %p38 = por %p36, %p37
    %p40 = scmp.ne.s32.totalorder %s23, %s39
    %p41 = scmp.eq.s32.totalorder %s15, 0
    %p42 = por %p40, %p41
    %s44 = sadd.s32 %s43, 1
    %p47 = scmp.eq.s32.totalorder %s9, 2
    %p48 = scmp.ne.s32.totalorder %s43, %s45
    %p49 = scmp.eq.s32.totalorder %s9, 0
    %p50 = por %p48, %p49
    %p51 = scmp.ne.s32.totalorder %s43, %s45
    %p52 = scmp.eq.s32.totalorder %s14, 2
    %p53 = por %p51, %p52
    %p54 = scmp.ne.s32.totalorder %s45, %s46
    %p55 = scmp.eq.s32.totalorder %s14, 0
    %p56 = por %p54, %p55
    %p57 = scmp.ne.s32.totalorder %s45, %s46
    %p58 = scmp.eq.s32.totalorder %s15, 2
    %p59 = por %p57, %p58
    %p61 = scmp.ne.s32.totalorder %s46, %s60
    %p62 = scmp.eq.s32.totalorder %s15, 0
    %p63 = por %p61, %p62
    %s65 = sadd.s32 %s64, 1
    %p68 = scmp.eq.s32.totalorder %s9, 2
    %p69 = scmp.ne.s32.totalorder %s64, %s66
    %p70 = scmp.eq.s32.totalorder %s9, 0
    %p71 = por %p69, %p70
    %p72 = scmp.ne.s32.totalorder %s64, %s66
    %p73 = scmp.eq.s32.totalorder %s14, 2
    %p74 = por %p72, %p73
    %p75 = scmp.ne.s32.totalorder %s66, %s67
    %p76 = scmp.eq.s32.totalorder %s14, 0
    %p77 = por %p75, %p76
    %p78 = scmp.ne.s32.totalorder %s66, %s67
    %p79 = scmp.eq.s32.totalorder %s15, 2
    %p80 = por %p78, %p79
    %p82 = scmp.ne.s32.totalorder %s67, %s81
    %p83 = scmp.eq.s32.totalorder %s15, 0
    %p84 = por %p82, %p83
    %s85 = ssub.s32 %s9, %s16
    %p86 = scmp.eq.s32.totalorder %s85, 0
    %s88 = sadd.s32 %s87, 1
    %s89 = scalar_select %p86, %s87, %s88
    %p92 = pneg %p86
    %p93 = scmp.eq.s32.totalorder %s9, 2
    %p94 = por %p92, %p93
    %p95 = scmp.ne.s32.totalorder %s87, %s90
    %p96 = scmp.eq.s32.totalorder %s9, 0
    %p97 = por %p95, %p96
    %p98 = scmp.ne.s32.totalorder %s87, %s90
    %p99 = scmp.eq.s32.totalorder %s14, 2
    %p100 = por %p98, %p99
    %p101 = scmp.ne.s32.totalorder %s90, %s91
    %p102 = scmp.eq.s32.totalorder %s14, 0
    %p103 = por %p101, %p102
    %p104 = scmp.ne.s32.totalorder %s90, %s91
    %p105 = scmp.eq.s32.totalorder %s15, 2
    %p106 = por %p104, %p105
    %p108 = scmp.ne.s32.totalorder %s91, %s107
    %p109 = scmp.eq.s32.totalorder %s15, 0
    %p110 = por %p108, %p109
    %p111 = scmp.le.s32.totalorder 1, %s9
    %p112 = scmp.lt.s32.totalorder %s9, 4
    %p113 = pnand %p111, %p112
    %p114 = pneg %p113
    // Predicated region
    $region9: #{distill_cnn_forward.5} parent=5 // pred_check
      _
    $region10: #{distill_cnn_forward.5} parent=5 // pred_check_branch
      %116 = sbr.rel (%p113) target = $region12
    $region11: #{distill_cnn_forward.5} parent=5 // pred_region
      %s117 = ssub.s32 %s9, 1
      // Predicated region
      $region13: #{distill_cnn_forward.5} parent=11 // pred_check
        %p118 = pneg %p56
      $region14: #{distill_cnn_forward.5} parent=11 // pred_check_branch
        %120 = sbr.rel (%p118) target = $region16
      $region15: #{distill_cnn_forward.5} parent=11 // pred_region
        _
      $region16: #{distill_cnn_forward.5} parent=11 // pred_fallthru
        _
      // Predicated region
      $region17: #{distill_cnn_forward.5} parent=11 // pred_check
        %p121 = pneg %p77
      $region18: #{distill_cnn_forward.5} parent=11 // pred_check_branch
        %123 = sbr.rel (%p121) target = $region20
      $region19: #{distill_cnn_forward.5} parent=11 // pred_region
        _
      $region20: #{distill_cnn_forward.5} parent=11 // pred_fallthru
        _
    $region12: #{distill_cnn_forward.5} parent=5 // pred_fallthru
      _
    %p124 = scmp.lt.s32.totalorder %s9, 3
    // Predicated region
    $region21: #{distill_cnn_forward.5} parent=5 // pred_check
      %p125 = pneg %p124
    $region22: #{distill_cnn_forward.5} parent=5 // pred_check_branch
      %127 = sbr.rel (%p125) target = $region24
    $region23: #{distill_cnn_forward.5} parent=5 // pred_region
      // Predicated region
      $region25: #{distill_cnn_forward.5} parent=23 // pred_check
        %p128 = pneg %p29
      $region26: #{distill_cnn_forward.5} parent=23 // pred_check_branch
        %130 = sbr.rel (%p128) target = $region28
      $region27: #{distill_cnn_forward.5} parent=23 // pred_region
        %s131 = smul.u32 48, %s9
        %p132 = scmp.lt.s32.totalorder %s131, 143
        %s133 = scalar_select %p132, %s131, 143
        %s134 = smul.addr %s133, 4
        %s135 = scalar_lea.vmem %s0, %s134
        %s136 = smul.u32 48, %s9
      $region28: #{distill_cnn_forward.5} parent=23 // pred_fallthru
        _
    $region24: #{distill_cnn_forward.5} parent=5 // pred_fallthru
      _
    %p137 = scmp.le.s32.totalorder 1, %s9
    %p138 = scmp.lt.s32.totalorder %s9, 4
    %p139 = pnand %p137, %p138
    %p140 = pneg %p139
    // Predicated region
    $region29: #{distill_cnn_forward.5} parent=5 // pred_check
      _
    $region30: #{distill_cnn_forward.5} parent=5 // pred_check_branch
      %142 = sbr.rel (%p139) target = $region32
    $region31: #{distill_cnn_forward.5} parent=5 // pred_region
      %s143 = ssub.s32 %s9, 1
      %s144 = smul.u32 48, %s14
      %p145 = scmp.lt.s32.totalorder %s144, 143
      %s146 = scalar_select %p145, %s144, 143
      %s147 = smul.addr %s146, 4
      %s148 = scalar_lea.vmem %s0, %s147
      %p149 = pneg %p35
      %p150 = pneg %p32
      %p151 = pneg %p56
      %p152 = pneg %p53
      %p153 = pneg %p77
      %p154 = pneg %p74
      %p155 = pneg %p103
      %p156 = pneg %p100
      %s157 = smul.u32 48, %s14
      %p158 = scmp.lt.s32.totalorder %s157, 143
      %s159 = scalar_select %p158, %s157, 143
      %s160 = smul.addr %s159, 8
      %s161 = scalar_lea.vmem %s3, %s160
      %s162 = smul.u32 48, %s14
      %p163 = scmp.lt.s32.totalorder %s162, 143
      %s164 = scalar_select %p163, %s162, 143
      %s165 = smul.addr %s164, 4
      %s166 = scalar_lea.vmem %s0, %s165
      %s167 = smul.u32 48, %s14
      %s168 = smul.u32 48, %s14
      %p169 = scmp.lt.s32.totalorder %s168, 143
      %s170 = scalar_select %p169, %s168, 143
      %s171 = smul.addr %s170, 8
      %s172 = scalar_lea.vmem %s3, %s171
      %s173 = smul.u32 48, %s14
      %v174 = vld [vmem:[%s166] sm:$0xf]
      %v175 = vld [vmem:[%s166 + $0x4] sm:$0xf]
      %v176 = vld [vmem:[%s166 + $0x8] sm:$0xf]
      %v177 = vld [vmem:[%s166 + $0xc] sm:$0xf]
      %v178 = vld [vmem:[%s166 + $0x10] sm:$0xf]
      %v179 = vld [vmem:[%s166 + $0x14] sm:$0xf]
      %v180 = vld [vmem:[%s166 + $0x18] sm:$0xf]
      %v181 = vld [vmem:[%s166 + $0x1c] sm:$0xf]
      %v182 = vld [vmem:[%s166 + $0x20] sm:$0xf]
      %v183 = vld [vmem:[%s166 + $0x24] sm:$0xf]
      %v184 = vld [vmem:[%s166 + $0x28] sm:$0xf]
      %v185 = vld [vmem:[%s166 + $0x2c] sm:$0xf]
      %v186 = vld [vmem:[%s166 + $0x30] sm:$0xf]
      %v187 = vld [vmem:[%s166 + $0x34] sm:$0xf]
      %v188 = vld [vmem:[%s166 + $0x38] sm:$0xf]
      %v189 = vld [vmem:[%s166 + $0x3c] sm:$0xf]
      %v190 = vld [vmem:[%s166 + $0x40] sm:$0xf]
      %v191 = vld [vmem:[%s166 + $0x44] sm:$0xf]
      %v192 = vld [vmem:[%s166 + $0x48] sm:$0xf]
      %v193 = vld [vmem:[%s166 + $0x4c] sm:$0xf]
      %v194 = vld [vmem:[%s166 + $0x50] sm:$0xf]
      %v195 = vld [vmem:[%s166 + $0x54] sm:$0xf]
      %v196 = vld [vmem:[%s166 + $0x58] sm:$0xf]
      %v197 = vld [vmem:[%s166 + $0x5c] sm:$0xf]
      %v198 = vld [vmem:[%s166 + $0x60] sm:$0xf]
      %v199 = vld [vmem:[%s166 + $0x64] sm:$0xf]
      %v200 = vld [vmem:[%s166 + $0x68] sm:$0xf]
      %v201 = vld [vmem:[%s166 + $0x6c] sm:$0xf]
      %v202 = vld [vmem:[%s166 + $0x70] sm:$0xf]
      %v203 = vld [vmem:[%s166 + $0x74] sm:$0xf]
      %v204 = vld [vmem:[%s166 + $0x78] sm:$0xf]
      %v205 = vld [vmem:[%s166 + $0x7c] sm:$0xf]
      %v206 = vld [vmem:[%s166 + $0x80] sm:$0xf]
      %v207 = vld [vmem:[%s166 + $0x84] sm:$0xf]
      %v208 = vld [vmem:[%s166 + $0x88] sm:$0xf]
      %v209 = vld [vmem:[%s166 + $0x8c] sm:$0xf]
      %v210 = vld [vmem:[%s166 + $0x90] sm:$0xf]
      %v211 = vld [vmem:[%s166 + $0x94] sm:$0xf]
      %v212 = vld [vmem:[%s166 + $0x98] sm:$0xf]
      %v213 = vld [vmem:[%s166 + $0x9c] sm:$0xf]
      %v214 = vld [vmem:[%s166 + $0xa0] sm:$0xf]
      %v215 = vld [vmem:[%s166 + $0xa4] sm:$0xf]
      %v216 = vld [vmem:[%s166 + $0xa8] sm:$0xf]
      %v217 = vld [vmem:[%s166 + $0xac] sm:$0xf]
      %v218 = vld [vmem:[%s166 + $0xb0] sm:$0xf]
      %v219 = vld [vmem:[%s166 + $0xb4] sm:$0xf]
      %v220 = vld [vmem:[%s166 + $0xb8] sm:$0xf]
      %v221 = vld [vmem:[%s166 + $0xbc] sm:$0xf]
      %v222 = vld [vmem:[%s1] sm:$0xf]
      %v223 = vld [vmem:[%s1 + $0x4] sm:$0xf]
      %v224 = vld [vmem:[%s1 + $0x8] sm:$0xf]
      %v225 = vld [vmem:[%s1 + $0xc] sm:$0xf]
      %v226 = vld [vmem:[%s1 + $0x10] sm:$0xf]
      %v227 = vld [vmem:[%s1 + $0x14] sm:$0xf]
      %v228 = vld [vmem:[%s1 + $0x18] sm:$0xf]
      %v229 = vld [vmem:[%s1 + $0x1c] sm:$0xf]
      %v230 = vld [vmem:[%s1 + $0x20] sm:$0xf]
      %v231 = vld [vmem:[%s1 + $0x24] sm:$0xf]
      %v232 = vld [vmem:[%s1 + $0x28] sm:$0xf]
      %v233 = vld [vmem:[%s1 + $0x2c] sm:$0xf]
      %v234 = vld [vmem:[%s1 + $0x30] sm:$0xf]
      %v235 = vld [vmem:[%s1 + $0x34] sm:$0xf]
      %v236 = vld [vmem:[%s1 + $0x38] sm:$0xf]
      %v237 = vld [vmem:[%s1 + $0x3c] sm:$0xf]
      %v238 = vld [vmem:[%s2] sm:$0x1]
      %v240 = vperm.slane %v238, 0
      %v290 = vunpack.c.l.b16 %v174
      %v291 = vunpack.c.l.b16 %v175
      %v292 = vunpack.c.l.b16 %v176
      %v293 = vunpack.c.l.b16 %v177
      %v294 = vunpack.c.l.b16 %v178
      %v295 = vunpack.c.l.b16 %v179
      %v296 = vunpack.c.l.b16 %v180
      %v297 = vunpack.c.l.b16 %v181
      %v298 = vunpack.c.l.b16 %v182
      %v299 = vunpack.c.l.b16 %v183
      %v300 = vunpack.c.l.b16 %v184
      %v301 = vunpack.c.l.b16 %v185
      %v302 = vunpack.c.l.b16 %v186
      %v303 = vunpack.c.l.b16 %v187
      %v304 = vunpack.c.l.b16 %v188
      %v305 = vunpack.c.l.b16 %v189
      %v306 = vunpack.c.l.b16 %v190
      %v307 = vunpack.c.l.b16 %v191
      %v308 = vunpack.c.l.b16 %v192
      %v309 = vunpack.c.l.b16 %v193
      %v310 = vunpack.c.l.b16 %v194
      %v311 = vunpack.c.l.b16 %v195
      %v312 = vunpack.c.l.b16 %v196
      %v313 = vunpack.c.l.b16 %v197
      %v314 = vunpack.c.l.b16 %v198
      %v315 = vunpack.c.l.b16 %v199
      %v316 = vunpack.c.l.b16 %v200
      %v317 = vunpack.c.l.b16 %v201
      %v318 = vunpack.c.l.b16 %v202
      %v319 = vunpack.c.l.b16 %v203
      %v320 = vunpack.c.l.b16 %v204
      %v321 = vunpack.c.l.b16 %v205
      %v322 = vunpack.c.l.b16 %v206
      %v323 = vunpack.c.l.b16 %v207
      %v324 = vunpack.c.l.b16 %v208
      %v325 = vunpack.c.l.b16 %v209
      %v326 = vunpack.c.l.b16 %v210
      %v327 = vunpack.c.l.b16 %v211
      %v328 = vunpack.c.l.b16 %v212
      %v329 = vunpack.c.l.b16 %v213
      %v330 = vunpack.c.l.b16 %v214
      %v331 = vunpack.c.l.b16 %v215
      %v332 = vunpack.c.l.b16 %v216
      %v333 = vunpack.c.l.b16 %v217
      %v334 = vunpack.c.l.b16 %v218
      %v335 = vunpack.c.l.b16 %v219
      %v336 = vunpack.c.l.b16 %v220
      %v337 = vunpack.c.l.b16 %v221
      %v338 = vpack.c.b16 %v291, %v290
      %v339 = vpack.c.b16 %v293, %v292
      %v340 = vpack.c.b16 %v295, %v294
      %v341 = vpack.c.b16 %v297, %v296
      %v342 = vpack.c.b16 %v299, %v298
      %v343 = vpack.c.b16 %v301, %v300
      %v344 = vpack.c.b16 %v303, %v302
      %v345 = vpack.c.b16 %v305, %v304
      %v346 = vpack.c.b16 %v307, %v306
      %v347 = vpack.c.b16 %v309, %v308
      %v348 = vpack.c.b16 %v311, %v310
      %v349 = vpack.c.b16 %v313, %v312
      %v350 = vpack.c.b16 %v315, %v314
      %v351 = vpack.c.b16 %v317, %v316
      %v352 = vpack.c.b16 %v319, %v318
      %v353 = vpack.c.b16 %v321, %v320
      %v354 = vpack.c.b16 %v323, %v322
      %v355 = vpack.c.b16 %v325, %v324
      %v356 = vpack.c.b16 %v327, %v326
      %v357 = vpack.c.b16 %v329, %v328
      %v358 = vpack.c.b16 %v331, %v330
      %v359 = vpack.c.b16 %v333, %v332
      %v360 = vpack.c.b16 %v335, %v334
      %v361 = vpack.c.b16 %v337, %v336
      %v402 = vunpack.c.l.b16 %v222
      %v403 = vunpack.c.l.b16 %v223
      %v404 = vunpack.c.l.b16 %v224
      %v405 = vunpack.c.l.b16 %v225
      %v406 = vunpack.c.l.b16 %v226
      %v407 = vunpack.c.l.b16 %v227
      %v408 = vunpack.c.l.b16 %v228
      %v409 = vunpack.c.l.b16 %v229
      %v410 = vunpack.c.l.b16 %v230
      %v411 = vunpack.c.l.b16 %v231
      %v412 = vunpack.c.l.b16 %v232
      %v413 = vunpack.c.l.b16 %v233
      %v414 = vunpack.c.l.b16 %v234
      %v415 = vunpack.c.l.b16 %v235
      %v416 = vunpack.c.l.b16 %v236
      %v417 = vunpack.c.l.b16 %v237
      %v418 = vpack.c.b16 %v403, %v402
      %v419 = vpack.c.b16 %v405, %v404
      %v420 = vpack.c.b16 %v407, %v406
      %v421 = vpack.c.b16 %v409, %v408
      %v422 = vpack.c.b16 %v411, %v410
      %v423 = vpack.c.b16 %v413, %v412
      %v424 = vpack.c.b16 %v415, %v414
      %v425 = vpack.c.b16 %v417, %v416
      %434 = vmatpush.bf16.msra.mxu0 %v425
      %435 = vmatpush.bf16.msra.mxu0 %v424
      %436 = vmatpush.bf16.msra.mxu0 %v423
      %437 = vmatpush.bf16.msra.mxu0 %v422
      %438 = vmatpush.bf16.msra.mxu0 %v421
      %439 = vmatpush.bf16.msra.mxu0 %v420
      %440 = vmatpush.bf16.msra.mxu0 %v419
      %441 = vmatpush.bf16.msra.mxu0 %v418
      %442 = vmatmul.bf16.gmra.mxu0 %v338
      %v443 = vpop.f32.mrf.mxu0
      %v444 = vadd.f32 %v240, %v443
      %v445 = vpop.f32.mrf.mxu0
      %v446 = vadd.f32 %v240, %v445
      %447 = vmatmul.bf16.gmra.mxu0 %v339
      %v448 = vpop.f32.mrf.mxu0
      %v449 = vadd.f32 %v240, %v448
      %v450 = vpop.f32.mrf.mxu0
      %v451 = vadd.f32 %v240, %v450
      %452 = vmatmul.bf16.gmra.mxu0 %v340
      %v453 = vpop.f32.mrf.mxu0
      %v454 = vadd.f32 %v240, %v453
      %v455 = vpop.f32.mrf.mxu0
      %v456 = vadd.f32 %v240, %v455
      %457 = vmatmul.bf16.gmra.mxu0 %v341
      %v458 = vpop.f32.mrf.mxu0
      %v459 = vadd.f32 %v240, %v458
      %v460 = vpop.f32.mrf.mxu0
      %v461 = vadd.f32 %v240, %v460
      %462 = vmatmul.bf16.gmra.mxu0 %v342
      %v463 = vpop.f32.mrf.mxu0
      %v464 = vadd.f32 %v240, %v463
      %v465 = vpop.f32.mrf.mxu0
      %v466 = vadd.f32 %v240, %v465
      %467 = vmatmul.bf16.gmra.mxu0 %v343
      %v468 = vpop.f32.mrf.mxu0
      %v469 = vadd.f32 %v240, %v468
      %v470 = vpop.f32.mrf.mxu0
      %v471 = vadd.f32 %v240, %v470
      %472 = vmatmul.bf16.gmra.mxu0 %v344
      %v473 = vpop.f32.mrf.mxu0
      %v474 = vadd.f32 %v240, %v473
      %v475 = vpop.f32.mrf.mxu0
      %v476 = vadd.f32 %v240, %v475
      %477 = vmatmul.bf16.gmra.mxu0 %v345
      %v478 = vpop.f32.mrf.mxu0
      %v479 = vadd.f32 %v240, %v478
      %v480 = vpop.f32.mrf.mxu0
      %v481 = vadd.f32 %v240, %v480
      %482 = vmatmul.bf16.gmra.mxu0 %v346
      %v483 = vpop.f32.mrf.mxu0
      %v484 = vadd.f32 %v240, %v483
      %v485 = vpop.f32.mrf.mxu0
      %v486 = vadd.f32 %v240, %v485
      %487 = vmatmul.bf16.gmra.mxu0 %v347
      %v488 = vpop.f32.mrf.mxu0
      %v489 = vadd.f32 %v240, %v488
      %v490 = vpop.f32.mrf.mxu0
      %v491 = vadd.f32 %v240, %v490
      %492 = vmatmul.bf16.gmra.mxu0 %v348
      %v493 = vpop.f32.mrf.mxu0
      %v494 = vadd.f32 %v240, %v493
      %v495 = vpop.f32.mrf.mxu0
      %v496 = vadd.f32 %v240, %v495
      %497 = vmatmul.bf16.gmra.mxu0 %v349
      %v498 = vpop.f32.mrf.mxu0
      %v499 = vadd.f32 %v240, %v498
      %v500 = vpop.f32.mrf.mxu0
      %v501 = vadd.f32 %v240, %v500
      %502 = vmatmul.bf16.gmra.mxu0 %v350
      %v503 = vpop.f32.mrf.mxu0
      %v504 = vadd.f32 %v240, %v503
      %v505 = vpop.f32.mrf.mxu0
      %v506 = vadd.f32 %v240, %v505
      %507 = vmatmul.bf16.gmra.mxu0 %v351
      %v508 = vpop.f32.mrf.mxu0
      %v509 = vadd.f32 %v240, %v508
      %v510 = vpop.f32.mrf.mxu0
      %v511 = vadd.f32 %v240, %v510
      %512 = vmatmul.bf16.gmra.mxu0 %v352
      %v513 = vpop.f32.mrf.mxu0
      %v514 = vadd.f32 %v240, %v513
      %v515 = vpop.f32.mrf.mxu0
      %v516 = vadd.f32 %v240, %v515
      %517 = vmatmul.bf16.gmra.mxu0 %v353
      %v518 = vpop.f32.mrf.mxu0
      %v519 = vadd.f32 %v240, %v518
      %v520 = vpop.f32.mrf.mxu0
      %v521 = vadd.f32 %v240, %v520
      %522 = vmatmul.bf16.gmra.mxu0 %v354
      %v523 = vpop.f32.mrf.mxu0
      %v524 = vadd.f32 %v240, %v523
      %v525 = vpop.f32.mrf.mxu0
      %v526 = vadd.f32 %v240, %v525
      %527 = vmatmul.bf16.gmra.mxu0 %v355
      %v528 = vpop.f32.mrf.mxu0
      %v529 = vadd.f32 %v240, %v528
      %v530 = vpop.f32.mrf.mxu0
      %v531 = vadd.f32 %v240, %v530
      %532 = vmatmul.bf16.gmra.mxu0 %v356
      %v533 = vpop.f32.mrf.mxu0
      %v534 = vadd.f32 %v240, %v533
      %v535 = vpop.f32.mrf.mxu0
      %v536 = vadd.f32 %v240, %v535
      %537 = vmatmul.bf16.gmra.mxu0 %v357
      %v538 = vpop.f32.mrf.mxu0
      %v539 = vadd.f32 %v240, %v538
      %v540 = vpop.f32.mrf.mxu0
      %v541 = vadd.f32 %v240, %v540
      %542 = vmatmul.bf16.gmra.mxu0 %v358
      %v543 = vpop.f32.mrf.mxu0
      %v544 = vadd.f32 %v240, %v543
      %v545 = vpop.f32.mrf.mxu0
      %v546 = vadd.f32 %v240, %v545
      %547 = vmatmul.bf16.gmra.mxu0 %v359
      %v548 = vpop.f32.mrf.mxu0
      %v549 = vadd.f32 %v240, %v548
      %v550 = vpop.f32.mrf.mxu0
      %v551 = vadd.f32 %v240, %v550
      %552 = vmatmul.bf16.gmra.mxu0 %v360
      %v553 = vpop.f32.mrf.mxu0
      %v554 = vadd.f32 %v240, %v553
      %v555 = vpop.f32.mrf.mxu0
      %v556 = vadd.f32 %v240, %v555
      %557 = vmatmul.bf16.gmra.mxu0 %v361
      %v558 = vpop.f32.mrf.mxu0
      %v559 = vadd.f32 %v240, %v558
      %v560 = vpop.f32.mrf.mxu0
      %v561 = vadd.f32 %v240, %v560
      %562 = vdwg.mxu0
      %vm563 = vcmp.gt.f32.partialorder %v444, 0.0
      %vm564 = vcmp.gt.f32.partialorder %v446, 0.0
      %vm565 = vcmp.gt.f32.partialorder %v449, 0.0
      %vm566 = vcmp.gt.f32.partialorder %v451, 0.0
      %vm567 = vcmp.gt.f32.partialorder %v454, 0.0
      %vm568 = vcmp.gt.f32.partialorder %v456, 0.0
      %vm569 = vcmp.gt.f32.partialorder %v459, 0.0
      %vm570 = vcmp.gt.f32.partialorder %v461, 0.0
      %vm571 = vcmp.gt.f32.partialorder %v464, 0.0
      %vm572 = vcmp.gt.f32.partialorder %v466, 0.0
      %vm573 = vcmp.gt.f32.partialorder %v469, 0.0
      %vm574 = vcmp.gt.f32.partialorder %v471, 0.0
      %vm575 = vcmp.gt.f32.partialorder %v474, 0.0
      %vm576 = vcmp.gt.f32.partialorder %v476, 0.0
      %vm577 = vcmp.gt.f32.partialorder %v479, 0.0
      %vm578 = vcmp.gt.f32.partialorder %v481, 0.0
      %vm579 = vcmp.gt.f32.partialorder %v484, 0.0
      %vm580 = vcmp.gt.f32.partialorder %v486, 0.0
      %vm581 = vcmp.gt.f32.partialorder %v489, 0.0
      %vm582 = vcmp.gt.f32.partialorder %v491, 0.0
      %vm583 = vcmp.gt.f32.partialorder %v494, 0.0
      %vm584 = vcmp.gt.f32.partialorder %v496, 0.0
      %vm585 = vcmp.gt.f32.partialorder %v499, 0.0
      %vm586 = vcmp.gt.f32.partialorder %v501, 0.0
      %vm587 = vcmp.gt.f32.partialorder %v504, 0.0
      %vm588 = vcmp.gt.f32.partialorder %v506, 0.0
      %vm589 = vcmp.gt.f32.partialorder %v509, 0.0
      %vm590 = vcmp.gt.f32.partialorder %v511, 0.0
      %vm591 = vcmp.gt.f32.partialorder %v514, 0.0
      %vm592 = vcmp.gt.f32.partialorder %v516, 0.0
      %vm593 = vcmp.gt.f32.partialorder %v519, 0.0
      %vm594 = vcmp.gt.f32.partialorder %v521, 0.0
      %vm595 = vcmp.gt.f32.partialorder %v524, 0.0
      %vm596 = vcmp.gt.f32.partialorder %v526, 0.0
      %vm597 = vcmp.gt.f32.partialorder %v529, 0.0
      %vm598 = vcmp.gt.f32.partialorder %v531, 0.0
      %vm599 = vcmp.gt.f32.partialorder %v534, 0.0
      %vm600 = vcmp.gt.f32.partialorder %v536, 0.0
      %vm601 = vcmp.gt.f32.partialorder %v539, 0.0
      %vm602 = vcmp.gt.f32.partialorder %v541, 0.0
      %vm603 = vcmp.gt.f32.partialorder %v544, 0.0
      %vm604 = vcmp.gt.f32.partialorder %v546, 0.0
      %vm605 = vcmp.gt.f32.partialorder %v549, 0.0
      %vm606 = vcmp.gt.f32.partialorder %v551, 0.0
      %vm607 = vcmp.gt.f32.partialorder %v554, 0.0
      %vm608 = vcmp.gt.f32.partialorder %v556, 0.0
      %vm609 = vcmp.gt.f32.partialorder %v559, 0.0
      %vm610 = vcmp.gt.f32.partialorder %v561, 0.0
      %v611 = vmul.f32 %v444, 0.01
      %v612 = vmul.f32 %v446, 0.01
      %v613 = vmul.f32 %v449, 0.01
      %v614 = vmul.f32 %v451, 0.01
      %v615 = vmul.f32 %v454, 0.01
      %v616 = vmul.f32 %v456, 0.01
      %v617 = vmul.f32 %v459, 0.01
      %v618 = vmul.f32 %v461, 0.01
      %v619 = vmul.f32 %v464, 0.01
      %v620 = vmul.f32 %v466, 0.01
      %v621 = vmul.f32 %v469, 0.01
      %v622 = vmul.f32 %v471, 0.01
      %v623 = vmul.f32 %v474, 0.01
      %v624 = vmul.f32 %v476, 0.01
      %v625 = vmul.f32 %v479, 0.01
      %v626 = vmul.f32 %v481, 0.01
      %v627 = vmul.f32 %v484, 0.01
      %v628 = vmul.f32 %v486, 0.01
      %v629 = vmul.f32 %v489, 0.01
      %v630 = vmul.f32 %v491, 0.01
      %v631 = vmul.f32 %v494, 0.01
      %v632 = vmul.f32 %v496, 0.01
      %v633 = vmul.f32 %v499, 0.01
      %v634 = vmul.f32 %v501, 0.01
      %v635 = vmul.f32 %v504, 0.01
      %v636 = vmul.f32 %v506, 0.01
      %v637 = vmul.f32 %v509, 0.01
      %v638 = vmul.f32 %v511, 0.01
      %v639 = vmul.f32 %v514, 0.01
      %v640 = vmul.f32 %v516, 0.01
      %v641 = vmul.f32 %v519, 0.01
      %v642 = vmul.f32 %v521, 0.01
      %v643 = vmul.f32 %v524, 0.01
      %v644 = vmul.f32 %v526, 0.01
      %v645 = vmul.f32 %v529, 0.01
      %v646 = vmul.f32 %v531, 0.01
      %v647 = vmul.f32 %v534, 0.01
      %v648 = vmul.f32 %v536, 0.01
      %v649 = vmul.f32 %v539, 0.01
      %v650 = vmul.f32 %v541, 0.01
      %v651 = vmul.f32 %v544, 0.01
      %v652 = vmul.f32 %v546, 0.01
      %v653 = vmul.f32 %v549, 0.01
      %v654 = vmul.f32 %v551, 0.01
      %v655 = vmul.f32 %v554, 0.01
      %v656 = vmul.f32 %v556, 0.01
      %v657 = vmul.f32 %v559, 0.01
      %v658 = vmul.f32 %v561, 0.01
      %v659 = vsel %vm563, %v444, %v611
      %v660 = vsel %vm564, %v446, %v612
      %v661 = vsel %vm565, %v449, %v613
      %v662 = vsel %vm566, %v451, %v614
      %v663 = vsel %vm567, %v454, %v615
      %v664 = vsel %vm568, %v456, %v616
      %v665 = vsel %vm569, %v459, %v617
      %v666 = vsel %vm570, %v461, %v618
      %v667 = vsel %vm571, %v464, %v619
      %v668 = vsel %vm572, %v466, %v620
      %v669 = vsel %vm573, %v469, %v621
      %v670 = vsel %vm574, %v471, %v622
      %v671 = vsel %vm575, %v474, %v623
      %v672 = vsel %vm576, %v476, %v624
      %v673 = vsel %vm577, %v479, %v625
      %v674 = vsel %vm578, %v481, %v626
      %v675 = vsel %vm579, %v484, %v627
      %v676 = vsel %vm580, %v486, %v628
      %v677 = vsel %vm581, %v489, %v629
      %v678 = vsel %vm582, %v491, %v630
      %v679 = vsel %vm583, %v494, %v631
      %v680 = vsel %vm584, %v496, %v632
      %v681 = vsel %vm585, %v499, %v633
      %v682 = vsel %vm586, %v501, %v634
      %v683 = vsel %vm587, %v504, %v635
      %v684 = vsel %vm588, %v506, %v636
      %v685 = vsel %vm589, %v509, %v637
      %v686 = vsel %vm590, %v511, %v638
      %v687 = vsel %vm591, %v514, %v639
      %v688 = vsel %vm592, %v516, %v640
      %v689 = vsel %vm593, %v519, %v641
      %v690 = vsel %vm594, %v521, %v642
      %v691 = vsel %vm595, %v524, %v643
      %v692 = vsel %vm596, %v526, %v644
      %v693 = vsel %vm597, %v529, %v645
      %v694 = vsel %vm598, %v531, %v646
      %v695 = vsel %vm599, %v534, %v647
      %v696 = vsel %vm600, %v536, %v648
      %v697 = vsel %vm601, %v539, %v649
      %v698 = vsel %vm602, %v541, %v650
      %v699 = vsel %vm603, %v544, %v651
      %v700 = vsel %vm604, %v546, %v652
      %v701 = vsel %vm605, %v549, %v653
      %v702 = vsel %vm606, %v551, %v654
      %v703 = vsel %vm607, %v554, %v655
      %v704 = vsel %vm608, %v556, %v656
      %v705 = vsel %vm609, %v559, %v657
      %v706 = vsel %vm610, %v561, %v658
      %vm707 = vcmask 523264
      %708 = vst.msk [vmem:[%s172] sm:$0xff] %vm707, %v659
      %709 = vst.msk [vmem:[%s172 + $0x8] sm:$0xff] %vm707, %v660
      %710 = vst.msk [vmem:[%s172 + $0x10] sm:$0xff] %vm707, %v661
      %711 = vst.msk [vmem:[%s172 + $0x18] sm:$0xff] %vm707, %v662
      %712 = vst.msk [vmem:[%s172 + $0x20] sm:$0xff] %vm707, %v663
      %713 = vst.msk [vmem:[%s172 + $0x28] sm:$0xff] %vm707, %v664
      %714 = vst.msk [vmem:[%s172 + $0x30] sm:$0xff] %vm707, %v665
      %715 = vst.msk [vmem:[%s172 + $0x38] sm:$0xff] %vm707, %v666
      %716 = vst.msk [vmem:[%s172 + $0x40] sm:$0xff] %vm707, %v667
      %717 = vst.msk [vmem:[%s172 + $0x48] sm:$0xff] %vm707, %v668
      %718 = vst.msk [vmem:[%s172 + $0x50] sm:$0xff] %vm707, %v669
      %719 = vst.msk [vmem:[%s172 + $0x58] sm:$0xff] %vm707, %v670
      %720 = vst.msk [vmem:[%s172 + $0x60] sm:$0xff] %vm707, %v671
      %721 = vst.msk [vmem:[%s172 + $0x68] sm:$0xff] %vm707, %v672
      %722 = vst.msk [vmem:[%s172 + $0x70] sm:$0xff] %vm707, %v673
      %723 = vst.msk [vmem:[%s172 + $0x78] sm:$0xff] %vm707, %v674
      %724 = vst.msk [vmem:[%s172 + $0x80] sm:$0xff] %vm707, %v675
      %725 = vst.msk [vmem:[%s172 + $0x88] sm:$0xff] %vm707, %v676
      %726 = vst.msk [vmem:[%s172 + $0x90] sm:$0xff] %vm707, %v677
      %727 = vst.msk [vmem:[%s172 + $0x98] sm:$0xff] %vm707, %v678
      %728 = vst.msk [vmem:[%s172 + $0xa0] sm:$0xff] %vm707, %v679
      %729 = vst.msk [vmem:[%s172 + $0xa8] sm:$0xff] %vm707, %v680
      %730 = vst.msk [vmem:[%s172 + $0xb0] sm:$0xff] %vm707, %v681
      %731 = vst.msk [vmem:[%s172 + $0xb8] sm:$0xff] %vm707, %v682
      %732 = vst.msk [vmem:[%s172 + $0xc0] sm:$0xff] %vm707, %v683
      %733 = vst.msk [vmem:[%s172 + $0xc8] sm:$0xff] %vm707, %v684
      %734 = vst.msk [vmem:[%s172 + $0xd0] sm:$0xff] %vm707, %v685
      %735 = vst.msk [vmem:[%s172 + $0xd8] sm:$0xff] %vm707, %v686
      %736 = vst.msk [vmem:[%s172 + $0xe0] sm:$0xff] %vm707, %v687
      %737 = vst.msk [vmem:[%s172 + $0xe8] sm:$0xff] %vm707, %v688
      %738 = vst.msk [vmem:[%s172 + $0xf0] sm:$0xff] %vm707, %v689
      %739 = vst.msk [vmem:[%s172 + $0xf8] sm:$0xff] %vm707, %v690
      %740 = vst.msk [vmem:[%s172 + $0x100] sm:$0xff] %vm707, %v691
      %741 = vst.msk [vmem:[%s172 + $0x108] sm:$0xff] %vm707, %v692
      %742 = vst.msk [vmem:[%s172 + $0x110] sm:$0xff] %vm707, %v693
      %743 = vst.msk [vmem:[%s172 + $0x118] sm:$0xff] %vm707, %v694
      %744 = vst.msk [vmem:[%s172 + $0x120] sm:$0xff] %vm707, %v695
      %745 = vst.msk [vmem:[%s172 + $0x128] sm:$0xff] %vm707, %v696
      %746 = vst.msk [vmem:[%s172 + $0x130] sm:$0xff] %vm707, %v697
      %747 = vst.msk [vmem:[%s172 + $0x138] sm:$0xff] %vm707, %v698
      %748 = vst.msk [vmem:[%s172 + $0x140] sm:$0xff] %vm707, %v699
      %749 = vst.msk [vmem:[%s172 + $0x148] sm:$0xff] %vm707, %v700
      %750 = vst.msk [vmem:[%s172 + $0x150] sm:$0xff] %vm707, %v701
      %751 = vst.msk [vmem:[%s172 + $0x158] sm:$0xff] %vm707, %v702
      %752 = vst.msk [vmem:[%s172 + $0x160] sm:$0xff] %vm707, %v703
      %753 = vst.msk [vmem:[%s172 + $0x168] sm:$0xff] %vm707, %v704
      %754 = vst.msk [vmem:[%s172 + $0x170] sm:$0xff] %vm707, %v705
      %755 = vst.msk [vmem:[%s172 + $0x178] sm:$0xff] %vm707, %v706
      %s756 = smul.u32 48, %s14
      %p757 = scmp.lt.s32.totalorder %s756, 143
      %s758 = scalar_select %p757, %s756, 143
      %s759 = smul.addr %s758, 8
      %s760 = scalar_lea.vmem %s3, %s759
      // Predicated region
      $region33: #{distill_cnn_forward.5} parent=31 // pred_check
        %p761 = pneg %p100
      $region34: #{distill_cnn_forward.5} parent=31 // pred_check_branch
        %763 = sbr.rel (%p761) target = $region36
      $region35: #{distill_cnn_forward.5} parent=31 // pred_region
        %s764 = smul.u32 48, %s14
      $region36: #{distill_cnn_forward.5} parent=31 // pred_fallthru
        _
    $region32: #{distill_cnn_forward.5} parent=5 // pred_fallthru
      _
    %p765 = scmp.le.s32.totalorder 2, %s9
    // Predicated region
    $region37: #{distill_cnn_forward.5} parent=5 // pred_check
      %p766 = pneg %p765
    $region38: #{distill_cnn_forward.5} parent=5 // pred_check_branch
      %768 = sbr.rel (%p766) target = $region40
    $region39: #{distill_cnn_forward.5} parent=5 // pred_region
      %s769 = ssub.s32 %s9, 2
      // Predicated region
      $region41: #{distill_cnn_forward.5} parent=39 // pred_check
        %p770 = pneg %p106
      $region42: #{distill_cnn_forward.5} parent=39 // pred_check_branch
        %772 = sbr.rel (%p770) target = $region44
      $region43: #{distill_cnn_forward.5} parent=39 // pred_region
        %s773 = smul.u32 48, %s15
        %p774 = scmp.lt.s32.totalorder %s773, 143
        %s775 = scalar_select %p774, %s773, 143
        %s776 = smul.addr %s775, 8
        %s777 = scalar_lea.vmem %s3, %s776
      $region44: #{distill_cnn_forward.5} parent=39 // pred_fallthru
        _
    $region40: #{distill_cnn_forward.5} parent=5 // pred_fallthru
      _
  $region6: #{distill_cnn_forward.5} parent=0 // loop_footer
    %s13 = sadd.s32 1, %s9
  $region7: #{distill_cnn_forward.5} parent=0 // loop_footer_branch
    %8 = sbr.rel target = $region3
  $region8: #{distill_cnn_forward.5} parent=0 // loop_exit
    _

// kernel: distill_cnn_forward.6
$region0: #{distill_cnn_forward.6}
  #allocation0 [shape = 'u32[]', space=smem, size = 0x4, offset = 0x4, fixed_abs, tag = 'smem constant byte address 0x4 - core index']
  #allocation1 [shape = 'u32[72,128]{1,0:T(1,128)}', space=vmem, size = 0x9000, scoped, tag = 'internal scratch']
  %s0 = inlined_call_operand.vmem [shape: f32[16,2,16,128], index: 0, kind: input, shape index: {}]
  %s1 = inlined_call_operand.vmem [shape: f32[16,16,64], index: 1, kind: output, shape index: {}]
  %s2 = sld [smem:[#allocation0]]
  $region14: #{distill_cnn_forward.6} parent=0
    _
  %s4 = ssub.s32 1, %s2
  %s5 = scalar_select 0, %s4, %s2
  // Predicated region
  $region2: #{distill_cnn_forward.6} parent=0 // pred_check
    _
  $region3: #{distill_cnn_forward.6} parent=0 // pred_check_branch
    %7 = sbr.rel (0) target = $region5
  $region4: #{distill_cnn_forward.6} parent=0 // pred_region
    _
  $region5: #{distill_cnn_forward.6} parent=0 // pred_fallthru
    _
  %v8 = vld [vmem:[%s0] sm:$0xff]
  %v9 = vld [vmem:[%s0 + $0x8] sm:$0xff]
  %v10 = vld [vmem:[%s0 + $0x10] sm:$0xff]
  %v11 = vld [vmem:[%s0 + $0x18] sm:$0xff]
  %v12 = vld [vmem:[%s0 + $0x20] sm:$0xff]
  %v13 = vld [vmem:[%s0 + $0x28] sm:$0xff]
  %v14 = vld [vmem:[%s0 + $0x30] sm:$0xff]
  %v15 = vld [vmem:[%s0 + $0x38] sm:$0xff]
  %v16 = vld [vmem:[%s0 + $0x40] sm:$0xff]
  %v17 = vld [vmem:[%s0 + $0x48] sm:$0xff]
  %v18 = vld [vmem:[%s0 + $0x50] sm:$0xff]
  %v19 = vld [vmem:[%s0 + $0x58] sm:$0xff]
  %v20 = vld [vmem:[%s0 + $0x60] sm:$0xff]
  %v21 = vld [vmem:[%s0 + $0x68] sm:$0xff]
  %v22 = vld [vmem:[%s0 + $0x70] sm:$0xff]
  %v23 = vld [vmem:[%s0 + $0x78] sm:$0xff]
  %v24 = vld [vmem:[%s0 + $0x80] sm:$0xff]
  %v25 = vld [vmem:[%s0 + $0x88] sm:$0xff]
  %v26 = vld [vmem:[%s0 + $0x90] sm:$0xff]
  %v27 = vld [vmem:[%s0 + $0x98] sm:$0xff]
  %v28 = vld [vmem:[%s0 + $0xa0] sm:$0xff]
  %v29 = vld [vmem:[%s0 + $0xa8] sm:$0xff]
  %v30 = vld [vmem:[%s0 + $0xb0] sm:$0xff]
  %v31 = vld [vmem:[%s0 + $0xb8] sm:$0xff]
  %v32 = vld [vmem:[%s0 + $0xc0] sm:$0xff]
  %v33 = vld [vmem:[%s0 + $0xc8] sm:$0xff]
  %v34 = vld [vmem:[%s0 + $0xd0] sm:$0xff]
  %v35 = vld [vmem:[%s0 + $0xd8] sm:$0xff]
  %v36 = vld [vmem:[%s0 + $0xe0] sm:$0xff]
  %v37 = vld [vmem:[%s0 + $0xe8] sm:$0xff]
  %v38 = vld [vmem:[%s0 + $0xf0] sm:$0xff]
  %v39 = vld [vmem:[%s0 + $0xf8] sm:$0xff]
  %v40 = vld [vmem:[%s0 + $0x100] sm:$0xff]
  %v41 = vld [vmem:[%s0 + $0x108] sm:$0xff]
  %v42 = vld [vmem:[%s0 + $0x110] sm:$0xff]
  %v43 = vld [vmem:[%s0 + $0x118] sm:$0xff]
  %v44 = vld [vmem:[%s0 + $0x120] sm:$0xff]
  %v45 = vld [vmem:[%s0 + $0x128] sm:$0xff]
  %v46 = vld [vmem:[%s0 + $0x130] sm:$0xff]
  %v47 = vld [vmem:[%s0 + $0x138] sm:$0xff]
  %v48 = vld [vmem:[%s0 + $0x140] sm:$0xff]
  %v49 = vld [vmem:[%s0 + $0x148] sm:$0xff]
  %v50 = vld [vmem:[%s0 + $0x150] sm:$0xff]
  %v51 = vld [vmem:[%s0 + $0x158] sm:$0xff]
  %v52 = vld [vmem:[%s0 + $0x160] sm:$0xff]
  %v53 = vld [vmem:[%s0 + $0x168] sm:$0xff]
  %v54 = vld [vmem:[%s0 + $0x170] sm:$0xff]
  %v55 = vld [vmem:[%s0 + $0x178] sm:$0xff]
  %v56 = vld [vmem:[%s0 + $0x180] sm:$0xff]
  %v57 = vld [vmem:[%s0 + $0x188] sm:$0xff]
  %v58 = vld [vmem:[%s0 + $0x190] sm:$0xff]
  %v59 = vld [vmem:[%s0 + $0x198] sm:$0xff]
  %v60 = vld [vmem:[%s0 + $0x1a0] sm:$0xff]
  %v61 = vld [vmem:[%s0 + $0x1a8] sm:$0xff]
  %v62 = vld [vmem:[%s0 + $0x1b0] sm:$0xff]
  %v63 = vld [vmem:[%s0 + $0x1b8] sm:$0xff]
  %v64 = vld [vmem:[%s0 + $0x1c0] sm:$0xff]
  %v65 = vld [vmem:[%s0 + $0x1c8] sm:$0xff]
  %v66 = vld [vmem:[%s0 + $0x1d0] sm:$0xff]
  %v67 = vld [vmem:[%s0 + $0x1d8] sm:$0xff]
  %v68 = vld [vmem:[%s0 + $0x1e0] sm:$0xff]
  %v69 = vld [vmem:[%s0 + $0x1e8] sm:$0xff]
  %v70 = vld [vmem:[%s0 + $0x1f0] sm:$0xff]
  %v71 = vld [vmem:[%s0 + $0x1f8] sm:$0xff]
  %v72 = vmax.f32 %v8, %v10
  %v73 = vmax.f32 %v9, %v11
  %v74 = vmax.f32 %v12, %v14
  %v75 = vmax.f32 %v13, %v15
  %v76 = vmax.f32 %v16, %v18
  %v77 = vmax.f32 %v17, %v19
  %v78 = vmax.f32 %v20, %v22
  %v79 = vmax.f32 %v21, %v23
  %v80 = vmax.f32 %v24, %v26
  %v81 = vmax.f32 %v25, %v27
  %v82 = vmax.f32 %v28, %v30
  %v83 = vmax.f32 %v29, %v31
  %v84 = vmax.f32 %v32, %v34
  %v85 = vmax.f32 %v33, %v35
  %v86 = vmax.f32 %v36, %v38
  %v87 = vmax.f32 %v37, %v39
  %v88 = vmax.f32 %v40, %v42
  %v89 = vmax.f32 %v41, %v43
  %v90 = vmax.f32 %v44, %v46
  %v91 = vmax.f32 %v45, %v47
  %v92 = vmax.f32 %v48, %v50
  %v93 = vmax.f32 %v49, %v51
  %v94 = vmax.f32 %v52, %v54
  %v95 = vmax.f32 %v53, %v55
  %v96 = vmax.f32 %v56, %v58
  %v97 = vmax.f32 %v57, %v59
  %v98 = vmax.f32 %v60, %v62
  %v99 = vmax.f32 %v61, %v63
  %v100 = vmax.f32 %v64, %v66
  %v101 = vmax.f32 %v65, %v67
  %v102 = vmax.f32 %v68, %v70
  %v103 = vmax.f32 %v69, %v71
  %136 = vrot.lane.b32.xlu0 %v72, 64
  %v137 = vpop.permute.xlu0 %136
  %138 = vrot.lane.b32.xlu0 %v73, 64
  %v139 = vpop.permute.xlu0 %138
  %140 = vrot.lane.b32.xlu0 %v74, 64
  %v141 = vpop.permute.xlu0 %140
  %142 = vrot.lane.b32.xlu0 %v75, 64
  %v143 = vpop.permute.xlu0 %142
  %144 = vrot.lane.b32.xlu0 %v76, 64
  %v145 = vpop.permute.xlu0 %144
  %146 = vrot.lane.b32.xlu0 %v77, 64
  %v147 = vpop.permute.xlu0 %146
  %148 = vrot.lane.b32.xlu0 %v78, 64
  %v149 = vpop.permute.xlu0 %148
  %150 = vrot.lane.b32.xlu0 %v79, 64
  %v151 = vpop.permute.xlu0 %150
  %152 = vrot.lane.b32.xlu0 %v80, 64
  %v153 = vpop.permute.xlu0 %152
  %154 = vrot.lane.b32.xlu0 %v81, 64
  %v155 = vpop.permute.xlu0 %154
  %156 = vrot.lane.b32.xlu0 %v82, 64
  %v157 = vpop.permute.xlu0 %156
  %158 = vrot.lane.b32.xlu0 %v83, 64
  %v159 = vpop.permute.xlu0 %158
  %160 = vrot.lane.b32.xlu0 %v84, 64
  %v161 = vpop.permute.xlu0 %160
  %162 = vrot.lane.b32.xlu0 %v85, 64
  %v163 = vpop.permute.xlu0 %162
  %164 = vrot.lane.b32.xlu0 %v86, 64
  %v165 = vpop.permute.xlu0 %164
  %166 = vrot.lane.b32.xlu0 %v87, 64
  %v167 = vpop.permute.xlu0 %166
  %168 = vrot.lane.b32.xlu0 %v88, 64
  %v169 = vpop.permute.xlu0 %168
  %170 = vrot.lane.b32.xlu0 %v89, 64
  %v171 = vpop.permute.xlu0 %170
  %172 = vrot.lane.b32.xlu0 %v90, 64
  %v173 = vpop.permute.xlu0 %172
  %174 = vrot.lane.b32.xlu0 %v91, 64
  %v175 = vpop.permute.xlu0 %174
  %176 = vrot.lane.b32.xlu0 %v92, 64
  %v177 = vpop.permute.xlu0 %176
  %178 = vrot.lane.b32.xlu0 %v93, 64
  %v179 = vpop.permute.xlu0 %178
  %180 = vrot.lane.b32.xlu0 %v94, 64
  %v181 = vpop.permute.xlu0 %180
  %182 = vrot.lane.b32.xlu0 %v95, 64
  %v183 = vpop.permute.xlu0 %182
  %184 = vrot.lane.b32.xlu0 %v96, 64
  %v185 = vpop.permute.xlu0 %184
  %186 = vrot.lane.b32.xlu0 %v97, 64
  %v187 = vpop.permute.xlu0 %186
  %188 = vrot.lane.b32.xlu0 %v98, 64
  %v189 = vpop.permute.xlu0 %188
  %190 = vrot.lane.b32.xlu0 %v99, 64
  %v191 = vpop.permute.xlu0 %190
  %192 = vrot.lane.b32.xlu0 %v100, 64
  %v193 = vpop.permute.xlu0 %192
  %194 = vrot.lane.b32.xlu0 %v101, 64
  %v195 = vpop.permute.xlu0 %194
  %196 = vrot.lane.b32.xlu0 %v102, 64
  %v197 = vpop.permute.xlu0 %196
  %198 = vrot.lane.b32.xlu0 %v103, 64
  %v199 = vpop.permute.xlu0 %198
  %v232 = vmax.f32 %v72, %v137
  %v233 = vmax.f32 %v73, %v139
  %v234 = vmax.f32 %v74, %v141
  %v235 = vmax.f32 %v75, %v143
  %v236 = vmax.f32 %v76, %v145
  %v237 = vmax.f32 %v77, %v147
  %v238 = vmax.f32 %v78, %v149
  %v239 = vmax.f32 %v79, %v151
  %v240 = vmax.f32 %v80, %v153
  %v241 = vmax.f32 %v81, %v155
  %v242 = vmax.f32 %v82, %v157
  %v243 = vmax.f32 %v83, %v159
  %v244 = vmax.f32 %v84, %v161
  %v245 = vmax.f32 %v85, %v163
  %v246 = vmax.f32 %v86, %v165
  %v247 = vmax.f32 %v87, %v167
  %v248 = vmax.f32 %v88, %v169
  %v249 = vmax.f32 %v89, %v171
  %v250 = vmax.f32 %v90, %v173
  %v251 = vmax.f32 %v91, %v175
  %v252 = vmax.f32 %v92, %v177
  %v253 = vmax.f32 %v93, %v179
  %v254 = vmax.f32 %v94, %v181
  %v255 = vmax.f32 %v95, %v183
  %v256 = vmax.f32 %v96, %v185
  %v257 = vmax.f32 %v97, %v187
  %v258 = vmax.f32 %v98, %v189
  %v259 = vmax.f32 %v99, %v191
  %v260 = vmax.f32 %v100, %v193
  %v261 = vmax.f32 %v101, %v195
  %v262 = vmax.f32 %v102, %v197
  %v263 = vmax.f32 %v103, %v199
  %vm264 = vcmask 523264
  %265 = vst.msk [vmem:[%s1] sm:$0xff] %vm264, %v232
  %266 = vst.msk [vmem:[%s1 + $0x8] sm:$0xff] %vm264, %v233
  %267 = vst.msk [vmem:[%s1 + $0x10] sm:$0xff] %vm264, %v234
  %268 = vst.msk [vmem:[%s1 + $0x18] sm:$0xff] %vm264, %v235
  %269 = vst.msk [vmem:[%s1 + $0x20] sm:$0xff] %vm264, %v236
  %270 = vst.msk [vmem:[%s1 + $0x28] sm:$0xff] %vm264, %v237
  %271 = vst.msk [vmem:[%s1 + $0x30] sm:$0xff] %vm264, %v238
  %272 = vst.msk [vmem:[%s1 + $0x38] sm:$0xff] %vm264, %v239
  %273 = vst.msk [vmem:[%s1 + $0x40] sm:$0xff] %vm264, %v240
  %274 = vst.msk [vmem:[%s1 + $0x48] sm:$0xff] %vm264, %v241
  %275 = vst.msk [vmem:[%s1 + $0x50] sm:$0xff] %vm264, %v242
  %276 = vst.msk [vmem:[%s1 + $0x58] sm:$0xff] %vm264, %v243
  %277 = vst.msk [vmem:[%s1 + $0x60] sm:$0xff] %vm264, %v244
  %278 = vst.msk [vmem:[%s1 + $0x68] sm:$0xff] %vm264, %v245
  %279 = vst.msk [vmem:[%s1 + $0x70] sm:$0xff] %vm264, %v246
  %280 = vst.msk [vmem:[%s1 + $0x78] sm:$0xff] %vm264, %v247
  %281 = vst.msk [vmem:[%s1 + $0x80] sm:$0xff] %vm264, %v248
  %282 = vst.msk [vmem:[%s1 + $0x88] sm:$0xff] %vm264, %v249
  %283 = vst.msk [vmem:[%s1 + $0x90] sm:$0xff] %vm264, %v250
  %284 = vst.msk [vmem:[%s1 + $0x98] sm:$0xff] %vm264, %v251
  %285 = vst.msk [vmem:[%s1 + $0xa0] sm:$0xff] %vm264, %v252
  %286 = vst.msk [vmem:[%s1 + $0xa8] sm:$0xff] %vm264, %v253
  %287 = vst.msk [vmem:[%s1 + $0xb0] sm:$0xff] %vm264, %v254
  %288 = vst.msk [vmem:[%s1 + $0xb8] sm:$0xff] %vm264, %v255
  %289 = vst.msk [vmem:[%s1 + $0xc0] sm:$0xff] %vm264, %v256
  %290 = vst.msk [vmem:[%s1 + $0xc8] sm:$0xff] %vm264, %v257
  %291 = vst.msk [vmem:[%s1 + $0xd0] sm:$0xff] %vm264, %v258
  %292 = vst.msk [vmem:[%s1 + $0xd8] sm:$0xff] %vm264, %v259
  %293 = vst.msk [vmem:[%s1 + $0xe0] sm:$0xff] %vm264, %v260
  %294 = vst.msk [vmem:[%s1 + $0xe8] sm:$0xff] %vm264, %v261
  %295 = vst.msk [vmem:[%s1 + $0xf0] sm:$0xff] %vm264, %v262
  %296 = vst.msk [vmem:[%s1 + $0xf8] sm:$0xff] %vm264, %v263
  // Predicated region
  $region6: #{distill_cnn_forward.6} parent=0 // pred_check
    _
  $region7: #{distill_cnn_forward.6} parent=0 // pred_check_branch
    %298 = sbr.rel (0) target = $region9
  $region8: #{distill_cnn_forward.6} parent=0 // pred_region
    _
  $region9: #{distill_cnn_forward.6} parent=0 // pred_fallthru
    _
  // Predicated region
  $region10: #{distill_cnn_forward.6} parent=0 // pred_check
    _
  $region11: #{distill_cnn_forward.6} parent=0 // pred_check_branch
    %300 = sbr.rel (0) target = $region13
  $region12: #{distill_cnn_forward.6} parent=0 // pred_region
    _
  $region13: #{distill_cnn_forward.6} parent=0 // pred_fallthru
    _

// kernel: distill_cnn_forward.7
$region0: #{distill_cnn_forward.7}
  #allocation0 [shape = 'u32[]', space=smem, size = 0x4, offset = 0x4, fixed_abs, tag = 'smem constant byte address 0x4 - core index']
  #allocation1 [shape = 'u32[72,128]{1,0:T(1,128)}', space=vmem, size = 0x9000, scoped, tag = 'internal scratch']
  %s0 = inlined_call_operand.vmem [shape: bf16[256,576], index: 0, kind: input, shape index: {}]
  %s1 = inlined_call_operand.vmem [shape: bf16[576,128], index: 1, kind: input, shape index: {}]
  %s2 = inlined_call_operand.vmem [shape: f32[1,128], index: 2, kind: input, shape index: {}]
  %s3 = inlined_call_operand.vmem [shape: f32[256,128], index: 3, kind: output, shape index: {}]
  %s4 = sld [smem:[#allocation0]]
  $region45: #{distill_cnn_forward.7} parent=0
    _
  %s6 = ssub.s32 1, %s4
  %s7 = scalar_select 0, %s6, %s4
  loop: start=0, step=1, limit=4
  $region2: #{distill_cnn_forward.7} parent=0 // loop_pre_header
    _
  $region3: #{distill_cnn_forward.7} parent=0 // loop_header
    %s9 = sphi 0, %s13
    %p10 = scmp.ge.s32.totalorder %s9, 4
    %s19 = sphi 0, %s21
    %s22 = sphi 0, %s19
    %s23 = sphi 0, %s22
    %s39 = sphi 0, %s23
    %s43 = sphi 0, %s43
    %s45 = sphi 0, %s43
    %s46 = sphi 0, %s45
    %s60 = sphi 0, %s46
    %s64 = sphi 0, %s64
    %s66 = sphi 0, %s64
    %s67 = sphi 0, %s66
    %s81 = sphi 0, %s67
    %s87 = sphi 0, %s89
    %s90 = sphi 0, %s87
    %s91 = sphi 0, %s90
    %s107 = sphi 0, %s91
  $region4: #{distill_cnn_forward.7} parent=0 // loop_header_branch
    %12 = sbr.rel (%p10) target = $region8
  $region5: #{distill_cnn_forward.7} parent=0 // loop_body
    %s14 = ssub.s32 %s9, 1
    %s15 = ssub.s32 %s9, 2
    %s16 = sadd.s32 %s9, 1
    %s17 = ssub.s32 %s9, %s16
    %p18 = scmp.eq.s32.totalorder %s17, 0
    %s20 = sadd.s32 %s19, 1
    %s21 = scalar_select %p18, %s19, %s20
    %p24 = pneg %p18
    %p25 = scmp.eq.s32.totalorder %s9, 1
    %p26 = por %p24, %p25
    %p27 = scmp.ne.s32.totalorder %s19, %s22
    %p28 = scmp.eq.s32.totalorder %s9, 0
    %p29 = por %p27, %p28
    %p30 = scmp.ne.s32.totalorder %s19, %s22
    %p31 = scmp.eq.s32.totalorder %s14, 1
    %p32 = por %p30, %p31
    %p33 = scmp.ne.s32.totalorder %s22, %s23
    %p34 = scmp.eq.s32.totalorder %s14, 0
    %p35 = por %p33, %p34
    %p36 = scmp.ne.s32.totalorder %s22, %s23
    %p37 = scmp.eq.s32.totalorder %s15, 1
    %p38 = por %p36, %p37
    %p40 = scmp.ne.s32.totalorder %s23, %s39
    %p41 = scmp.eq.s32.totalorder %s15, 0
    %p42 = por %p40, %p41
    %s44 = sadd.s32 %s43, 1
    %p47 = scmp.eq.s32.totalorder %s9, 1
    %p48 = scmp.ne.s32.totalorder %s43, %s45
    %p49 = scmp.eq.s32.totalorder %s9, 0
    %p50 = por %p48, %p49
    %p51 = scmp.ne.s32.totalorder %s43, %s45
    %p52 = scmp.eq.s32.totalorder %s14, 1
    %p53 = por %p51, %p52
    %p54 = scmp.ne.s32.totalorder %s45, %s46
    %p55 = scmp.eq.s32.totalorder %s14, 0
    %p56 = por %p54, %p55
    %p57 = scmp.ne.s32.totalorder %s45, %s46
    %p58 = scmp.eq.s32.totalorder %s15, 1
    %p59 = por %p57, %p58
    %p61 = scmp.ne.s32.totalorder %s46, %s60
    %p62 = scmp.eq.s32.totalorder %s15, 0
    %p63 = por %p61, %p62
    %s65 = sadd.s32 %s64, 1
    %p68 = scmp.eq.s32.totalorder %s9, 1
    %p69 = scmp.ne.s32.totalorder %s64, %s66
    %p70 = scmp.eq.s32.totalorder %s9, 0
    %p71 = por %p69, %p70
    %p72 = scmp.ne.s32.totalorder %s64, %s66
    %p73 = scmp.eq.s32.totalorder %s14, 1
    %p74 = por %p72, %p73
    %p75 = scmp.ne.s32.totalorder %s66, %s67
    %p76 = scmp.eq.s32.totalorder %s14, 0
    %p77 = por %p75, %p76
    %p78 = scmp.ne.s32.totalorder %s66, %s67
    %p79 = scmp.eq.s32.totalorder %s15, 1
    %p80 = por %p78, %p79
    %p82 = scmp.ne.s32.totalorder %s67, %s81
    %p83 = scmp.eq.s32.totalorder %s15, 0
    %p84 = por %p82, %p83
    %s85 = ssub.s32 %s9, %s16
    %p86 = scmp.eq.s32.totalorder %s85, 0
    %s88 = sadd.s32 %s87, 1
    %s89 = scalar_select %p86, %s87, %s88
    %p92 = pneg %p86
    %p93 = scmp.eq.s32.totalorder %s9, 1
    %p94 = por %p92, %p93
    %p95 = scmp.ne.s32.totalorder %s87, %s90
    %p96 = scmp.eq.s32.totalorder %s9, 0
    %p97 = por %p95, %p96
    %p98 = scmp.ne.s32.totalorder %s87, %s90
    %p99 = scmp.eq.s32.totalorder %s14, 1
    %p100 = por %p98, %p99
    %p101 = scmp.ne.s32.totalorder %s90, %s91
    %p102 = scmp.eq.s32.totalorder %s14, 0
    %p103 = por %p101, %p102
    %p104 = scmp.ne.s32.totalorder %s90, %s91
    %p105 = scmp.eq.s32.totalorder %s15, 1
    %p106 = por %p104, %p105
    %p108 = scmp.ne.s32.totalorder %s91, %s107
    %p109 = scmp.eq.s32.totalorder %s15, 0
    %p110 = por %p108, %p109
    %p111 = scmp.le.s32.totalorder 1, %s9
    %p112 = scmp.lt.s32.totalorder %s9, 3
    %p113 = pnand %p111, %p112
    %p114 = pneg %p113
    // Predicated region
    $region9: #{distill_cnn_forward.7} parent=5 // pred_check
      _
    $region10: #{distill_cnn_forward.7} parent=5 // pred_check_branch
      %116 = sbr.rel (%p113) target = $region12
    $region11: #{distill_cnn_forward.7} parent=5 // pred_region
      %s117 = ssub.s32 %s9, 1
      // Predicated region
      $region13: #{distill_cnn_forward.7} parent=11 // pred_check
        %p118 = pneg %p56
      $region14: #{distill_cnn_forward.7} parent=11 // pred_check_branch
        %120 = sbr.rel (%p118) target = $region16
      $region15: #{distill_cnn_forward.7} parent=11 // pred_region
        _
      $region16: #{distill_cnn_forward.7} parent=11 // pred_fallthru
        _
      // Predicated region
      $region17: #{distill_cnn_forward.7} parent=11 // pred_check
        %p121 = pneg %p77
      $region18: #{distill_cnn_forward.7} parent=11 // pred_check_branch
        %123 = sbr.rel (%p121) target = $region20
      $region19: #{distill_cnn_forward.7} parent=11 // pred_region
        _
      $region20: #{distill_cnn_forward.7} parent=11 // pred_fallthru
        _
    $region12: #{distill_cnn_forward.7} parent=5 // pred_fallthru
      _
    %p124 = scmp.lt.s32.totalorder %s9, 2
    // Predicated region
    $region21: #{distill_cnn_forward.7} parent=5 // pred_check
      %p125 = pneg %p124
    $region22: #{distill_cnn_forward.7} parent=5 // pred_check_branch
      %127 = sbr.rel (%p125) target = $region24
    $region23: #{distill_cnn_forward.7} parent=5 // pred_region
      // Predicated region
      $region25: #{distill_cnn_forward.7} parent=23 // pred_check
        %p128 = pneg %p29
      $region26: #{distill_cnn_forward.7} parent=23 // pred_check_branch
        %130 = sbr.rel (%p128) target = $region28
      $region27: #{distill_cnn_forward.7} parent=23 // pred_region
        %s131 = smul.u32 16, %s9
        %p132 = scmp.lt.s32.totalorder %s131, 31
        %s133 = scalar_select %p132, %s131, 31
        %s134 = smul.addr %s133, 5
        %s135 = smul.addr %s134, 4
        %s136 = scalar_lea.vmem %s0, %s135
        %s137 = smul.u32 16, %s9
      $region28: #{distill_cnn_forward.7} parent=23 // pred_fallthru
        _
    $region24: #{distill_cnn_forward.7} parent=5 // pred_fallthru
      _
    %p138 = scmp.le.s32.totalorder 1, %s9
    %p139 = scmp.lt.s32.totalorder %s9, 3
    %p140 = pnand %p138, %p139
    %p141 = pneg %p140
    // Predicated region
    $region29: #{distill_cnn_forward.7} parent=5 // pred_check
      _
    $region30: #{distill_cnn_forward.7} parent=5 // pred_check_branch
      %143 = sbr.rel (%p140) target = $region32
    $region31: #{distill_cnn_forward.7} parent=5 // pred_region
      %s144 = ssub.s32 %s9, 1
      %s145 = smul.u32 16, %s14
      %p146 = scmp.lt.s32.totalorder %s145, 31
      %s147 = scalar_select %p146, %s145, 31
      %s148 = smul.addr %s147, 5
      %s149 = smul.addr %s148, 4
      %s150 = scalar_lea.vmem %s0, %s149
      %p151 = pneg %p35
      %p152 = pneg %p32
      %p153 = pneg %p56
      %p154 = pneg %p53
      %p155 = pneg %p77
      %p156 = pneg %p74
      %p157 = pneg %p103
      %p158 = pneg %p100
      %s159 = smul.u32 16, %s14
      %p160 = scmp.lt.s32.totalorder %s159, 31
      %s161 = scalar_select %p160, %s159, 31
      %s162 = smul.addr %s161, 8
      %s163 = scalar_lea.vmem %s3, %s162
      %s164 = smul.u32 16, %s14
      %p165 = scmp.lt.s32.totalorder %s164, 31
      %s166 = scalar_select %p165, %s164, 31
      %s167 = smul.addr %s166, 5
      %s168 = smul.addr %s167, 4
      %s169 = scalar_lea.vmem %s0, %s168
      %s170 = smul.u32 16, %s14
      %s171 = smul.u32 16, %s14
      %p172 = scmp.lt.s32.totalorder %s171, 31
      %s173 = scalar_select %p172, %s171, 31
      %s174 = smul.addr %s173, 8
      %s175 = scalar_lea.vmem %s3, %s174
      %s176 = smul.u32 16, %s14
      %v178 = vld [vmem:[%s169] sm:$0xff]
      %v179 = vld [vmem:[%s169 + $0x8] sm:$0xff]
      %v180 = vld [vmem:[%s169 + $0x10] sm:$0xf]
      %v181 = vld [vmem:[%s169 + $0x14] sm:$0xff]
      %v182 = vld [vmem:[%s169 + $0x1c] sm:$0xff]
      %v183 = vld [vmem:[%s169 + $0x24] sm:$0xf]
      %v184 = vld [vmem:[%s169 + $0x28] sm:$0xff]
      %v185 = vld [vmem:[%s169 + $0x30] sm:$0xff]
      %v186 = vld [vmem:[%s169 + $0x38] sm:$0xf]
      %v187 = vld [vmem:[%s169 + $0x3c] sm:$0xff]
      %v188 = vld [vmem:[%s169 + $0x44] sm:$0xff]
      %v189 = vld [vmem:[%s169 + $0x4c] sm:$0xf]
      %v190 = vld [vmem:[%s169 + $0x50] sm:$0xff]
      %v191 = vld [vmem:[%s169 + $0x58] sm:$0xff]
      %v192 = vld [vmem:[%s169 + $0x60] sm:$0xf]
      %v193 = vld [vmem:[%s169 + $0x64] sm:$0xff]
      %v194 = vld [vmem:[%s169 + $0x6c] sm:$0xff]
      %v195 = vld [vmem:[%s169 + $0x74] sm:$0xf]
      %v196 = vld [vmem:[%s169 + $0x78] sm:$0xff]
      %v197 = vld [vmem:[%s169 + $0x80] sm:$0xff]
      %v198 = vld [vmem:[%s169 + $0x88] sm:$0xf]
      %v199 = vld [vmem:[%s169 + $0x8c] sm:$0xff]
      %v200 = vld [vmem:[%s169 + $0x94] sm:$0xff]
      %v201 = vld [vmem:[%s169 + $0x9c] sm:$0xf]
      %v202 = vld [vmem:[%s169 + $0xa0] sm:$0xff]
      %v203 = vld [vmem:[%s169 + $0xa8] sm:$0xff]
      %v204 = vld [vmem:[%s169 + $0xb0] sm:$0xf]
      %v205 = vld [vmem:[%s169 + $0xb4] sm:$0xff]
      %v206 = vld [vmem:[%s169 + $0xbc] sm:$0xff]
      %v207 = vld [vmem:[%s169 + $0xc4] sm:$0xf]
      %v208 = vld [vmem:[%s169 + $0xc8] sm:$0xff]
      %v209 = vld [vmem:[%s169 + $0xd0] sm:$0xff]
      %v210 = vld [vmem:[%s169 + $0xd8] sm:$0xf]
      %v211 = vld [vmem:[%s169 + $0xdc] sm:$0xff]
      %v212 = vld [vmem:[%s169 + $0xe4] sm:$0xff]
      %v213 = vld [vmem:[%s169 + $0xec] sm:$0xf]
      %v214 = vld [vmem:[%s169 + $0xf0] sm:$0xff]
      %v215 = vld [vmem:[%s169 + $0xf8] sm:$0xff]
      %v216 = vld [vmem:[%s169 + $0x100] sm:$0xf]
      %v217 = vld [vmem:[%s169 + $0x104] sm:$0xff]
      %v218 = vld [vmem:[%s169 + $0x10c] sm:$0xff]
      %v219 = vld [vmem:[%s169 + $0x114] sm:$0xf]
      %v220 = vld [vmem:[%s169 + $0x118] sm:$0xff]
      %v221 = vld [vmem:[%s169 + $0x120] sm:$0xff]
      %v222 = vld [vmem:[%s169 + $0x128] sm:$0xf]
      %v223 = vld [vmem:[%s169 + $0x12c] sm:$0xff]
      %v224 = vld [vmem:[%s169 + $0x134] sm:$0xff]
      %v225 = vld [vmem:[%s169 + $0x13c] sm:$0xf]
      %v226 = vld [vmem:[%s1] sm:$0xf]
      %v227 = vld [vmem:[%s1 + $0x4] sm:$0xf]
      %v228 = vld [vmem:[%s1 + $0x8] sm:$0xf]
      %v229 = vld [vmem:[%s1 + $0xc] sm:$0xf]
      %v230 = vld [vmem:[%s1 + $0x10] sm:$0xf]
      %v231 = vld [vmem:[%s1 + $0x14] sm:$0xf]
      %v232 = vld [vmem:[%s1 + $0x18] sm:$0xf]
      %v233 = vld [vmem:[%s1 + $0x1c] sm:$0xf]
      %v234 = vld [vmem:[%s1 + $0x20] sm:$0xf]
      %v235 = vld [vmem:[%s1 + $0x24] sm:$0xf]
      %v236 = vld [vmem:[%s1 + $0x28] sm:$0xf]
      %v237 = vld [vmem:[%s1 + $0x2c] sm:$0xf]
      %v238 = vld [vmem:[%s1 + $0x30] sm:$0xf]
      %v239 = vld [vmem:[%s1 + $0x34] sm:$0xf]
      %v240 = vld [vmem:[%s1 + $0x38] sm:$0xf]
      %v241 = vld [vmem:[%s1 + $0x3c] sm:$0xf]
      %v242 = vld [vmem:[%s1 + $0x40] sm:$0xf]
      %v243 = vld [vmem:[%s1 + $0x44] sm:$0xf]
      %v244 = vld [vmem:[%s1 + $0x48] sm:$0xf]
      %v245 = vld [vmem:[%s1 + $0x4c] sm:$0xf]
      %v246 = vld [vmem:[%s1 + $0x50] sm:$0xf]
      %v247 = vld [vmem:[%s1 + $0x54] sm:$0xf]
      %v248 = vld [vmem:[%s1 + $0x58] sm:$0xf]
      %v249 = vld [vmem:[%s1 + $0x5c] sm:$0xf]
      %v250 = vld [vmem:[%s1 + $0x60] sm:$0xf]
      %v251 = vld [vmem:[%s1 + $0x64] sm:$0xf]
      %v252 = vld [vmem:[%s1 + $0x68] sm:$0xf]
      %v253 = vld [vmem:[%s1 + $0x6c] sm:$0xf]
      %v254 = vld [vmem:[%s1 + $0x70] sm:$0xf]
      %v255 = vld [vmem:[%s1 + $0x74] sm:$0xf]
      %v256 = vld [vmem:[%s1 + $0x78] sm:$0xf]
      %v257 = vld [vmem:[%s1 + $0x7c] sm:$0xf]
      %v258 = vld [vmem:[%s1 + $0x80] sm:$0xf]
      %v259 = vld [vmem:[%s1 + $0x84] sm:$0xf]
      %v260 = vld [vmem:[%s1 + $0x88] sm:$0xf]
      %v261 = vld [vmem:[%s1 + $0x8c] sm:$0xf]
      %v262 = vld [vmem:[%s1 + $0x90] sm:$0xf]
      %v263 = vld [vmem:[%s1 + $0x94] sm:$0xf]
      %v264 = vld [vmem:[%s1 + $0x98] sm:$0xf]
      %v265 = vld [vmem:[%s1 + $0x9c] sm:$0xf]
      %v266 = vld [vmem:[%s1 + $0xa0] sm:$0xf]
      %v267 = vld [vmem:[%s1 + $0xa4] sm:$0xf]
      %v268 = vld [vmem:[%s1 + $0xa8] sm:$0xf]
      %v269 = vld [vmem:[%s1 + $0xac] sm:$0xf]
      %v270 = vld [vmem:[%s1 + $0xb0] sm:$0xf]
      %v271 = vld [vmem:[%s1 + $0xb4] sm:$0xf]
      %v272 = vld [vmem:[%s1 + $0xb8] sm:$0xf]
      %v273 = vld [vmem:[%s1 + $0xbc] sm:$0xf]
      %v274 = vld [vmem:[%s1 + $0xc0] sm:$0xf]
      %v275 = vld [vmem:[%s1 + $0xc4] sm:$0xf]
      %v276 = vld [vmem:[%s1 + $0xc8] sm:$0xf]
      %v277 = vld [vmem:[%s1 + $0xcc] sm:$0xf]
      %v278 = vld [vmem:[%s1 + $0xd0] sm:$0xf]
      %v279 = vld [vmem:[%s1 + $0xd4] sm:$0xf]
      %v280 = vld [vmem:[%s1 + $0xd8] sm:$0xf]
      %v281 = vld [vmem:[%s1 + $0xdc] sm:$0xf]
      %v282 = vld [vmem:[%s1 + $0xe0] sm:$0xf]
      %v283 = vld [vmem:[%s1 + $0xe4] sm:$0xf]
      %v284 = vld [vmem:[%s1 + $0xe8] sm:$0xf]
      %v285 = vld [vmem:[%s1 + $0xec] sm:$0xf]
      %v286 = vld [vmem:[%s1 + $0xf0] sm:$0xf]
      %v287 = vld [vmem:[%s1 + $0xf4] sm:$0xf]
      %v288 = vld [vmem:[%s1 + $0xf8] sm:$0xf]
      %v289 = vld [vmem:[%s1 + $0xfc] sm:$0xf]
      %v290 = vld [vmem:[%s1 + $0x100] sm:$0xf]
      %v291 = vld [vmem:[%s1 + $0x104] sm:$0xf]
      %v292 = vld [vmem:[%s1 + $0x108] sm:$0xf]
      %v293 = vld [vmem:[%s1 + $0x10c] sm:$0xf]
      %v294 = vld [vmem:[%s1 + $0x110] sm:$0xf]
      %v295 = vld [vmem:[%s1 + $0x114] sm:$0xf]
      %v296 = vld [vmem:[%s1 + $0x118] sm:$0xf]
      %v297 = vld [vmem:[%s1 + $0x11c] sm:$0xf]
      %v298 = vld [vmem:[%s2] sm:$0x1]
      %v300 = vperm.slane %v298, 0
      %v350 = vunpack.c.l.b16 %v178
      %v351 = vunpack.c.h.b16 %v178
      %v352 = vunpack.c.l.b16 %v179
      %v353 = vunpack.c.h.b16 %v179
      %v354 = vunpack.c.l.b16 %v180
      %v355 = vunpack.c.l.b16 %v181
      %v356 = vunpack.c.h.b16 %v181
      %v357 = vunpack.c.l.b16 %v182
      %v358 = vunpack.c.h.b16 %v182
      %v359 = vunpack.c.l.b16 %v183
      %v360 = vunpack.c.l.b16 %v184
      %v361 = vunpack.c.h.b16 %v184
      %v362 = vunpack.c.l.b16 %v185
      %v363 = vunpack.c.h.b16 %v185
      %v364 = vunpack.c.l.b16 %v186
      %v365 = vunpack.c.l.b16 %v187
      %v366 = vunpack.c.h.b16 %v187
      %v367 = vunpack.c.l.b16 %v188
      %v368 = vunpack.c.h.b16 %v188
      %v369 = vunpack.c.l.b16 %v189
      %v370 = vunpack.c.l.b16 %v190
      %v371 = vunpack.c.h.b16 %v190
      %v372 = vunpack.c.l.b16 %v191
      %v373 = vunpack.c.h.b16 %v191
      %v374 = vunpack.c.l.b16 %v192
      %v375 = vunpack.c.l.b16 %v193
      %v376 = vunpack.c.h.b16 %v193
      %v377 = vunpack.c.l.b16 %v194
      %v378 = vunpack.c.h.b16 %v194
      %v379 = vunpack.c.l.b16 %v195
      %v380 = vunpack.c.l.b16 %v196
      %v381 = vunpack.c.h.b16 %v196
      %v382 = vunpack.c.l.b16 %v197
      %v383 = vunpack.c.h.b16 %v197
      %v384 = vunpack.c.l.b16 %v198
      %v385 = vunpack.c.l.b16 %v199
      %v386 = vunpack.c.h.b16 %v199
      %v387 = vunpack.c.l.b16 %v200
      %v388 = vunpack.c.h.b16 %v200
      %v389 = vunpack.c.l.b16 %v201
      %v390 = vunpack.c.l.b16 %v202
      %v391 = vunpack.c.h.b16 %v202
      %v392 = vunpack.c.l.b16 %v203
      %v393 = vunpack.c.h.b16 %v203
      %v394 = vunpack.c.l.b16 %v204
      %v395 = vunpack.c.l.b16 %v205
      %v396 = vunpack.c.h.b16 %v205
      %v397 = vunpack.c.l.b16 %v206
      %v398 = vunpack.c.h.b16 %v206
      %v399 = vunpack.c.l.b16 %v207
      %v400 = vunpack.c.l.b16 %v208
      %v401 = vunpack.c.h.b16 %v208
      %v402 = vunpack.c.l.b16 %v209
      %v403 = vunpack.c.h.b16 %v209
      %v404 = vunpack.c.l.b16 %v210
      %v405 = vunpack.c.l.b16 %v211
      %v406 = vunpack.c.h.b16 %v211
      %v407 = vunpack.c.l.b16 %v212
      %v408 = vunpack.c.h.b16 %v212
      %v409 = vunpack.c.l.b16 %v213
      %v410 = vunpack.c.l.b16 %v214
      %v411 = vunpack.c.h.b16 %v214
      %v412 = vunpack.c.l.b16 %v215
      %v413 = vunpack.c.h.b16 %v215
      %v414 = vunpack.c.l.b16 %v216
      %v415 = vunpack.c.l.b16 %v217
      %v416 = vunpack.c.h.b16 %v217
      %v417 = vunpack.c.l.b16 %v218
      %v418 = vunpack.c.h.b16 %v218
      %v419 = vunpack.c.l.b16 %v219
      %v420 = vunpack.c.l.b16 %v220
      %v421 = vunpack.c.h.b16 %v220
      %v422 = vunpack.c.l.b16 %v221
      %v423 = vunpack.c.h.b16 %v221
      %v424 = vunpack.c.l.b16 %v222
      %v425 = vunpack.c.l.b16 %v223
      %v426 = vunpack.c.h.b16 %v223
      %v427 = vunpack.c.l.b16 %v224
      %v428 = vunpack.c.h.b16 %v224
      %v429 = vunpack.c.l.b16 %v225
      %v430 = vpack.c.b16 %v355, %v350
      %v431 = vpack.c.b16 %v356, %v351
      %v432 = vpack.c.b16 %v357, %v352
      %v433 = vpack.c.b16 %v358, %v353
      %v434 = vpack.c.b16 %v359, %v354
      %v435 = vpack.c.b16 %v365, %v360
      %v436 = vpack.c.b16 %v366, %v361
      %v437 = vpack.c.b16 %v367, %v362
      %v438 = vpack.c.b16 %v368, %v363
      %v439 = vpack.c.b16 %v369, %v364
      %v440 = vpack.c.b16 %v375, %v370
      %v441 = vpack.c.b16 %v376, %v371
      %v442 = vpack.c.b16 %v377, %v372
      %v443 = vpack.c.b16 %v378, %v373
      %v444 = vpack.c.b16 %v379, %v374
      %v445 = vpack.c.b16 %v385, %v380
      %v446 = vpack.c.b16 %v386, %v381
      %v447 = vpack.c.b16 %v387, %v382
      %v448 = vpack.c.b16 %v388, %v383
      %v449 = vpack.c.b16 %v389, %v384
      %v450 = vpack.c.b16 %v395, %v390
      %v451 = vpack.c.b16 %v396, %v391
      %v452 = vpack.c.b16 %v397, %v392
      %v453 = vpack.c.b16 %v398, %v393
      %v454 = vpack.c.b16 %v399, %v394
      %v455 = vpack.c.b16 %v405, %v400
      %v456 = vpack.c.b16 %v406, %v401
      %v457 = vpack.c.b16 %v407, %v402
      %v458 = vpack.c.b16 %v408, %v403
      %v459 = vpack.c.b16 %v409, %v404
      %v460 = vpack.c.b16 %v415, %v410
      %v461 = vpack.c.b16 %v416, %v411
      %v462 = vpack.c.b16 %v417, %v412
      %v463 = vpack.c.b16 %v418, %v413
      %v464 = vpack.c.b16 %v419, %v414
      %v465 = vpack.c.b16 %v425, %v420
      %v466 = vpack.c.b16 %v426, %v421
      %v467 = vpack.c.b16 %v427, %v422
      %v468 = vpack.c.b16 %v428, %v423
      %v469 = vpack.c.b16 %v429, %v424
      %v574 = vunpack.c.l.b16 %v226
      %v575 = vunpack.c.l.b16 %v227
      %v576 = vunpack.c.l.b16 %v228
      %v577 = vunpack.c.l.b16 %v229
      %v578 = vunpack.c.l.b16 %v230
      %v579 = vunpack.c.l.b16 %v231
      %v580 = vunpack.c.l.b16 %v232
      %v581 = vunpack.c.l.b16 %v233
      %v582 = vunpack.c.l.b16 %v234
      %v583 = vunpack.c.l.b16 %v235
      %v584 = vunpack.c.l.b16 %v236
      %v585 = vunpack.c.l.b16 %v237
      %v586 = vunpack.c.l.b16 %v238
      %v587 = vunpack.c.l.b16 %v239
      %v588 = vunpack.c.l.b16 %v240
      %v589 = vunpack.c.l.b16 %v241
      %v590 = vunpack.c.l.b16 %v242
      %v591 = vunpack.c.l.b16 %v243
      %v592 = vunpack.c.l.b16 %v244
      %v593 = vunpack.c.l.b16 %v245
      %v594 = vunpack.c.l.b16 %v246
      %v595 = vunpack.c.l.b16 %v247
      %v596 = vunpack.c.l.b16 %v248
      %v597 = vunpack.c.l.b16 %v249
      %v598 = vunpack.c.l.b16 %v250
      %v599 = vunpack.c.l.b16 %v251
      %v600 = vunpack.c.l.b16 %v252
      %v601 = vunpack.c.l.b16 %v253
      %v602 = vunpack.c.l.b16 %v254
      %v603 = vunpack.c.l.b16 %v255
      %v604 = vunpack.c.l.b16 %v256
      %v605 = vunpack.c.l.b16 %v257
      %v606 = vunpack.c.l.b16 %v258
      %v607 = vunpack.c.l.b16 %v259
      %v608 = vunpack.c.l.b16 %v260
      %v609 = vunpack.c.l.b16 %v261
      %v610 = vunpack.c.l.b16 %v262
      %v611 = vunpack.c.l.b16 %v263
      %v612 = vunpack.c.l.b16 %v264
      %v613 = vunpack.c.l.b16 %v265
      %v614 = vunpack.c.l.b16 %v266
      %v615 = vunpack.c.l.b16 %v267
      %v616 = vunpack.c.l.b16 %v268
      %v617 = vunpack.c.l.b16 %v269
      %v618 = vunpack.c.l.b16 %v270
      %v619 = vunpack.c.l.b16 %v271
      %v620 = vunpack.c.l.b16 %v272
      %v621 = vunpack.c.l.b16 %v273
      %v622 = vunpack.c.l.b16 %v274
      %v623 = vunpack.c.l.b16 %v275
      %v624 = vunpack.c.l.b16 %v276
      %v625 = vunpack.c.l.b16 %v277
      %v626 = vunpack.c.l.b16 %v278
      %v627 = vunpack.c.l.b16 %v279
      %v628 = vunpack.c.l.b16 %v280
      %v629 = vunpack.c.l.b16 %v281
      %v630 = vunpack.c.l.b16 %v282
      %v631 = vunpack.c.l.b16 %v283
      %v632 = vunpack.c.l.b16 %v284
      %v633 = vunpack.c.l.b16 %v285
      %v634 = vunpack.c.l.b16 %v286
      %v635 = vunpack.c.l.b16 %v287
      %v636 = vunpack.c.l.b16 %v288
      %v637 = vunpack.c.l.b16 %v289
      %v638 = vunpack.c.l.b16 %v290
      %v639 = vunpack.c.l.b16 %v291
      %v640 = vunpack.c.l.b16 %v292
      %v641 = vunpack.c.l.b16 %v293
      %v642 = vunpack.c.l.b16 %v294
      %v643 = vunpack.c.l.b16 %v295
      %v644 = vunpack.c.l.b16 %v296
      %v645 = vunpack.c.l.b16 %v297
      %v646 = vpack.c.b16 %v575, %v574
      %v647 = vpack.c.b16 %v577, %v576
      %v648 = vpack.c.b16 %v579, %v578
      %v649 = vpack.c.b16 %v581, %v580
      %v650 = vpack.c.b16 %v583, %v582
      %v651 = vpack.c.b16 %v585, %v584
      %v652 = vpack.c.b16 %v587, %v586
      %v653 = vpack.c.b16 %v589, %v588
      %v654 = vpack.c.b16 %v591, %v590
      %v655 = vpack.c.b16 %v593, %v592
      %v656 = vpack.c.b16 %v595, %v594
      %v657 = vpack.c.b16 %v597, %v596
      %v658 = vpack.c.b16 %v599, %v598
      %v659 = vpack.c.b16 %v601, %v600
      %v660 = vpack.c.b16 %v603, %v602
      %v661 = vpack.c.b16 %v605, %v604
      %v662 = vpack.c.b16 %v607, %v606
      %v663 = vpack.c.b16 %v609, %v608
      %v664 = vpack.c.b16 %v611, %v610
      %v665 = vpack.c.b16 %v613, %v612
      %v666 = vpack.c.b16 %v615, %v614
      %v667 = vpack.c.b16 %v617, %v616
      %v668 = vpack.c.b16 %v619, %v618
      %v669 = vpack.c.b16 %v621, %v620
      %v670 = vpack.c.b16 %v623, %v622
      %v671 = vpack.c.b16 %v625, %v624
      %v672 = vpack.c.b16 %v627, %v626
      %v673 = vpack.c.b16 %v629, %v628
      %v674 = vpack.c.b16 %v631, %v630
      %v675 = vpack.c.b16 %v633, %v632
      %v676 = vpack.c.b16 %v635, %v634
      %v677 = vpack.c.b16 %v637, %v636
      %v678 = vpack.c.b16 %v639, %v638
      %v679 = vpack.c.b16 %v641, %v640
      %v680 = vpack.c.b16 %v643, %v642
      %v681 = vpack.c.b16 %v645, %v644
      %vm718 = vcmask 523264
      %v720 = vsel %vm718, %v434, 0
      %v723 = vsel %vm718, %v439, 0
      %v726 = vsel %vm718, %v444, 0
      %v729 = vsel %vm718, %v449, 0
      %v732 = vsel %vm718, %v454, 0
      %v735 = vsel %vm718, %v459, 0
      %v738 = vsel %vm718, %v464, 0
      %v741 = vsel %vm718, %v469, 0
      %743 = vmatpush.bf16.msra.mxu0 %v653
      %744 = vmatpush.bf16.msra.mxu0 %v652
      %745 = vmatpush.bf16.msra.mxu0 %v651
      %746 = vmatpush.bf16.msra.mxu0 %v650
      %747 = vmatpush.bf16.msra.mxu0 %v649
      %748 = vmatpush.bf16.msra.mxu0 %v648
      %749 = vmatpush.bf16.msra.mxu0 %v647
      %750 = vmatpush.bf16.msra.mxu0 %v646
      %751 = vmatmul.bf16.gmra.mxu0 %v430
      %v752 = vpop.f32.mrf.mxu0
      %v753 = vadd.f32 %v300, %v752
      %v754 = vpop.f32.mrf.mxu0
      %v755 = vadd.f32 %v300, %v754
      %756 = vmatmul.bf16.gmra.mxu0 %v435
      %v757 = vpop.f32.mrf.mxu0
      %v758 = vadd.f32 %v300, %v757
      %v759 = vpop.f32.mrf.mxu0
      %v760 = vadd.f32 %v300, %v759
      %761 = vmatmul.bf16.gmra.mxu0 %v440
      %v762 = vpop.f32.mrf.mxu0
      %v763 = vadd.f32 %v300, %v762
      %v764 = vpop.f32.mrf.mxu0
      %v765 = vadd.f32 %v300, %v764
      %766 = vmatmul.bf16.gmra.mxu0 %v445
      %v767 = vpop.f32.mrf.mxu0
      %v768 = vadd.f32 %v300, %v767
      %v769 = vpop.f32.mrf.mxu0
      %v770 = vadd.f32 %v300, %v769
      %771 = vmatmul.bf16.gmra.mxu0 %v450
      %v772 = vpop.f32.mrf.mxu0
      %v773 = vadd.f32 %v300, %v772
      %v774 = vpop.f32.mrf.mxu0
      %v775 = vadd.f32 %v300, %v774
      %776 = vmatmul.bf16.gmra.mxu0 %v455
      %v777 = vpop.f32.mrf.mxu0
      %v778 = vadd.f32 %v300, %v777
      %v779 = vpop.f32.mrf.mxu0
      %v780 = vadd.f32 %v300, %v779
      %781 = vmatmul.bf16.gmra.mxu0 %v460
      %v782 = vpop.f32.mrf.mxu0
      %v783 = vadd.f32 %v300, %v782
      %v784 = vpop.f32.mrf.mxu0
      %v785 = vadd.f32 %v300, %v784
      %786 = vmatmul.bf16.gmra.mxu0 %v465
      %v787 = vpop.f32.mrf.mxu0
      %v788 = vadd.f32 %v300, %v787
      %v789 = vpop.f32.mrf.mxu0
      %v790 = vadd.f32 %v300, %v789
      %791 = vdwg.mxu0
      %792 = vmatpush.bf16.msra.mxu0 %v661
      %793 = vmatpush.bf16.msra.mxu0 %v660
      %794 = vmatpush.bf16.msra.mxu0 %v659
      %795 = vmatpush.bf16.msra.mxu0 %v658
      %796 = vmatpush.bf16.msra.mxu0 %v657
      %797 = vmatpush.bf16.msra.mxu0 %v656
      %798 = vmatpush.bf16.msra.mxu0 %v655
      %799 = vmatpush.bf16.msra.mxu0 %v654
      %800 = vmatmul.bf16.gmra.mxu0 %v431
      %v801 = vpop.f32.mrf.mxu0
      %v802 = vadd.f32 %v753, %v801
      %v803 = vpop.f32.mrf.mxu0
      %v804 = vadd.f32 %v755, %v803
      %805 = vmatmul.bf16.gmra.mxu0 %v436
      %v806 = vpop.f32.mrf.mxu0
      %v807 = vadd.f32 %v758, %v806
      %v808 = vpop.f32.mrf.mxu0
      %v809 = vadd.f32 %v760, %v808
      %810 = vmatmul.bf16.gmra.mxu0 %v441
      %v811 = vpop.f32.mrf.mxu0
      %v812 = vadd.f32 %v763, %v811
      %v813 = vpop.f32.mrf.mxu0
      %v814 = vadd.f32 %v765, %v813
      %815 = vmatmul.bf16.gmra.mxu0 %v446
      %v816 = vpop.f32.mrf.mxu0
      %v817 = vadd.f32 %v768, %v816
      %v818 = vpop.f32.mrf.mxu0
      %v819 = vadd.f32 %v770, %v818
      %820 = vmatmul.bf16.gmra.mxu0 %v451
      %v821 = vpop.f32.mrf.mxu0
      %v822 = vadd.f32 %v773, %v821
      %v823 = vpop.f32.mrf.mxu0
      %v824 = vadd.f32 %v775, %v823
      %825 = vmatmul.bf16.gmra.mxu0 %v456
      %v826 = vpop.f32.mrf.mxu0
      %v827 = vadd.f32 %v778, %v826
      %v828 = vpop.f32.mrf.mxu0
      %v829 = vadd.f32 %v780, %v828
      %830 = vmatmul.bf16.gmra.mxu0 %v461
      %v831 = vpop.f32.mrf.mxu0
      %v832 = vadd.f32 %v783, %v831
      %v833 = vpop.f32.mrf.mxu0
      %v834 = vadd.f32 %v785, %v833
      %835 = vmatmul.bf16.gmra.mxu0 %v466
      %v836 = vpop.f32.mrf.mxu0
      %v837 = vadd.f32 %v788, %v836
      %v838 = vpop.f32.mrf.mxu0
      %v839 = vadd.f32 %v790, %v838
      %840 = vdwg.mxu0
      %841 = vmatpush.bf16.msra.mxu0 %v669
      %842 = vmatpush.bf16.msra.mxu0 %v668
      %843 = vmatpush.bf16.msra.mxu0 %v667
      %844 = vmatpush.bf16.msra.mxu0 %v666
      %845 = vmatpush.bf16.msra.mxu0 %v665
      %846 = vmatpush.bf16.msra.mxu0 %v664
      %847 = vmatpush.bf16.msra.mxu0 %v663
      %848 = vmatpush.bf16.msra.mxu0 %v662
      %849 = vmatmul.bf16.gmra.mxu0 %v432
      %v850 = vpop.f32.mrf.mxu0
      %v851 = vadd.f32 %v802, %v850
      %v852 = vpop.f32.mrf.mxu0
      %v853 = vadd.f32 %v804, %v852
      %854 = vmatmul.bf16.gmra.mxu0 %v437
      %v855 = vpop.f32.mrf.mxu0
      %v856 = vadd.f32 %v807, %v855
      %v857 = vpop.f32.mrf.mxu0
      %v858 = vadd.f32 %v809, %v857
      %859 = vmatmul.bf16.gmra.mxu0 %v442
      %v860 = vpop.f32.mrf.mxu0
      %v861 = vadd.f32 %v812, %v860
      %v862 = vpop.f32.mrf.mxu0
      %v863 = vadd.f32 %v814, %v862
      %864 = vmatmul.bf16.gmra.mxu0 %v447
      %v865 = vpop.f32.mrf.mxu0
      %v866 = vadd.f32 %v817, %v865
      %v867 = vpop.f32.mrf.mxu0
      %v868 = vadd.f32 %v819, %v867
      %869 = vmatmul.bf16.gmra.mxu0 %v452
      %v870 = vpop.f32.mrf.mxu0
      %v871 = vadd.f32 %v822, %v870
      %v872 = vpop.f32.mrf.mxu0
      %v873 = vadd.f32 %v824, %v872
      %874 = vmatmul.bf16.gmra.mxu0 %v457
      %v875 = vpop.f32.mrf.mxu0
      %v876 = vadd.f32 %v827, %v875
      %v877 = vpop.f32.mrf.mxu0
      %v878 = vadd.f32 %v829, %v877
      %879 = vmatmul.bf16.gmra.mxu0 %v462
      %v880 = vpop.f32.mrf.mxu0
      %v881 = vadd.f32 %v832, %v880
      %v882 = vpop.f32.mrf.mxu0
      %v883 = vadd.f32 %v834, %v882
      %884 = vmatmul.bf16.gmra.mxu0 %v467
      %v885 = vpop.f32.mrf.mxu0
      %v886 = vadd.f32 %v837, %v885
      %v887 = vpop.f32.mrf.mxu0
      %v888 = vadd.f32 %v839, %v887
      %889 = vdwg.mxu0
      %890 = vmatpush.bf16.msra.mxu0 %v677
      %891 = vmatpush.bf16.msra.mxu0 %v676
      %892 = vmatpush.bf16.msra.mxu0 %v675
      %893 = vmatpush.bf16.msra.mxu0 %v674
      %894 = vmatpush.bf16.msra.mxu0 %v673
      %895 = vmatpush.bf16.msra.mxu0 %v672
      %896 = vmatpush.bf16.msra.mxu0 %v671
      %897 = vmatpush.bf16.msra.mxu0 %v670
      %898 = vmatmul.bf16.gmra.mxu0 %v433
      %v899 = vpop.f32.mrf.mxu0
      %v900 = vadd.f32 %v851, %v899
      %v901 = vpop.f32.mrf.mxu0
      %v902 = vadd.f32 %v853, %v901
      %903 = vmatmul.bf16.gmra.mxu0 %v438
      %v904 = vpop.f32.mrf.mxu0
      %v905 = vadd.f32 %v856, %v904
      %v906 = vpop.f32.mrf.mxu0
      %v907 = vadd.f32 %v858, %v906
      %908 = vmatmul.bf16.gmra.mxu0 %v443
      %v909 = vpop.f32.mrf.mxu0
      %v910 = vadd.f32 %v861, %v909
      %v911 = vpop.f32.mrf.mxu0
      %v912 = vadd.f32 %v863, %v911
      %913 = vmatmul.bf16.gmra.mxu0 %v448
      %v914 = vpop.f32.mrf.mxu0
      %v915 = vadd.f32 %v866, %v914
      %v916 = vpop.f32.mrf.mxu0
      %v917 = vadd.f32 %v868, %v916
      %918 = vmatmul.bf16.gmra.mxu0 %v453
      %v919 = vpop.f32.mrf.mxu0
      %v920 = vadd.f32 %v871, %v919
      %v921 = vpop.f32.mrf.mxu0
      %v922 = vadd.f32 %v873, %v921
      %923 = vmatmul.bf16.gmra.mxu0 %v458
      %v924 = vpop.f32.mrf.mxu0
      %v925 = vadd.f32 %v876, %v924
      %v926 = vpop.f32.mrf.mxu0
      %v927 = vadd.f32 %v878, %v926
      %928 = vmatmul.bf16.gmra.mxu0 %v463
      %v929 = vpop.f32.mrf.mxu0
      %v930 = vadd.f32 %v881, %v929
      %v931 = vpop.f32.mrf.mxu0
      %v932 = vadd.f32 %v883, %v931
      %933 = vmatmul.bf16.gmra.mxu0 %v468
      %v934 = vpop.f32.mrf.mxu0
      %v935 = vadd.f32 %v886, %v934
      %v936 = vpop.f32.mrf.mxu0
      %v937 = vadd.f32 %v888, %v936
      %938 = vdwg.mxu0
      %939 = vmatpush.bf16.msra.mxu0 0
      %940 = vmatpush.bf16.msra.mxu0 0
      %941 = vmatpush.bf16.msra.mxu0 0
      %942 = vmatpush.bf16.msra.mxu0 0
      %943 = vmatpush.bf16.msra.mxu0 %v681
      %944 = vmatpush.bf16.msra.mxu0 %v680
      %945 = vmatpush.bf16.msra.mxu0 %v679
      %946 = vmatpush.bf16.msra.mxu0 %v678
      %947 = vmatmul.bf16.gmra.mxu0 %v720
      %v948 = vpop.f32.mrf.mxu0
      %v949 = vadd.f32 %v900, %v948
      %v950 = vpop.f32.mrf.mxu0
      %v951 = vadd.f32 %v902, %v950
      %952 = vmatmul.bf16.gmra.mxu0 %v723
      %v953 = vpop.f32.mrf.mxu0
      %v954 = vadd.f32 %v905, %v953
      %v955 = vpop.f32.mrf.mxu0
      %v956 = vadd.f32 %v907, %v955
      %957 = vmatmul.bf16.gmra.mxu0 %v726
      %v958 = vpop.f32.mrf.mxu0
      %v959 = vadd.f32 %v910, %v958
      %v960 = vpop.f32.mrf.mxu0
      %v961 = vadd.f32 %v912, %v960
      %962 = vmatmul.bf16.gmra.mxu0 %v729
      %v963 = vpop.f32.mrf.mxu0
      %v964 = vadd.f32 %v915, %v963
      %v965 = vpop.f32.mrf.mxu0
      %v966 = vadd.f32 %v917, %v965
      %967 = vmatmul.bf16.gmra.mxu0 %v732
      %v968 = vpop.f32.mrf.mxu0
      %v969 = vadd.f32 %v920, %v968
      %v970 = vpop.f32.mrf.mxu0
      %v971 = vadd.f32 %v922, %v970
      %972 = vmatmul.bf16.gmra.mxu0 %v735
      %v973 = vpop.f32.mrf.mxu0
      %v974 = vadd.f32 %v925, %v973
      %v975 = vpop.f32.mrf.mxu0
      %v976 = vadd.f32 %v927, %v975
      %977 = vmatmul.bf16.gmra.mxu0 %v738
      %v978 = vpop.f32.mrf.mxu0
      %v979 = vadd.f32 %v930, %v978
      %v980 = vpop.f32.mrf.mxu0
      %v981 = vadd.f32 %v932, %v980
      %982 = vmatmul.bf16.gmra.mxu0 %v741
      %v983 = vpop.f32.mrf.mxu0
      %v984 = vadd.f32 %v935, %v983
      %v985 = vpop.f32.mrf.mxu0
      %v986 = vadd.f32 %v937, %v985
      %987 = vdwg.mxu0
      %vm988 = vcmp.gt.f32.partialorder %v949, 0.0
      %vm989 = vcmp.gt.f32.partialorder %v951, 0.0
      %vm990 = vcmp.gt.f32.partialorder %v954, 0.0
      %vm991 = vcmp.gt.f32.partialorder %v956, 0.0
      %vm992 = vcmp.gt.f32.partialorder %v959, 0.0
      %vm993 = vcmp.gt.f32.partialorder %v961, 0.0
      %vm994 = vcmp.gt.f32.partialorder %v964, 0.0
      %vm995 = vcmp.gt.f32.partialorder %v966, 0.0
      %vm996 = vcmp.gt.f32.partialorder %v969, 0.0
      %vm997 = vcmp.gt.f32.partialorder %v971, 0.0
      %vm998 = vcmp.gt.f32.partialorder %v974, 0.0
      %vm999 = vcmp.gt.f32.partialorder %v976, 0.0
      %vm1000 = vcmp.gt.f32.partialorder %v979, 0.0
      %vm1001 = vcmp.gt.f32.partialorder %v981, 0.0
      %vm1002 = vcmp.gt.f32.partialorder %v984, 0.0
      %vm1003 = vcmp.gt.f32.partialorder %v986, 0.0
      %v1004 = vmul.f32 %v949, 0.01
      %v1005 = vmul.f32 %v951, 0.01
      %v1006 = vmul.f32 %v954, 0.01
      %v1007 = vmul.f32 %v956, 0.01
      %v1008 = vmul.f32 %v959, 0.01
      %v1009 = vmul.f32 %v961, 0.01
      %v1010 = vmul.f32 %v964, 0.01
      %v1011 = vmul.f32 %v966, 0.01
      %v1012 = vmul.f32 %v969, 0.01
      %v1013 = vmul.f32 %v971, 0.01
      %v1014 = vmul.f32 %v974, 0.01
      %v1015 = vmul.f32 %v976, 0.01
      %v1016 = vmul.f32 %v979, 0.01
      %v1017 = vmul.f32 %v981, 0.01
      %v1018 = vmul.f32 %v984, 0.01
      %v1019 = vmul.f32 %v986, 0.01
      %v1020 = vsel %vm988, %v949, %v1004
      %v1021 = vsel %vm989, %v951, %v1005
      %v1022 = vsel %vm990, %v954, %v1006
      %v1023 = vsel %vm991, %v956, %v1007
      %v1024 = vsel %vm992, %v959, %v1008
      %v1025 = vsel %vm993, %v961, %v1009
      %v1026 = vsel %vm994, %v964, %v1010
      %v1027 = vsel %vm995, %v966, %v1011
      %v1028 = vsel %vm996, %v969, %v1012
      %v1029 = vsel %vm997, %v971, %v1013
      %v1030 = vsel %vm998, %v974, %v1014
      %v1031 = vsel %vm999, %v976, %v1015
      %v1032 = vsel %vm1000, %v979, %v1016
      %v1033 = vsel %vm1001, %v981, %v1017
      %v1034 = vsel %vm1002, %v984, %v1018
      %v1035 = vsel %vm1003, %v986, %v1019
      %1036 = vst [vmem:[%s175] sm:$0xff] %v1020
      %1037 = vst [vmem:[%s175 + $0x8] sm:$0xff] %v1021
      %1038 = vst [vmem:[%s175 + $0x10] sm:$0xff] %v1022
      %1039 = vst [vmem:[%s175 + $0x18] sm:$0xff] %v1023
      %1040 = vst [vmem:[%s175 + $0x20] sm:$0xff] %v1024
      %1041 = vst [vmem:[%s175 + $0x28] sm:$0xff] %v1025
      %1042 = vst [vmem:[%s175 + $0x30] sm:$0xff] %v1026
      %1043 = vst [vmem:[%s175 + $0x38] sm:$0xff] %v1027
      %1044 = vst [vmem:[%s175 + $0x40] sm:$0xff] %v1028
      %1045 = vst [vmem:[%s175 + $0x48] sm:$0xff] %v1029
      %1046 = vst [vmem:[%s175 + $0x50] sm:$0xff] %v1030
      %1047 = vst [vmem:[%s175 + $0x58] sm:$0xff] %v1031
      %1048 = vst [vmem:[%s175 + $0x60] sm:$0xff] %v1032
      %1049 = vst [vmem:[%s175 + $0x68] sm:$0xff] %v1033
      %1050 = vst [vmem:[%s175 + $0x70] sm:$0xff] %v1034
      %1051 = vst [vmem:[%s175 + $0x78] sm:$0xff] %v1035
      %s1052 = smul.u32 16, %s14
      %p1053 = scmp.lt.s32.totalorder %s1052, 31
      %s1054 = scalar_select %p1053, %s1052, 31
      %s1055 = smul.addr %s1054, 8
      %s1056 = scalar_lea.vmem %s3, %s1055
      // Predicated region
      $region33: #{distill_cnn_forward.7} parent=31 // pred_check
        %p1057 = pneg %p100
      $region34: #{distill_cnn_forward.7} parent=31 // pred_check_branch
        %1059 = sbr.rel (%p1057) target = $region36
      $region35: #{distill_cnn_forward.7} parent=31 // pred_region
        %s1060 = smul.u32 16, %s14
      $region36: #{distill_cnn_forward.7} parent=31 // pred_fallthru
        _
    $region32: #{distill_cnn_forward.7} parent=5 // pred_fallthru
      _
    %p1061 = scmp.le.s32.totalorder 2, %s9
    // Predicated region
    $region37: #{distill_cnn_forward.7} parent=5 // pred_check
      %p1062 = pneg %p1061
    $region38: #{distill_cnn_forward.7} parent=5 // pred_check_branch
      %1064 = sbr.rel (%p1062) target = $region40
    $region39: #{distill_cnn_forward.7} parent=5 // pred_region
      %s1065 = ssub.s32 %s9, 2
      // Predicated region
      $region41: #{distill_cnn_forward.7} parent=39 // pred_check
        %p1066 = pneg %p106
      $region42: #{distill_cnn_forward.7} parent=39 // pred_check_branch
        %1068 = sbr.rel (%p1066) target = $region44
      $region43: #{distill_cnn_forward.7} parent=39 // pred_region
        %s1069 = smul.u32 16, %s15
        %p1070 = scmp.lt.s32.totalorder %s1069, 31
        %s1071 = scalar_select %p1070, %s1069, 31
        %s1072 = smul.addr %s1071, 8
        %s1073 = scalar_lea.vmem %s3, %s1072
      $region44: #{distill_cnn_forward.7} parent=39 // pred_fallthru
        _
    $region40: #{distill_cnn_forward.7} parent=5 // pred_fallthru
      _
  $region6: #{distill_cnn_forward.7} parent=0 // loop_footer
    %s13 = sadd.s32 1, %s9
  $region7: #{distill_cnn_forward.7} parent=0 // loop_footer_branch
    %8 = sbr.rel target = $region3
  $region8: #{distill_cnn_forward.7} parent=0 // loop_exit
    _

// kernel: distill_cnn_forward.8
$region0: #{distill_cnn_forward.8}
  #allocation0 [shape = 'u32[]', space=smem, size = 0x4, offset = 0x4, fixed_abs, tag = 'smem constant byte address 0x4 - core index']
  #allocation1 [shape = 'u32[72,128]{1,0:T(1,128)}', space=vmem, size = 0x9000, scoped, tag = 'internal scratch']
  %s0 = inlined_call_operand.vmem [shape: f32[8,2,8,256], index: 0, kind: input, shape index: {}]
  %s1 = inlined_call_operand.vmem [shape: f32[8,8,128], index: 1, kind: output, shape index: {}]
  %s2 = sld [smem:[#allocation0]]
  $region14: #{distill_cnn_forward.8} parent=0
    _
  %s4 = ssub.s32 1, %s2
  %s5 = scalar_select 0, %s4, %s2
  // Predicated region
  $region2: #{distill_cnn_forward.8} parent=0 // pred_check
    _
  $region3: #{distill_cnn_forward.8} parent=0 // pred_check_branch
    %7 = sbr.rel (0) target = $region5
  $region4: #{distill_cnn_forward.8} parent=0 // pred_region
    _
  $region5: #{distill_cnn_forward.8} parent=0 // pred_fallthru
    _
  %v8 = vld [vmem:[%s0] sm:$0xff]
  %v9 = vld [vmem:[%s0 + $0x8] sm:$0xff]
  %v10 = vld [vmem:[%s0 + $0x10] sm:$0xff]
  %v11 = vld [vmem:[%s0 + $0x18] sm:$0xff]
  %v12 = vld [vmem:[%s0 + $0x20] sm:$0xff]
  %v13 = vld [vmem:[%s0 + $0x28] sm:$0xff]
  %v14 = vld [vmem:[%s0 + $0x30] sm:$0xff]
  %v15 = vld [vmem:[%s0 + $0x38] sm:$0xff]
  %v16 = vld [vmem:[%s0 + $0x40] sm:$0xff]
  %v17 = vld [vmem:[%s0 + $0x48] sm:$0xff]
  %v18 = vld [vmem:[%s0 + $0x50] sm:$0xff]
  %v19 = vld [vmem:[%s0 + $0x58] sm:$0xff]
  %v20 = vld [vmem:[%s0 + $0x60] sm:$0xff]
  %v21 = vld [vmem:[%s0 + $0x68] sm:$0xff]
  %v22 = vld [vmem:[%s0 + $0x70] sm:$0xff]
  %v23 = vld [vmem:[%s0 + $0x78] sm:$0xff]
  %v24 = vld [vmem:[%s0 + $0x80] sm:$0xff]
  %v25 = vld [vmem:[%s0 + $0x88] sm:$0xff]
  %v26 = vld [vmem:[%s0 + $0x90] sm:$0xff]
  %v27 = vld [vmem:[%s0 + $0x98] sm:$0xff]
  %v28 = vld [vmem:[%s0 + $0xa0] sm:$0xff]
  %v29 = vld [vmem:[%s0 + $0xa8] sm:$0xff]
  %v30 = vld [vmem:[%s0 + $0xb0] sm:$0xff]
  %v31 = vld [vmem:[%s0 + $0xb8] sm:$0xff]
  %v32 = vld [vmem:[%s0 + $0xc0] sm:$0xff]
  %v33 = vld [vmem:[%s0 + $0xc8] sm:$0xff]
  %v34 = vld [vmem:[%s0 + $0xd0] sm:$0xff]
  %v35 = vld [vmem:[%s0 + $0xd8] sm:$0xff]
  %v36 = vld [vmem:[%s0 + $0xe0] sm:$0xff]
  %v37 = vld [vmem:[%s0 + $0xe8] sm:$0xff]
  %v38 = vld [vmem:[%s0 + $0xf0] sm:$0xff]
  %v39 = vld [vmem:[%s0 + $0xf8] sm:$0xff]
  %v40 = vmax.f32 %v8, %v10
  %v41 = vmax.f32 %v9, %v11
  %v42 = vmax.f32 %v12, %v14
  %v43 = vmax.f32 %v13, %v15
  %v44 = vmax.f32 %v16, %v18
  %v45 = vmax.f32 %v17, %v19
  %v46 = vmax.f32 %v20, %v22
  %v47 = vmax.f32 %v21, %v23
  %v48 = vmax.f32 %v24, %v26
  %v49 = vmax.f32 %v25, %v27
  %v50 = vmax.f32 %v28, %v30
  %v51 = vmax.f32 %v29, %v31
  %v52 = vmax.f32 %v32, %v34
  %v53 = vmax.f32 %v33, %v35
  %v54 = vmax.f32 %v36, %v38
  %v55 = vmax.f32 %v37, %v39
  %v56 = vmax.f32 %v40, %v41
  %v57 = vmax.f32 %v42, %v43
  %v58 = vmax.f32 %v44, %v45
  %v59 = vmax.f32 %v46, %v47
  %v60 = vmax.f32 %v48, %v49
  %v61 = vmax.f32 %v50, %v51
  %v62 = vmax.f32 %v52, %v53
  %v63 = vmax.f32 %v54, %v55
  %64 = vst [vmem:[%s1] sm:$0xff] %v56
  %65 = vst [vmem:[%s1 + $0x8] sm:$0xff] %v57
  %66 = vst [vmem:[%s1 + $0x10] sm:$0xff] %v58
  %67 = vst [vmem:[%s1 + $0x18] sm:$0xff] %v59
  %68 = vst [vmem:[%s1 + $0x20] sm:$0xff] %v60
  %69 = vst [vmem:[%s1 + $0x28] sm:$0xff] %v61
  %70 = vst [vmem:[%s1 + $0x30] sm:$0xff] %v62
  %71 = vst [vmem:[%s1 + $0x38] sm:$0xff] %v63
  // Predicated region
  $region6: #{distill_cnn_forward.8} parent=0 // pred_check
    _
  $region7: #{distill_cnn_forward.8} parent=0 // pred_check_branch
    %73 = sbr.rel (0) target = $region9
  $region8: #{distill_cnn_forward.8} parent=0 // pred_region
    _
  $region9: #{distill_cnn_forward.8} parent=0 // pred_fallthru
    _
  // Predicated region
  $region10: #{distill_cnn_forward.8} parent=0 // pred_check
    _
  $region11: #{distill_cnn_forward.8} parent=0 // pred_check_branch
    %75 = sbr.rel (0) target = $region13
  $region12: #{distill_cnn_forward.8} parent=0 // pred_region
    _
  $region13: #{distill_cnn_forward.8} parent=0 // pred_fallthru
    _

// kernel: distill_cnn_forward.9
$region0: #{distill_cnn_forward.9}
  #allocation0 [shape = 'u32[]', space=smem, size = 0x4, offset = 0x4, fixed_abs, tag = 'smem constant byte address 0x4 - core index']
  #allocation1 [shape = 'u32[72,128]{1,0:T(1,128)}', space=vmem, size = 0x9000, scoped, tag = 'internal scratch']
  #allocation2 [shape = 'f32[16,128]{1,0:T(8,128)}', space=vmem, size = 0x2000, scoped, tag = 'scratch operand']
  #allocation3 [shape = 'f32[2,1024]{1,0:T(2,128)}', space=vmem, size = 0x2000, scoped, tag = 'scratch operand']
  %s0 = inlined_call_operand.vmem [shape: bf16[64,128], index: 0, kind: input, shape index: {}]
  %s1 = inlined_call_operand.vmem [shape: bf16[128,128], index: 1, kind: input, shape index: {}]
  %s2 = inlined_call_operand.vmem [shape: f32[1,128], index: 2, kind: input, shape index: {}]
  %s3 = inlined_call_operand.vmem [shape: bf16[1024,128], index: 3, kind: input, shape index: {}]
  %s4 = inlined_call_operand.vmem [shape: f32[1,128], index: 4, kind: input, shape index: {}]
  %s5 = inlined_call_operand.vmem [shape: bf16[128,64], index: 5, kind: input, shape index: {}]
  %s6 = inlined_call_operand.vmem [shape: f32[1,64], index: 6, kind: input, shape index: {}]
  %s7 = inlined_call_operand.vmem [shape: bf16[64,4], index: 7, kind: input, shape index: {}]
  %s8 = inlined_call_operand.vmem [shape: f32[1,4], index: 8, kind: input, shape index: {}]
  %s9 = inlined_call_operand.hbm [shape: f32[2,4], index: 9, kind: output, shape index: {}]
  %s10 = sld [smem:[#allocation0]]
  $region46: #{distill_cnn_forward.9} parent=0
    _
  %s12 = ssub.s32 1, %s10
  %s13 = scalar_select 0, %s12, %s10
  $region1: #{distill_cnn_forward.9} parent=0
    #allocation4 [shape = 'u8[1024]{0}', space=vmem, size = 0x400, scoped, tag = 'output window, operand 0, single buffered']
    #allocation5 [shape = 's32[1]{0}', space=sflag, size = 0x4, scoped, tag = 'scoped memory for distill_cnn_forward.9']
    %14 = vsyncpa [#allocation5], 0
    // Predicated region
    $region2: #{distill_cnn_forward.9} parent=1 // pred_check
      _
    $region3: #{distill_cnn_forward.9} parent=1 // pred_check_branch
      %16 = sbr.rel (0) target = $region5
    $region4: #{distill_cnn_forward.9} parent=1 // pred_region
      _
    $region5: #{distill_cnn_forward.9} parent=1 // pred_fallthru
      _
    // Predicated region
    $region6: #{distill_cnn_forward.9} parent=1 // pred_check
      _
    $region7: #{distill_cnn_forward.9} parent=1 // pred_check_branch
      %18 = sbr.rel (0) target = $region9
    $region8: #{distill_cnn_forward.9} parent=1 // pred_region
      _
    $region9: #{distill_cnn_forward.9} parent=1 // pred_fallthru
      _
    // Predicated region
    $region10: #{distill_cnn_forward.9} parent=1 // pred_check
      _
    $region11: #{distill_cnn_forward.9} parent=1 // pred_check_branch
      %20 = sbr.rel (0) target = $region13
    $region12: #{distill_cnn_forward.9} parent=1 // pred_region
      _
    $region13: #{distill_cnn_forward.9} parent=1 // pred_fallthru
      _
    // Predicated region
    $region14: #{distill_cnn_forward.9} parent=1 // pred_check
      _
    $region15: #{distill_cnn_forward.9} parent=1 // pred_check_branch
      %22 = sbr.rel (0) target = $region17
    $region16: #{distill_cnn_forward.9} parent=1 // pred_region
      _
    $region17: #{distill_cnn_forward.9} parent=1 // pred_fallthru
      _
    // Predicated region
    $region18: #{distill_cnn_forward.9} parent=1 // pred_check
      _
    $region19: #{distill_cnn_forward.9} parent=1 // pred_check_branch
      %24 = sbr.rel (0) target = $region21
    $region20: #{distill_cnn_forward.9} parent=1 // pred_region
      _
    $region21: #{distill_cnn_forward.9} parent=1 // pred_fallthru
      _
    // Predicated region
    $region22: #{distill_cnn_forward.9} parent=1 // pred_check
      _
    $region23: #{distill_cnn_forward.9} parent=1 // pred_check_branch
      %26 = sbr.rel (0) target = $region25
    $region24: #{distill_cnn_forward.9} parent=1 // pred_region
      _
    $region25: #{distill_cnn_forward.9} parent=1 // pred_fallthru
      _
    // Predicated region
    $region26: #{distill_cnn_forward.9} parent=1 // pred_check
      _
    $region27: #{distill_cnn_forward.9} parent=1 // pred_check_branch
      %28 = sbr.rel (0) target = $region29
    $region28: #{distill_cnn_forward.9} parent=1 // pred_region
      _
    $region29: #{distill_cnn_forward.9} parent=1 // pred_fallthru
      _
    // Predicated region
    $region30: #{distill_cnn_forward.9} parent=1 // pred_check
      _
    $region31: #{distill_cnn_forward.9} parent=1 // pred_check_branch
      %30 = sbr.rel (0) target = $region33
    $region32: #{distill_cnn_forward.9} parent=1 // pred_region
      _
    $region33: #{distill_cnn_forward.9} parent=1 // pred_fallthru
      _
    // Predicated region
    $region34: #{distill_cnn_forward.9} parent=1 // pred_check
      _
    $region35: #{distill_cnn_forward.9} parent=1 // pred_check_branch
      %32 = sbr.rel (0) target = $region37
    $region36: #{distill_cnn_forward.9} parent=1 // pred_region
      _
    $region37: #{distill_cnn_forward.9} parent=1 // pred_fallthru
      _
    %v34 = vld [vmem:[%s0] sm:$0xf]
    %v35 = vld [vmem:[%s0 + $0x4] sm:$0xf]
    %v36 = vld [vmem:[%s0 + $0x8] sm:$0xf]
    %v37 = vld [vmem:[%s0 + $0xc] sm:$0xf]
    %v38 = vld [vmem:[%s0 + $0x10] sm:$0xf]
    %v39 = vld [vmem:[%s0 + $0x14] sm:$0xf]
    %v40 = vld [vmem:[%s0 + $0x18] sm:$0xf]
    %v41 = vld [vmem:[%s0 + $0x1c] sm:$0xf]
    %v42 = vld [vmem:[%s1] sm:$0xf]
    %v43 = vld [vmem:[%s1 + $0x4] sm:$0xf]
    %v44 = vld [vmem:[%s1 + $0x8] sm:$0xf]
    %v45 = vld [vmem:[%s1 + $0xc] sm:$0xf]
    %v46 = vld [vmem:[%s1 + $0x10] sm:$0xf]
    %v47 = vld [vmem:[%s1 + $0x14] sm:$0xf]
    %v48 = vld [vmem:[%s1 + $0x18] sm:$0xf]
    %v49 = vld [vmem:[%s1 + $0x1c] sm:$0xf]
    %v50 = vld [vmem:[%s1 + $0x20] sm:$0xf]
    %v51 = vld [vmem:[%s1 + $0x24] sm:$0xf]
    %v52 = vld [vmem:[%s1 + $0x28] sm:$0xf]
    %v53 = vld [vmem:[%s1 + $0x2c] sm:$0xf]
    %v54 = vld [vmem:[%s1 + $0x30] sm:$0xf]
    %v55 = vld [vmem:[%s1 + $0x34] sm:$0xf]
    %v56 = vld [vmem:[%s1 + $0x38] sm:$0xf]
    %v57 = vld [vmem:[%s1 + $0x3c] sm:$0xf]
    %v58 = vld [vmem:[%s2] sm:$0x1]
    %v60 = vperm.slane %v58, 0
    %v70 = vunpack.c.l.b16 %v34
    %v71 = vunpack.c.l.b16 %v35
    %v72 = vunpack.c.l.b16 %v36
    %v73 = vunpack.c.l.b16 %v37
    %v74 = vunpack.c.l.b16 %v38
    %v75 = vunpack.c.l.b16 %v39
    %v76 = vunpack.c.l.b16 %v40
    %v77 = vunpack.c.l.b16 %v41
    %v78 = vpack.c.b16 %v71, %v70
    %v79 = vpack.c.b16 %v73, %v72
    %v80 = vpack.c.b16 %v75, %v74
    %v81 = vpack.c.b16 %v77, %v76
    %v102 = vunpack.c.l.b16 %v42
    %v103 = vunpack.c.l.b16 %v43
    %v104 = vunpack.c.l.b16 %v44
    %v105 = vunpack.c.l.b16 %v45
    %v106 = vunpack.c.l.b16 %v46
    %v107 = vunpack.c.l.b16 %v47
    %v108 = vunpack.c.l.b16 %v48
    %v109 = vunpack.c.l.b16 %v49
    %v110 = vunpack.c.l.b16 %v50
    %v111 = vunpack.c.l.b16 %v51
    %v112 = vunpack.c.l.b16 %v52
    %v113 = vunpack.c.l.b16 %v53
    %v114 = vunpack.c.l.b16 %v54
    %v115 = vunpack.c.l.b16 %v55
    %v116 = vunpack.c.l.b16 %v56
    %v117 = vunpack.c.l.b16 %v57
    %v118 = vpack.c.b16 %v103, %v102
    %v119 = vpack.c.b16 %v105, %v104
    %v120 = vpack.c.b16 %v107, %v106
    %v121 = vpack.c.b16 %v109, %v108
    %v122 = vpack.c.b16 %v111, %v110
    %v123 = vpack.c.b16 %v113, %v112
    %v124 = vpack.c.b16 %v115, %v114
    %v125 = vpack.c.b16 %v117, %v116
    %134 = vmatpush.bf16.msra.mxu0 %v125
    %135 = vmatpush.bf16.msra.mxu0 %v124
    %136 = vmatpush.bf16.msra.mxu0 %v123
    %137 = vmatpush.bf16.msra.mxu0 %v122
    %138 = vmatpush.bf16.msra.mxu0 %v121
    %139 = vmatpush.bf16.msra.mxu0 %v120
    %140 = vmatpush.bf16.msra.mxu0 %v119
    %141 = vmatpush.bf16.msra.mxu0 %v118
    %142 = vmatmul.bf16.gmra.mxu0 %v78
    %v143 = vpop.f32.mrf.mxu0
    %v144 = vadd.f32 %v60, %v143
    %v145 = vpop.f32.mrf.mxu0
    %v146 = vadd.f32 %v60, %v145
    %147 = vmatmul.bf16.gmra.mxu0 %v79
    %v148 = vpop.f32.mrf.mxu0
    %v149 = vadd.f32 %v60, %v148
    %v150 = vpop.f32.mrf.mxu0
    %v151 = vadd.f32 %v60, %v150
    %152 = vmatmul.bf16.gmra.mxu0 %v80
    %v153 = vpop.f32.mrf.mxu0
    %v154 = vadd.f32 %v60, %v153
    %v155 = vpop.f32.mrf.mxu0
    %v156 = vadd.f32 %v60, %v155
    %157 = vmatmul.bf16.gmra.mxu0 %v81
    %v158 = vpop.f32.mrf.mxu0
    %v159 = vadd.f32 %v60, %v158
    %v160 = vpop.f32.mrf.mxu0
    %v161 = vadd.f32 %v60, %v160
    %162 = vdwg.mxu0
    %vm163 = vcmp.gt.f32.partialorder %v144, 0.0
    %vm164 = vcmp.gt.f32.partialorder %v146, 0.0
    %vm165 = vcmp.gt.f32.partialorder %v149, 0.0
    %vm166 = vcmp.gt.f32.partialorder %v151, 0.0
    %vm167 = vcmp.gt.f32.partialorder %v154, 0.0
    %vm168 = vcmp.gt.f32.partialorder %v156, 0.0
    %vm169 = vcmp.gt.f32.partialorder %v159, 0.0
    %vm170 = vcmp.gt.f32.partialorder %v161, 0.0
    %v171 = vmul.f32 %v144, 0.01
    %v172 = vmul.f32 %v146, 0.01
    %v173 = vmul.f32 %v149, 0.01
    %v174 = vmul.f32 %v151, 0.01
    %v175 = vmul.f32 %v154, 0.01
    %v176 = vmul.f32 %v156, 0.01
    %v177 = vmul.f32 %v159, 0.01
    %v178 = vmul.f32 %v161, 0.01
    %v179 = vsel %vm163, %v144, %v171
    %v180 = vsel %vm164, %v146, %v172
    %v181 = vsel %vm165, %v149, %v173
    %v182 = vsel %vm166, %v151, %v174
    %v183 = vsel %vm167, %v154, %v175
    %v184 = vsel %vm168, %v156, %v176
    %v185 = vsel %vm169, %v159, %v177
    %v186 = vsel %vm170, %v161, %v178
    %v187 = vmax.f32 %v179, %v181
    %v188 = vmax.f32 %v180, %v182
    %v189 = vmax.f32 %v183, %v185
    %v190 = vmax.f32 %v184, %v186
    %v191 = vmax.f32 %v187, %v189
    %v192 = vmax.f32 %v188, %v190
    %193 = vst [vmem:[#allocation2] sm:$0xff] %v191
    %194 = vst [vmem:[#allocation2 + $0x8] sm:$0xff] %v192
    %v195 = vld [vmem:[#allocation2] sm:$0x1]
    %196 = vst [vmem:[#allocation3] sm:$0x1] %v195
    %v197 = vld [vmem:[#allocation2 + $0x1] sm:$0x1]
    %198 = vst [vmem:[#allocation3 + $0x2] sm:$0x1] %v197
    %v199 = vld [vmem:[#allocation2 + $0x2] sm:$0x1]
    %200 = vst [vmem:[#allocation3 + $0x4] sm:$0x1] %v199
    %v201 = vld [vmem:[#allocation2 + $0x3] sm:$0x1]
    %202 = vst [vmem:[#allocation3 + $0x6] sm:$0x1] %v201
    %v203 = vld [vmem:[#allocation2 + $0x4] sm:$0x1]
    %204 = vst [vmem:[#allocation3 + $0x8] sm:$0x1] %v203
    %v205 = vld [vmem:[#allocation2 + $0x5] sm:$0x1]
    %206 = vst [vmem:[#allocation3 + $0xa] sm:$0x1] %v205
    %v207 = vld [vmem:[#allocation2 + $0x6] sm:$0x1]
    %208 = vst [vmem:[#allocation3 + $0xc] sm:$0x1] %v207
    %v209 = vld [vmem:[#allocation2 + $0x7] sm:$0x1]
    %210 = vst [vmem:[#allocation3 + $0xe] sm:$0x1] %v209
    %v211 = vld [vmem:[#allocation2 + $0x8] sm:$0x1]
    %212 = vst [vmem:[#allocation3 + $0x1] sm:$0x1] %v211
    %v213 = vld [vmem:[#allocation2 + $0x9] sm:$0x1]
    %214 = vst [vmem:[#allocation3 + $0x3] sm:$0x1] %v213
    %v215 = vld [vmem:[#allocation2 + $0xa] sm:$0x1]
    %216 = vst [vmem:[#allocation3 + $0x5] sm:$0x1] %v215
    %v217 = vld [vmem:[#allocation2 + $0xb] sm:$0x1]
    %218 = vst [vmem:[#allocation3 + $0x7] sm:$0x1] %v217
    %v219 = vld [vmem:[#allocation2 + $0xc] sm:$0x1]
    %220 = vst [vmem:[#allocation3 + $0x9] sm:$0x1] %v219
    %v221 = vld [vmem:[#allocation2 + $0xd] sm:$0x1]
    %222 = vst [vmem:[#allocation3 + $0xb] sm:$0x1] %v221
    %v223 = vld [vmem:[#allocation2 + $0xe] sm:$0x1]
    %224 = vst [vmem:[#allocation3 + $0xd] sm:$0x1] %v223
    %v225 = vld [vmem:[#allocation2 + $0xf] sm:$0x1]
    %226 = vst [vmem:[#allocation3 + $0xf] sm:$0x1] %v225
    %v227 = vld [vmem:[#allocation3] sm:$0xff]
    %v228 = vld [vmem:[#allocation3 + $0x8] sm:$0xff]
    %231 = vst [vmem:[#allocation1] ss:$4 sm:$0xff] %v227
    %s232 = scalar_lea.vmem [#allocation1], 32
    %233 = vst [vmem:[%s232] ss:$4 sm:$0xff] %v228
    %v234 = vld.sshfl [vmem:[#allocation1] sm:$0xff pattern:$0x73625140]
    %v235 = vld.sshfl [vmem:[#allocation1 + $0x8] sm:$0xff pattern:$0x73625140]
    %v236 = vld.sshfl [vmem:[#allocation1 + $0x10] sm:$0xff pattern:$0x73625140]
    %v237 = vld.sshfl [vmem:[#allocation1 + $0x18] sm:$0xff pattern:$0x73625140]
    %v238 = vld.sshfl [vmem:[#allocation1 + $0x20] sm:$0xff pattern:$0x73625140]
    %v239 = vld.sshfl [vmem:[#allocation1 + $0x28] sm:$0xff pattern:$0x73625140]
    %v240 = vld.sshfl [vmem:[#allocation1 + $0x30] sm:$0xff pattern:$0x73625140]
    %v241 = vld.sshfl [vmem:[#allocation1 + $0x38] sm:$0xff pattern:$0x73625140]
    %v250 = vpack.c.bf16 %v234, %v234
    %v251 = vpack.c.bf16 %v235, %v235
    %v252 = vpack.c.bf16 %v236, %v236
    %v253 = vpack.c.bf16 %v237, %v237
    %v254 = vpack.c.bf16 %v238, %v238
    %v255 = vpack.c.bf16 %v239, %v239
    %v256 = vpack.c.bf16 %v240, %v240
    %v257 = vpack.c.bf16 %v241, %v241
    %v258 = vld [vmem:[%s3] sm:$0xf]
    %v259 = vld [vmem:[%s3 + $0x4] sm:$0xf]
    %v260 = vld [vmem:[%s3 + $0x8] sm:$0xf]
    %v261 = vld [vmem:[%s3 + $0xc] sm:$0xf]
    %v262 = vld [vmem:[%s3 + $0x10] sm:$0xf]
    %v263 = vld [vmem:[%s3 + $0x14] sm:$0xf]
    %v264 = vld [vmem:[%s3 + $0x18] sm:$0xf]
    %v265 = vld [vmem:[%s3 + $0x1c] sm:$0xf]
    %v266 = vld [vmem:[%s3 + $0x20] sm:$0xf]
    %v267 = vld [vmem:[%s3 + $0x24] sm:$0xf]
    %v268 = vld [vmem:[%s3 + $0x28] sm:$0xf]
    %v269 = vld [vmem:[%s3 + $0x2c] sm:$0xf]
    %v270 = vld [vmem:[%s3 + $0x30] sm:$0xf]
    %v271 = vld [vmem:[%s3 + $0x34] sm:$0xf]
    %v272 = vld [vmem:[%s3 + $0x38] sm:$0xf]
    %v273 = vld [vmem:[%s3 + $0x3c] sm:$0xf]
    %v274 = vld [vmem:[%s3 + $0x40] sm:$0xf]
    %v275 = vld [vmem:[%s3 + $0x44] sm:$0xf]
    %v276 = vld [vmem:[%s3 + $0x48] sm:$0xf]
    %v277 = vld [vmem:[%s3 + $0x4c] sm:$0xf]
    %v278 = vld [vmem:[%s3 + $0x50] sm:$0xf]
    %v279 = vld [vmem:[%s3 + $0x54] sm:$0xf]
    %v280 = vld [vmem:[%s3 + $0x58] sm:$0xf]
    %v281 = vld [vmem:[%s3 + $0x5c] sm:$0xf]
    %v282 = vld [vmem:[%s3 + $0x60] sm:$0xf]
    %v283 = vld [vmem:[%s3 + $0x64] sm:$0xf]
    %v284 = vld [vmem:[%s3 + $0x68] sm:$0xf]
    %v285 = vld [vmem:[%s3 + $0x6c] sm:$0xf]
    %v286 = vld [vmem:[%s3 + $0x70] sm:$0xf]
    %v287 = vld [vmem:[%s3 + $0x74] sm:$0xf]
    %v288 = vld [vmem:[%s3 + $0x78] sm:$0xf]
    %v289 = vld [vmem:[%s3 + $0x7c] sm:$0xf]
    %v290 = vld [vmem:[%s3 + $0x80] sm:$0xf]
    %v291 = vld [vmem:[%s3 + $0x84] sm:$0xf]
    %v292 = vld [vmem:[%s3 + $0x88] sm:$0xf]
    %v293 = vld [vmem:[%s3 + $0x8c] sm:$0xf]
    %v294 = vld [vmem:[%s3 + $0x90] sm:$0xf]
    %v295 = vld [vmem:[%s3 + $0x94] sm:$0xf]
    %v296 = vld [vmem:[%s3 + $0x98] sm:$0xf]
    %v297 = vld [vmem:[%s3 + $0x9c] sm:$0xf]
    %v298 = vld [vmem:[%s3 + $0xa0] sm:$0xf]
    %v299 = vld [vmem:[%s3 + $0xa4] sm:$0xf]
    %v300 = vld [vmem:[%s3 + $0xa8] sm:$0xf]
    %v301 = vld [vmem:[%s3 + $0xac] sm:$0xf]
    %v302 = vld [vmem:[%s3 + $0xb0] sm:$0xf]
    %v303 = vld [vmem:[%s3 + $0xb4] sm:$0xf]
    %v304 = vld [vmem:[%s3 + $0xb8] sm:$0xf]
    %v305 = vld [vmem:[%s3 + $0xbc] sm:$0xf]
    %v306 = vld [vmem:[%s3 + $0xc0] sm:$0xf]
    %v307 = vld [vmem:[%s3 + $0xc4] sm:$0xf]
    %v308 = vld [vmem:[%s3 + $0xc8] sm:$0xf]
    %v309 = vld [vmem:[%s3 + $0xcc] sm:$0xf]
    %v310 = vld [vmem:[%s3 + $0xd0] sm:$0xf]
    %v311 = vld [vmem:[%s3 + $0xd4] sm:$0xf]
    %v312 = vld [vmem:[%s3 + $0xd8] sm:$0xf]
    %v313 = vld [vmem:[%s3 + $0xdc] sm:$0xf]
    %v314 = vld [vmem:[%s3 + $0xe0] sm:$0xf]
    %v315 = vld [vmem:[%s3 + $0xe4] sm:$0xf]
    %v316 = vld [vmem:[%s3 + $0xe8] sm:$0xf]
    %v317 = vld [vmem:[%s3 + $0xec] sm:$0xf]
    %v318 = vld [vmem:[%s3 + $0xf0] sm:$0xf]
    %v319 = vld [vmem:[%s3 + $0xf4] sm:$0xf]
    %v320 = vld [vmem:[%s3 + $0xf8] sm:$0xf]
    %v321 = vld [vmem:[%s3 + $0xfc] sm:$0xf]
    %v322 = vld [vmem:[%s3 + $0x100] sm:$0xf]
    %v323 = vld [vmem:[%s3 + $0x104] sm:$0xf]
    %v324 = vld [vmem:[%s3 + $0x108] sm:$0xf]
    %v325 = vld [vmem:[%s3 + $0x10c] sm:$0xf]
    %v326 = vld [vmem:[%s3 + $0x110] sm:$0xf]
    %v327 = vld [vmem:[%s3 + $0x114] sm:$0xf]
    %v328 = vld [vmem:[%s3 + $0x118] sm:$0xf]
    %v329 = vld [vmem:[%s3 + $0x11c] sm:$0xf]
    %v330 = vld [vmem:[%s3 + $0x120] sm:$0xf]
    %v331 = vld [vmem:[%s3 + $0x124] sm:$0xf]
    %v332 = vld [vmem:[%s3 + $0x128] sm:$0xf]
    %v333 = vld [vmem:[%s3 + $0x12c] sm:$0xf]
    %v334 = vld [vmem:[%s3 + $0x130] sm:$0xf]
    %v335 = vld [vmem:[%s3 + $0x134] sm:$0xf]
    %v336 = vld [vmem:[%s3 + $0x138] sm:$0xf]
    %v337 = vld [vmem:[%s3 + $0x13c] sm:$0xf]
    %v338 = vld [vmem:[%s3 + $0x140] sm:$0xf]
    %v339 = vld [vmem:[%s3 + $0x144] sm:$0xf]
    %v340 = vld [vmem:[%s3 + $0x148] sm:$0xf]
    %v341 = vld [vmem:[%s3 + $0x14c] sm:$0xf]
    %v342 = vld [vmem:[%s3 + $0x150] sm:$0xf]
    %v343 = vld [vmem:[%s3 + $0x154] sm:$0xf]
    %v344 = vld [vmem:[%s3 + $0x158] sm:$0xf]
    %v345 = vld [vmem:[%s3 + $0x15c] sm:$0xf]
    %v346 = vld [vmem:[%s3 + $0x160] sm:$0xf]
    %v347 = vld [vmem:[%s3 + $0x164] sm:$0xf]
    %v348 = vld [vmem:[%s3 + $0x168] sm:$0xf]
    %v349 = vld [vmem:[%s3 + $0x16c] sm:$0xf]
    %v350 = vld [vmem:[%s3 + $0x170] sm:$0xf]
    %v351 = vld [vmem:[%s3 + $0x174] sm:$0xf]
    %v352 = vld [vmem:[%s3 + $0x178] sm:$0xf]
    %v353 = vld [vmem:[%s3 + $0x17c] sm:$0xf]
    %v354 = vld [vmem:[%s3 + $0x180] sm:$0xf]
    %v355 = vld [vmem:[%s3 + $0x184] sm:$0xf]
    %v356 = vld [vmem:[%s3 + $0x188] sm:$0xf]
    %v357 = vld [vmem:[%s3 + $0x18c] sm:$0xf]
    %v358 = vld [vmem:[%s3 + $0x190] sm:$0xf]
    %v359 = vld [vmem:[%s3 + $0x194] sm:$0xf]
    %v360 = vld [vmem:[%s3 + $0x198] sm:$0xf]
    %v361 = vld [vmem:[%s3 + $0x19c] sm:$0xf]
    %v362 = vld [vmem:[%s3 + $0x1a0] sm:$0xf]
    %v363 = vld [vmem:[%s3 + $0x1a4] sm:$0xf]
    %v364 = vld [vmem:[%s3 + $0x1a8] sm:$0xf]
    %v365 = vld [vmem:[%s3 + $0x1ac] sm:$0xf]
    %v366 = vld [vmem:[%s3 + $0x1b0] sm:$0xf]
    %v367 = vld [vmem:[%s3 + $0x1b4] sm:$0xf]
    %v368 = vld [vmem:[%s3 + $0x1b8] sm:$0xf]
    %v369 = vld [vmem:[%s3 + $0x1bc] sm:$0xf]
    %v370 = vld [vmem:[%s3 + $0x1c0] sm:$0xf]
    %v371 = vld [vmem:[%s3 + $0x1c4] sm:$0xf]
    %v372 = vld [vmem:[%s3 + $0x1c8] sm:$0xf]
    %v373 = vld [vmem:[%s3 + $0x1cc] sm:$0xf]
    %v374 = vld [vmem:[%s3 + $0x1d0] sm:$0xf]
    %v375 = vld [vmem:[%s3 + $0x1d4] sm:$0xf]
    %v376 = vld [vmem:[%s3 + $0x1d8] sm:$0xf]
    %v377 = vld [vmem:[%s3 + $0x1dc] sm:$0xf]
    %v378 = vld [vmem:[%s3 + $0x1e0] sm:$0xf]
    %v379 = vld [vmem:[%s3 + $0x1e4] sm:$0xf]
    %v380 = vld [vmem:[%s3 + $0x1e8] sm:$0xf]
    %v381 = vld [vmem:[%s3 + $0x1ec] sm:$0xf]
    %v382 = vld [vmem:[%s3 + $0x1f0] sm:$0xf]
    %v383 = vld [vmem:[%s3 + $0x1f4] sm:$0xf]
    %v384 = vld [vmem:[%s3 + $0x1f8] sm:$0xf]
    %v385 = vld [vmem:[%s3 + $0x1fc] sm:$0xf]
    %v386 = vld [vmem:[%s4] sm:$0x1]
    %v388 = vperm.slane %v386, 0
    %v518 = vunpack.c.l.b16 %v258
    %v519 = vunpack.c.l.b16 %v259
    %v520 = vunpack.c.l.b16 %v260
    %v521 = vunpack.c.l.b16 %v261
    %v522 = vunpack.c.l.b16 %v262
    %v523 = vunpack.c.l.b16 %v263
    %v524 = vunpack.c.l.b16 %v264
    %v525 = vunpack.c.l.b16 %v265
    %v526 = vunpack.c.l.b16 %v266
    %v527 = vunpack.c.l.b16 %v267
    %v528 = vunpack.c.l.b16 %v268
    %v529 = vunpack.c.l.b16 %v269
    %v530 = vunpack.c.l.b16 %v270
    %v531 = vunpack.c.l.b16 %v271
    %v532 = vunpack.c.l.b16 %v272
    %v533 = vunpack.c.l.b16 %v273
    %v534 = vunpack.c.l.b16 %v274
    %v535 = vunpack.c.l.b16 %v275
    %v536 = vunpack.c.l.b16 %v276
    %v537 = vunpack.c.l.b16 %v277
    %v538 = vunpack.c.l.b16 %v278
    %v539 = vunpack.c.l.b16 %v279
    %v540 = vunpack.c.l.b16 %v280
    %v541 = vunpack.c.l.b16 %v281
    %v542 = vunpack.c.l.b16 %v282
    %v543 = vunpack.c.l.b16 %v283
    %v544 = vunpack.c.l.b16 %v284
    %v545 = vunpack.c.l.b16 %v285
    %v546 = vunpack.c.l.b16 %v286
    %v547 = vunpack.c.l.b16 %v287
    %v548 = vunpack.c.l.b16 %v288
    %v549 = vunpack.c.l.b16 %v289
    %v550 = vunpack.c.l.b16 %v290
    %v551 = vunpack.c.l.b16 %v291
    %v552 = vunpack.c.l.b16 %v292
    %v553 = vunpack.c.l.b16 %v293
    %v554 = vunpack.c.l.b16 %v294
    %v555 = vunpack.c.l.b16 %v295
    %v556 = vunpack.c.l.b16 %v296
    %v557 = vunpack.c.l.b16 %v297
    %v558 = vunpack.c.l.b16 %v298
    %v559 = vunpack.c.l.b16 %v299
    %v560 = vunpack.c.l.b16 %v300
    %v561 = vunpack.c.l.b16 %v301
    %v562 = vunpack.c.l.b16 %v302
    %v563 = vunpack.c.l.b16 %v303
    %v564 = vunpack.c.l.b16 %v304
    %v565 = vunpack.c.l.b16 %v305
    %v566 = vunpack.c.l.b16 %v306
    %v567 = vunpack.c.l.b16 %v307
    %v568 = vunpack.c.l.b16 %v308
    %v569 = vunpack.c.l.b16 %v309
    %v570 = vunpack.c.l.b16 %v310
    %v571 = vunpack.c.l.b16 %v311
    %v572 = vunpack.c.l.b16 %v312
    %v573 = vunpack.c.l.b16 %v313
    %v574 = vunpack.c.l.b16 %v314
    %v575 = vunpack.c.l.b16 %v315
    %v576 = vunpack.c.l.b16 %v316
    %v577 = vunpack.c.l.b16 %v317
    %v578 = vunpack.c.l.b16 %v318
    %v579 = vunpack.c.l.b16 %v319
    %v580 = vunpack.c.l.b16 %v320
    %v581 = vunpack.c.l.b16 %v321
    %v582 = vunpack.c.l.b16 %v322
    %v583 = vunpack.c.l.b16 %v323
    %v584 = vunpack.c.l.b16 %v324
    %v585 = vunpack.c.l.b16 %v325
    %v586 = vunpack.c.l.b16 %v326
    %v587 = vunpack.c.l.b16 %v327
    %v588 = vunpack.c.l.b16 %v328
    %v589 = vunpack.c.l.b16 %v329
    %v590 = vunpack.c.l.b16 %v330
    %v591 = vunpack.c.l.b16 %v331
    %v592 = vunpack.c.l.b16 %v332
    %v593 = vunpack.c.l.b16 %v333
    %v594 = vunpack.c.l.b16 %v334
    %v595 = vunpack.c.l.b16 %v335
    %v596 = vunpack.c.l.b16 %v336
    %v597 = vunpack.c.l.b16 %v337
    %v598 = vunpack.c.l.b16 %v338
    %v599 = vunpack.c.l.b16 %v339
    %v600 = vunpack.c.l.b16 %v340
    %v601 = vunpack.c.l.b16 %v341
    %v602 = vunpack.c.l.b16 %v342
    %v603 = vunpack.c.l.b16 %v343
    %v604 = vunpack.c.l.b16 %v344
    %v605 = vunpack.c.l.b16 %v345
    %v606 = vunpack.c.l.b16 %v346
    %v607 = vunpack.c.l.b16 %v347
    %v608 = vunpack.c.l.b16 %v348
    %v609 = vunpack.c.l.b16 %v349
    %v610 = vunpack.c.l.b16 %v350
    %v611 = vunpack.c.l.b16 %v351
    %v612 = vunpack.c.l.b16 %v352
    %v613 = vunpack.c.l.b16 %v353
    %v614 = vunpack.c.l.b16 %v354
    %v615 = vunpack.c.l.b16 %v355
    %v616 = vunpack.c.l.b16 %v356
    %v617 = vunpack.c.l.b16 %v357
    %v618 = vunpack.c.l.b16 %v358
    %v619 = vunpack.c.l.b16 %v359
    %v620 = vunpack.c.l.b16 %v360
    %v621 = vunpack.c.l.b16 %v361
    %v622 = vunpack.c.l.b16 %v362
    %v623 = vunpack.c.l.b16 %v363
    %v624 = vunpack.c.l.b16 %v364
    %v625 = vunpack.c.l.b16 %v365
    %v626 = vunpack.c.l.b16 %v366
    %v627 = vunpack.c.l.b16 %v367
    %v628 = vunpack.c.l.b16 %v368
    %v629 = vunpack.c.l.b16 %v369
    %v630 = vunpack.c.l.b16 %v370
    %v631 = vunpack.c.l.b16 %v371
    %v632 = vunpack.c.l.b16 %v372
    %v633 = vunpack.c.l.b16 %v373
    %v634 = vunpack.c.l.b16 %v374
    %v635 = vunpack.c.l.b16 %v375
    %v636 = vunpack.c.l.b16 %v376
    %v637 = vunpack.c.l.b16 %v377
    %v638 = vunpack.c.l.b16 %v378
    %v639 = vunpack.c.l.b16 %v379
    %v640 = vunpack.c.l.b16 %v380
    %v641 = vunpack.c.l.b16 %v381
    %v642 = vunpack.c.l.b16 %v382
    %v643 = vunpack.c.l.b16 %v383
    %v644 = vunpack.c.l.b16 %v384
    %v645 = vunpack.c.l.b16 %v385
    %v646 = vpack.c.b16 %v519, %v518
    %v647 = vpack.c.b16 %v521, %v520
    %v648 = vpack.c.b16 %v523, %v522
    %v649 = vpack.c.b16 %v525, %v524
    %v650 = vpack.c.b16 %v527, %v526
    %v651 = vpack.c.b16 %v529, %v528
    %v652 = vpack.c.b16 %v531, %v530
    %v653 = vpack.c.b16 %v533, %v532
    %v654 = vpack.c.b16 %v535, %v534
    %v655 = vpack.c.b16 %v537, %v536
    %v656 = vpack.c.b16 %v539, %v538
    %v657 = vpack.c.b16 %v541, %v540
    %v658 = vpack.c.b16 %v543, %v542
    %v659 = vpack.c.b16 %v545, %v544
    %v660 = vpack.c.b16 %v547, %v546
    %v661 = vpack.c.b16 %v549, %v548
    %v662 = vpack.c.b16 %v551, %v550
    %v663 = vpack.c.b16 %v553, %v552
    %v664 = vpack.c.b16 %v555, %v554
    %v665 = vpack.c.b16 %v557, %v556
    %v666 = vpack.c.b16 %v559, %v558
    %v667 = vpack.c.b16 %v561, %v560
    %v668 = vpack.c.b16 %v563, %v562
    %v669 = vpack.c.b16 %v565, %v564
    %v670 = vpack.c.b16 %v567, %v566
    %v671 = vpack.c.b16 %v569, %v568
    %v672 = vpack.c.b16 %v571, %v570
    %v673 = vpack.c.b16 %v573, %v572
    %v674 = vpack.c.b16 %v575, %v574
    %v675 = vpack.c.b16 %v577, %v576
    %v676 = vpack.c.b16 %v579, %v578
    %v677 = vpack.c.b16 %v581, %v580
    %v678 = vpack.c.b16 %v583, %v582
    %v679 = vpack.c.b16 %v585, %v584
    %v680 = vpack.c.b16 %v587, %v586
    %v681 = vpack.c.b16 %v589, %v588
    %v682 = vpack.c.b16 %v591, %v590
    %v683 = vpack.c.b16 %v593, %v592
    %v684 = vpack.c.b16 %v595, %v594
    %v685 = vpack.c.b16 %v597, %v596
    %v686 = vpack.c.b16 %v599, %v598
    %v687 = vpack.c.b16 %v601, %v600
    %v688 = vpack.c.b16 %v603, %v602
    %v689 = vpack.c.b16 %v605, %v604
    %v690 = vpack.c.b16 %v607, %v606
    %v691 = vpack.c.b16 %v609, %v608
    %v692 = vpack.c.b16 %v611, %v610
    %v693 = vpack.c.b16 %v613, %v612
    %v694 = vpack.c.b16 %v615, %v614
    %v695 = vpack.c.b16 %v617, %v616
    %v696 = vpack.c.b16 %v619, %v618
    %v697 = vpack.c.b16 %v621, %v620
    %v698 = vpack.c.b16 %v623, %v622
    %v699 = vpack.c.b16 %v625, %v624
    %v700 = vpack.c.b16 %v627, %v626
    %v701 = vpack.c.b16 %v629, %v628
    %v702 = vpack.c.b16 %v631, %v630
    %v703 = vpack.c.b16 %v633, %v632
    %v704 = vpack.c.b16 %v635, %v634
    %v705 = vpack.c.b16 %v637, %v636
    %v706 = vpack.c.b16 %v639, %v638
    %v707 = vpack.c.b16 %v641, %v640
    %v708 = vpack.c.b16 %v643, %v642
    %v709 = vpack.c.b16 %v645, %v644
    %774 = vmatpush.bf16.msra.mxu0 %v653
    %775 = vmatpush.bf16.msra.mxu0 %v652
    %776 = vmatpush.bf16.msra.mxu0 %v651
    %777 = vmatpush.bf16.msra.mxu0 %v650
    %778 = vmatpush.bf16.msra.mxu0 %v649
    %779 = vmatpush.bf16.msra.mxu0 %v648
    %780 = vmatpush.bf16.msra.mxu0 %v647
    %781 = vmatpush.bf16.msra.mxu0 %v646
    %782 = vmatmul.bf16.gmra.mxu0 %v250
    %v783 = vpop.f32.mrf.mxu0
    %v784 = vadd.f32 %v388, %v783
    %v785 = vpop.f32.mrf.mxu0
    %786 = vdwg.mxu0
    %787 = vmatpush.bf16.msra.mxu0 %v661
    %788 = vmatpush.bf16.msra.mxu0 %v660
    %789 = vmatpush.bf16.msra.mxu0 %v659
    %790 = vmatpush.bf16.msra.mxu0 %v658
    %791 = vmatpush.bf16.msra.mxu0 %v657
    %792 = vmatpush.bf16.msra.mxu0 %v656
    %793 = vmatpush.bf16.msra.mxu0 %v655
    %794 = vmatpush.bf16.msra.mxu0 %v654
    %795 = vmatmul.bf16.gmra.mxu0 %v251
    %v796 = vpop.f32.mrf.mxu0
    %v797 = vadd.f32 %v784, %v796
    %v798 = vpop.f32.mrf.mxu0
    %799 = vdwg.mxu0
    %800 = vmatpush.bf16.msra.mxu0 %v669
    %801 = vmatpush.bf16.msra.mxu0 %v668
    %802 = vmatpush.bf16.msra.mxu0 %v667
    %803 = vmatpush.bf16.msra.mxu0 %v666
    %804 = vmatpush.bf16.msra.mxu0 %v665
    %805 = vmatpush.bf16.msra.mxu0 %v664
    %806 = vmatpush.bf16.msra.mxu0 %v663
    %807 = vmatpush.bf16.msra.mxu0 %v662
    %808 = vmatmul.bf16.gmra.mxu0 %v252
    %v809 = vpop.f32.mrf.mxu0
    %v810 = vadd.f32 %v797, %v809
    %v811 = vpop.f32.mrf.mxu0
    %812 = vdwg.mxu0
    %813 = vmatpush.bf16.msra.mxu0 %v677
    %814 = vmatpush.bf16.msra.mxu0 %v676
    %815 = vmatpush.bf16.msra.mxu0 %v675
    %816 = vmatpush.bf16.msra.mxu0 %v674
    %817 = vmatpush.bf16.msra.mxu0 %v673
    %818 = vmatpush.bf16.msra.mxu0 %v672
    %819 = vmatpush.bf16.msra.mxu0 %v671
    %820 = vmatpush.bf16.msra.mxu0 %v670
    %821 = vmatmul.bf16.gmra.mxu0 %v253
    %v822 = vpop.f32.mrf.mxu0
    %v823 = vadd.f32 %v810, %v822
    %v824 = vpop.f32.mrf.mxu0
    %825 = vdwg.mxu0
    %826 = vmatpush.bf16.msra.mxu0 %v685
    %827 = vmatpush.bf16.msra.mxu0 %v684
    %828 = vmatpush.bf16.msra.mxu0 %v683
    %829 = vmatpush.bf16.msra.mxu0 %v682
    %830 = vmatpush.bf16.msra.mxu0 %v681
    %831 = vmatpush.bf16.msra.mxu0 %v680
    %832 = vmatpush.bf16.msra.mxu0 %v679
    %833 = vmatpush.bf16.msra.mxu0 %v678
    %834 = vmatmul.bf16.gmra.mxu0 %v254
    %v835 = vpop.f32.mrf.mxu0
    %v836 = vadd.f32 %v823, %v835
    %v837 = vpop.f32.mrf.mxu0
    %838 = vdwg.mxu0
    %839 = vmatpush.bf16.msra.mxu0 %v693
    %840 = vmatpush.bf16.msra.mxu0 %v692
    %841 = vmatpush.bf16.msra.mxu0 %v691
    %842 = vmatpush.bf16.msra.mxu0 %v690
    %843 = vmatpush.bf16.msra.mxu0 %v689
    %844 = vmatpush.bf16.msra.mxu0 %v688
    %845 = vmatpush.bf16.msra.mxu0 %v687
    %846 = vmatpush.bf16.msra.mxu0 %v686
    %847 = vmatmul.bf16.gmra.mxu0 %v255
    %v848 = vpop.f32.mrf.mxu0
    %v849 = vadd.f32 %v836, %v848
    %v850 = vpop.f32.mrf.mxu0
    %851 = vdwg.mxu0
    %852 = vmatpush.bf16.msra.mxu0 %v701
    %853 = vmatpush.bf16.msra.mxu0 %v700
    %854 = vmatpush.bf16.msra.mxu0 %v699
    %855 = vmatpush.bf16.msra.mxu0 %v698
    %856 = vmatpush.bf16.msra.mxu0 %v697
    %857 = vmatpush.bf16.msra.mxu0 %v696
    %858 = vmatpush.bf16.msra.mxu0 %v695
    %859 = vmatpush.bf16.msra.mxu0 %v694
    %860 = vmatmul.bf16.gmra.mxu0 %v256
    %v861 = vpop.f32.mrf.mxu0
    %v862 = vadd.f32 %v849, %v861
    %v863 = vpop.f32.mrf.mxu0
    %864 = vdwg.mxu0
    %865 = vmatpush.bf16.msra.mxu0 %v709
    %866 = vmatpush.bf16.msra.mxu0 %v708
    %867 = vmatpush.bf16.msra.mxu0 %v707
    %868 = vmatpush.bf16.msra.mxu0 %v706
    %869 = vmatpush.bf16.msra.mxu0 %v705
    %870 = vmatpush.bf16.msra.mxu0 %v704
    %871 = vmatpush.bf16.msra.mxu0 %v703
    %872 = vmatpush.bf16.msra.mxu0 %v702
    %873 = vmatmul.bf16.gmra.mxu0 %v257
    %v874 = vpop.f32.mrf.mxu0
    %v875 = vadd.f32 %v862, %v874
    %v876 = vpop.f32.mrf.mxu0
    %877 = vdwg.mxu0
    %v878 = vmax.f32 %v875, 0.0
    %v879 = vpack.c.bf16 %v878, %v878
    %v880 = vld [vmem:[%s5] sm:$0xf]
    %v881 = vld [vmem:[%s5 + $0x4] sm:$0xf]
    %v882 = vld [vmem:[%s5 + $0x8] sm:$0xf]
    %v883 = vld [vmem:[%s5 + $0xc] sm:$0xf]
    %v884 = vld [vmem:[%s5 + $0x10] sm:$0xf]
    %v885 = vld [vmem:[%s5 + $0x14] sm:$0xf]
    %v886 = vld [vmem:[%s5 + $0x18] sm:$0xf]
    %v887 = vld [vmem:[%s5 + $0x1c] sm:$0xf]
    %v888 = vld [vmem:[%s5 + $0x20] sm:$0xf]
    %v889 = vld [vmem:[%s5 + $0x24] sm:$0xf]
    %v890 = vld [vmem:[%s5 + $0x28] sm:$0xf]
    %v891 = vld [vmem:[%s5 + $0x2c] sm:$0xf]
    %v892 = vld [vmem:[%s5 + $0x30] sm:$0xf]
    %v893 = vld [vmem:[%s5 + $0x34] sm:$0xf]
    %v894 = vld [vmem:[%s5 + $0x38] sm:$0xf]
    %v895 = vld [vmem:[%s5 + $0x3c] sm:$0xf]
    %v896 = vld [vmem:[%s6] sm:$0x1]
    %v898 = vperm.slane %v896, 0
    %v916 = vunpack.c.l.b16 %v880
    %v917 = vunpack.c.l.b16 %v881
    %v918 = vunpack.c.l.b16 %v882
    %v919 = vunpack.c.l.b16 %v883
    %v920 = vunpack.c.l.b16 %v884
    %v921 = vunpack.c.l.b16 %v885
    %v922 = vunpack.c.l.b16 %v886
    %v923 = vunpack.c.l.b16 %v887
    %v924 = vunpack.c.l.b16 %v888
    %v925 = vunpack.c.l.b16 %v889
    %v926 = vunpack.c.l.b16 %v890
    %v927 = vunpack.c.l.b16 %v891
    %v928 = vunpack.c.l.b16 %v892
    %v929 = vunpack.c.l.b16 %v893
    %v930 = vunpack.c.l.b16 %v894
    %v931 = vunpack.c.l.b16 %v895
    %v932 = vpack.c.b16 %v917, %v916
    %v933 = vpack.c.b16 %v919, %v918
    %v934 = vpack.c.b16 %v921, %v920
    %v935 = vpack.c.b16 %v923, %v922
    %v936 = vpack.c.b16 %v925, %v924
    %v937 = vpack.c.b16 %v927, %v926
    %v938 = vpack.c.b16 %v929, %v928
    %v939 = vpack.c.b16 %v931, %v930
    %948 = vmatpush.bf16.msra.mxu0 %v939
    %949 = vmatpush.bf16.msra.mxu0 %v938
    %950 = vmatpush.bf16.msra.mxu0 %v937
    %951 = vmatpush.bf16.msra.mxu0 %v936
    %952 = vmatpush.bf16.msra.mxu0 %v935
    %953 = vmatpush.bf16.msra.mxu0 %v934
    %954 = vmatpush.bf16.msra.mxu0 %v933
    %955 = vmatpush.bf16.msra.mxu0 %v932
    %956 = vmatmul.bf16.gmra.mxu0 %v879
    %v957 = vpop.f32.mrf.mxu0
    %v958 = vadd.f32 %v898, %v957
    %v959 = vpop.f32.mrf.mxu0
    %960 = vdwg.mxu0
    %v961 = vmax.f32 %v958, 0.0
    %v962 = vpack.c.bf16 %v961, %v961
    %v963 = vld [vmem:[%s7] sm:$0xf]
    %v964 = vld [vmem:[%s7 + $0x4] sm:$0xf]
    %v965 = vld [vmem:[%s7 + $0x8] sm:$0xf]
    %v966 = vld [vmem:[%s7 + $0xc] sm:$0xf]
    %v967 = vld [vmem:[%s7 + $0x10] sm:$0xf]
    %v968 = vld [vmem:[%s7 + $0x14] sm:$0xf]
    %v969 = vld [vmem:[%s7 + $0x18] sm:$0xf]
    %v970 = vld [vmem:[%s7 + $0x1c] sm:$0xf]
    %v971 = vld [vmem:[%s8] sm:$0x1]
    %v973 = vperm.slane %v971, 0
    %v983 = vunpack.c.l.b16 %v963
    %v984 = vunpack.c.l.b16 %v964
    %v985 = vunpack.c.l.b16 %v965
    %v986 = vunpack.c.l.b16 %v966
    %v987 = vunpack.c.l.b16 %v967
    %v988 = vunpack.c.l.b16 %v968
    %v989 = vunpack.c.l.b16 %v969
    %v990 = vunpack.c.l.b16 %v970
    %v991 = vpack.c.b16 %v984, %v983
    %v992 = vpack.c.b16 %v986, %v985
    %v993 = vpack.c.b16 %v988, %v987
    %v994 = vpack.c.b16 %v990, %v989
    %vm999 = vcmask 523264
    %v1001 = vsel %vm999, %v962, 0
    %1003 = vmatpush.bf16.msra.mxu0 0
    %1004 = vmatpush.bf16.msra.mxu0 0
    %1005 = vmatpush.bf16.msra.mxu0 0
    %1006 = vmatpush.bf16.msra.mxu0 0
    %1007 = vmatpush.bf16.msra.mxu0 %v994
    %1008 = vmatpush.bf16.msra.mxu0 %v993
    %1009 = vmatpush.bf16.msra.mxu0 %v992
    %1010 = vmatpush.bf16.msra.mxu0 %v991
    %1011 = vmatmul.bf16.gmra.mxu0 %v1001
    %v1012 = vpop.f32.mrf.mxu0
    %v1013 = vadd.f32 %v973, %v1012
    %v1014 = vpop.f32.mrf.mxu0
    %1015 = vdwg.mxu0
    %vm1016 = vcmask 25600
    %1017 = vst.msk [vmem:[#allocation4] sm:$0x3] %vm1016, %v1013
    // Predicated region
    $region38: #{distill_cnn_forward.9} parent=1 // pred_check
      _
    $region39: #{distill_cnn_forward.9} parent=1 // pred_check_branch
      %1019 = sbr.rel (0) target = $region41
    $region40: #{distill_cnn_forward.9} parent=1 // pred_region
      %1021 = vsyncadd [#allocation5], 0
      %s1023 = sshll.u32 [#allocation4], 4
      %s1024 = int_to_ptr.vmem [resolvable:$true] %s1023
      %s1025 = sshll.u32 %s9, 4
      %s1026 = int_to_ptr.hbm [resolvable:$true] %s1025
      %1028 = dma.vmem_to_hbm [thread:$0]  %s1024, 32, %s1026, [#allocation5]
    $region41: #{distill_cnn_forward.9} parent=1 // pred_fallthru
      _
    // Predicated region
    $region42: #{distill_cnn_forward.9} parent=1 // pred_check
      _
    $region43: #{distill_cnn_forward.9} parent=1 // pred_check_branch
      %1030 = sbr.rel (0) target = $region45
    $region44: #{distill_cnn_forward.9} parent=1 // pred_region
      %1032 = dma.done [#allocation5], 32
    $region45: #{distill_cnn_forward.9} parent=1 // pred_fallthru
      _
    %1033 = vsyncpa [#allocation5], 1

</llo_original>
